<compile_context>
chip_gen: v6e
topology: v6e:2x2x1
jax: 0.10.0
libtpu: 0.0.40
codegen_flags: <defaults>
</compile_context>

<pallas_src>
import math

import numpy as np
import jax
import jax.numpy as jnp
from jax.experimental import pallas as pl
from jax.experimental.pallas import tpu as pltpu

# ----------------------------- configuration -----------------------------
B = 2                 # batch
S = 8                 # sequence length
INPUT_DIM = 32        # word embedding dim (encoder/BERT dim)
LABEL_EMB_DIM = 32    # label embedding dim
D_MODEL = INPUT_DIM + LABEL_EMB_DIM   # 64
NUM_HEADS = 4
DIM_KEY = 16
DIM_VALUE = 16
DIM_FF = 64
NUM_LAYERS = 2
NUM_POSITIONS = 64
LN_EPS = 1e-5

LABEL_NAMES = ["O", "B-PER", "I-PER", "E-PER", "S-PER"]   # synthetic IOBES label set
NUM_LABELS = len(LABEL_NAMES)
BOS_TAG_ID = NUM_LABELS                                   # add_bos=True
NUM_EMBEDDINGS = NUM_LABELS + 1

TEMPERATURE = math.sqrt(float(DIM_KEY))
NEG_FILL = -10000.0

VP = 128   # padded logits width -> lane-dense final store (real labels in [:NUM_LABELS])


def _pick_batch_block():
    """Batch elements per grid step.

    v5e/v6e have a single TensorCore, so grid=(B,) is just a serial loop: merge
    the whole batch into one grid step.  v7x has 2 TensorCores: keep one batch
    element per grid step so dimension_semantics=("parallel",) splits them."""
    try:
        kind = jax.devices()[0].device_kind.lower()
    except Exception:
        return B
    if "v7" in kind or "7x" in kind:
        return 1
    return B


BB = _pick_batch_block()   # batch elements handled per grid step
GRID = B // BB
N_ROWS = BB * S            # rows (tokens) processed per grid step


# ------------------------------ Pallas kernel ------------------------------
def fused_decoder_kernel(
    x_ref, abias_ref, lmask_ref,
    wqkv_ref, bqkv_ref, wo_ref, bo_ref, ln1g_ref, ln1b_ref,
    w1_ref, b1_ref, w2_ref, b2_ref, ln2g_ref, ln2b_ref,
    wfc_ref, bfc_ref,
    out_ref,
    ctx_ref,
):
    """One grid step = BB batch elements flattened to N_ROWS token rows.

    All matmuls are full-width 2-D dots; heads only appear as static 16-lane
    slices of the fused QKV output, and are merged back through the ctx VMEM
    scratch so the output projection is a single matmul."""
    x = x_ref[0]                       # (N_ROWS, D_MODEL) f32
    abias = abias_ref[0]               # (N_ROWS, N_ROWS) additive bias (0 / -1e4),
                                       # block-diagonal over merged batch elements

    def layer_norm(v, g, b):
        # sum(x) and sum(x*x) are independent cross-lane reductions (overlap);
        # var = E[x^2] - E[x]^2, rsqrt goes to the EUP.
        s1 = jnp.sum(v, axis=-1, keepdims=True)
        s2 = jnp.sum(v * v, axis=-1, keepdims=True)
        mean = s1 * (1.0 / D_MODEL)
        var = s2 * (1.0 / D_MODEL) - mean * mean
        return (v - mean) * (jax.lax.rsqrt(var + LN_EPS) * g) + b

    HK = NUM_HEADS * DIM_KEY

    for l in range(NUM_LAYERS):                         # static unroll
        # ---------------- multi-head self attention ----------------
        # Single fused QKV projection (1/sqrt(dim_key) folded into Q columns).
        qkv = jnp.dot(x, wqkv_ref[l], preferred_element_type=jnp.float32) + bqkv_ref[l]
        for h in range(NUM_HEADS):                      # static 16-lane slices
            qh = qkv[:, h * DIM_KEY:(h + 1) * DIM_KEY]
            kh = qkv[:, HK + h * DIM_KEY: HK + (h + 1) * DIM_KEY]
            vh = qkv[:, 2 * HK + h * DIM_VALUE: 2 * HK + (h + 1) * DIM_VALUE]
            e = jnp.einsum("qe,ke->qk", qh, kh,
                           preferred_element_type=jnp.float32) + abias   # (N, N)
            # Masked / cross-batch entries carry -10000: exp underflows to 0.0,
            # so the softmax matches the per-batch masked_fill reference exactly
            # (finite fill -> the PyTorch NaN-replacement branch never triggers).
            p = jnp.exp(e - jnp.max(e, axis=-1, keepdims=True))
            attn = p * pl.reciprocal(jnp.sum(p, axis=-1, keepdims=True), approx=True)
            # concat-heads: write this head's context at its lane offset.
            ctx_ref[:, h * DIM_VALUE:(h + 1) * DIM_VALUE] = jnp.dot(
                attn, vh, preferred_element_type=jnp.float32)
        o = jnp.dot(ctx_ref[...], wo_ref[l],
                    preferred_element_type=jnp.float32) + bo_ref[l]       # (N, D)
        x = layer_norm(x + o, ln1g_ref[l], ln1b_ref[l])

        # ---------------- position-wise feed forward ----------------
        hdn = jnp.maximum(
            jnp.dot(x, w1_ref[l], preferred_element_type=jnp.float32) + b1_ref[l], 0.0)
        y = jnp.dot(hdn, w2_ref[l], preferred_element_type=jnp.float32) + b2_ref[l]
        x = layer_norm(x + y, ln2g_ref[l], ln2b_ref[l])

    # ---- final label projection, padded to VP=128 lanes (dense vst) ----
    logits = jnp.dot(x, wfc_ref[...], preferred_element_type=jnp.float32) + bfc_ref[...]
    # Keep exact masked_fill semantics (masked logits == -10000.0 exactly);
    # this single compare+select runs once per forward, not per layer.
    logits = jnp.where(lmask_ref[0] == 0.0, NEG_FILL, logits)
    out_ref[0] = logits


# --------------------------- pallas_call wrapper ----------------------------
def _const_spec(shape):
    n = len(shape)
    return pl.BlockSpec(shape, lambda i: (0,) * n)


def decoder_stack(x, attn_bias, label_mask_p, stacked_weights):
    # x:            (GRID, N_ROWS, D_MODEL)
    # attn_bias:    (GRID, N_ROWS, N_ROWS)  additive, block-diagonal over batch
    # label_mask_p: (GRID, N_ROWS, VP)      0/1, zero-padded to 128 lanes
    in_specs = [
        pl.BlockSpec((1, N_ROWS, D_MODEL), lambda i: (i, 0, 0)),
        pl.BlockSpec((1, N_ROWS, N_ROWS), lambda i: (i, 0, 0)),
        pl.BlockSpec((1, N_ROWS, VP), lambda i: (i, 0, 0)),
    ] + [
        # Weights: constant index_map -> single VMEM copy, not re-DMA'd per step.
        _const_spec(w.shape) for w in stacked_weights
    ]
    return pl.pallas_call(
        fused_decoder_kernel,
        out_shape=jax.ShapeDtypeStruct((GRID, N_ROWS, VP), jnp.float32),
        grid=(GRID,),
        in_specs=in_specs,
        out_specs=pl.BlockSpec((1, N_ROWS, VP), lambda i: (i, 0, 0)),
        scratch_shapes=[pltpu.VMEM((N_ROWS, NUM_HEADS * DIM_VALUE), jnp.float32)],
        compiler_params=pltpu.CompilerParams(dimension_semantics=("parallel",)),
    )(x, attn_bias, label_mask_p, *stacked_weights)


# ------------------------------ parameter init -----------------------------
def init_params(key):
    keys = jax.random.split(key, 64)
    ki = iter(range(64))

    def lin(kin, kout):
        w = jax.random.normal(keys[next(ki)], (kin, kout), jnp.float32) * 0.02
        b = jax.random.normal(keys[next(ki)], (1, kout), jnp.float32) * 0.02
        return w, b

    params = {}
    params["label_emb"] = (
        jax.random.normal(keys[next(ki)], (NUM_EMBEDDINGS, LABEL_EMB_DIM), jnp.float32) * 0.1
    )

    layers = []
    for _ in range(NUM_LAYERS):
        wq, bq = lin(D_MODEL, NUM_HEADS * DIM_KEY)
        wk, bk = lin(D_MODEL, NUM_HEADS * DIM_KEY)
        wv, bv = lin(D_MODEL, NUM_HEADS * DIM_VALUE)
        wo, bo = lin(NUM_HEADS * DIM_VALUE, D_MODEL)
        w1, b1 = lin(D_MODEL, DIM_FF)
        w2, b2 = lin(DIM_FF, D_MODEL)
        layers.append({
            "attn": {"wq": wq, "bq": bq, "wk": wk, "bk": bk, "wv": wv, "bv": bv,
                     "wo": wo, "bo": bo,
                     "ln_g": jnp.ones((1, D_MODEL), jnp.float32),
                     "ln_b": jnp.zeros((1, D_MODEL), jnp.float32)},
            "ffn": {"w1": w1, "b1": b1, "w2": w2, "b2": b2,
                    "ln_g": jnp.ones((1, D_MODEL), jnp.float32),
                    "ln_b": jnp.zeros((1, D_MODEL), jnp.float32)},
        })
    params["layers"] = layers

    wfc, bfc = lin(D_MODEL, NUM_LABELS)
    params["fc"] = {"w": wfc, "b": bfc}
    return params


def pack_params(params):
    """Repack weights for the fused kernel:
      * wq|wk|wv fused into one (D_MODEL, 3*H*dk) weight per layer, with
        1/sqrt(dim_key) folded into the Q columns (same for the biases),
      * layers stacked on a leading axis,
      * fc zero-padded to VP=128 output lanes (lane-dense final store)."""
    inv_t = 1.0 / TEMPERATURE

    def stack(fn):
        return jnp.stack([fn(layer) for layer in params["layers"]], axis=0)

    stacked = [
        stack(lambda l: jnp.concatenate(
            [l["attn"]["wq"] * inv_t, l["attn"]["wk"], l["attn"]["wv"]], axis=1)),  # (L,D,192)
        stack(lambda l: jnp.concatenate(
            [l["attn"]["bq"] * inv_t, l["attn"]["bk"], l["attn"]["bv"]], axis=1)),  # (L,1,192)
        stack(lambda l: l["attn"]["wo"]),        # (L, H*dv, D)
        stack(lambda l: l["attn"]["bo"]),        # (L, 1, D)
        stack(lambda l: l["attn"]["ln_g"]),
        stack(lambda l: l["attn"]["ln_b"]),
        stack(lambda l: l["ffn"]["w1"]),         # (L, D, F)
        stack(lambda l: l["ffn"]["b1"]),
        stack(lambda l: l["ffn"]["w2"]),         # (L, F, D)
        stack(lambda l: l["ffn"]["b2"]),
        stack(lambda l: l["ffn"]["ln_g"]),
        stack(lambda l: l["ffn"]["ln_b"]),
    ]
    wfc = jnp.zeros((D_MODEL, VP), jnp.float32).at[:, :NUM_LABELS].set(params["fc"]["w"])
    bfc = jnp.zeros((1, VP), jnp.float32).at[:, :NUM_LABELS].set(params["fc"]["b"])
    stacked += [wfc, bfc]
    return {"label_emb": params["label_emb"], "stacked": stacked}


def positional_encoding(num_positions, dim_model):
    position = np.arange(num_positions, dtype=np.float32)[:, None]
    div_term = np.exp(np.arange(0, dim_model, 2, dtype=np.float32)
                      * -(math.log(10000.0) / dim_model))
    pe = np.zeros((num_positions, dim_model), dtype=np.float32)
    pe[:, 0::2] = np.sin(position * div_term)
    pe[:, 1::2] = np.cos(position * div_term)
    return jnp.asarray(pe)


def build_allowed_table():
    """IOBES transition mask: row = previous label id (incl. BOS), col = next label id."""
    idx2val = {i: n for i, n in enumerate(LABEL_NAMES)}
    table = np.ones((NUM_EMBEDDINGS, NUM_LABELS), dtype=np.float32)
    for prev in range(NUM_EMBEDDINGS):
        name = idx2val.get(prev, "[BOS]")
        if name.startswith(("[BOS]", "O", "E", "S")):
            masked = [k for k, v in idx2val.items() if not v.startswith(("O", "B", "S"))]
        else:
            tag = name.split("-")[-1]
            masked = [k for k, v in idx2val.items() if v not in (f"I-{tag}", f"E-{tag}")]
        table[prev, masked] = 0.0
    return jnp.asarray(table)


# -------------------------------- forward ----------------------------------
PE = positional_encoding(NUM_POSITIONS, D_MODEL)
ALLOWED_TABLE = build_allowed_table()
# Pad the transition table to VP columns (padded columns are sliced away later).
ALLOWED_TABLE_P = jnp.concatenate(
    [ALLOWED_TABLE, jnp.ones((NUM_EMBEDDINGS, VP - NUM_LABELS), jnp.float32)], axis=1)


def make_blockdiag_bias(attn_bias):
    """(B, S, S) additive attention bias -> (GRID, BB*S, BB*S) block-diagonal
    additive bias.  Off-diagonal batch blocks get NEG_FILL so batch elements
    merged into one grid step cannot attend across each other (their softmax
    weight underflows to exactly 0)."""
    b4 = jnp.full((GRID, BB, S, BB, S), NEG_FILL, jnp.float32)
    r = jnp.arange(BB)
    vals = jnp.moveaxis(attn_bias.reshape(GRID, BB, S, S), 1, 0)   # (BB, GRID, S, S)
    b4 = b4.at[:, r, :, r, :].set(vals)
    return b4.reshape(GRID, BB * S, BB * S)


@jax.jit
def ner_transformer_forward(packed, word_embeddings, label_ids, pad_mask):
    # --- glue: embedding lookups, BOS shift, masks (plain JAX; gathers have no
    # hot-kernel value) ---
    bos_id = jnp.full((B, 1), BOS_TAG_ID, dtype=jnp.int32)
    bos_emb = packed["label_emb"][bos_id]                       # (B, 1, E)
    lab_emb = packed["label_emb"][label_ids]                    # (B, S, E)
    lab_emb_shifted = jnp.concatenate([bos_emb, lab_emb], axis=1)[:, :-1, :]
    label_ids_shifted = jnp.concatenate([bos_id, label_ids], axis=1)[:, :-1]

    subsequent = jnp.tril(jnp.ones((S, S), dtype=bool))
    target_mask = pad_mask[:, None, :] & subsequent                        # (B,S,S) bool
    attn_bias = jnp.where(target_mask, 0.0, NEG_FILL).astype(jnp.float32)  # additive bias
    attn_bias = make_blockdiag_bias(attn_bias)                             # (GRID,N,N)

    x = jnp.concatenate([word_embeddings, lab_emb_shifted], axis=-1)       # (B,S,D_MODEL)
    x = x + PE[None, :S, :]                                                # PE (dropout = identity)
    x = x.reshape(GRID, N_ROWS, D_MODEL)

    label_mask_p = ALLOWED_TABLE_P[label_ids_shifted].reshape(GRID, N_ROWS, VP)

    # --- hot path: single fused Pallas call (2 decoder layers + label projection) ---
    logits_p = decoder_stack(x, attn_bias, label_mask_p, packed["stacked"])
    return logits_p.reshape(B, S, VP)[:, :, :NUM_LABELS]


# -------------------------- pure-JAX reference check ------------------------
def _reference_forward(params, word_embeddings, label_ids, pad_mask):
    bos_id = jnp.full((B, 1), BOS_TAG_ID, dtype=jnp.int32)
    lab_emb_shifted = jnp.concatenate(
        [params["label_emb"][bos_id], params["label_emb"][label_ids]], axis=1)[:, :-1, :]
    label_ids_shifted = jnp.concatenate([bos_id, label_ids], axis=1)[:, :-1]
    target_mask = (pad_mask[:, None, :] & jnp.tril(jnp.ones((S, S), dtype=bool)))
    x = jnp.concatenate([word_embeddings, lab_emb_shifted], axis=-1) + PE[None, :S, :]

    def ln(v, g, b):
        m = v.mean(-1, keepdims=True)
        var = ((v - m) ** 2).mean(-1, keepdims=True)
        return (v - m) / jnp.sqrt(var + LN_EPS) * g + b

    for layer in params["layers"]:
        p = layer["attn"]
        q = x @ p["wq"] + p["bq"]
        k = x @ p["wk"] + p["bk"]
        v = x @ p["wv"] + p["bv"]
        q = q.reshape(B, S, NUM_HEADS, DIM_KEY).transpose(0, 2, 1, 3)
        k = k.reshape(B, S, NUM_HEADS, DIM_KEY).transpose(0, 2, 1, 3)
        v = v.reshape(B, S, NUM_HEADS, DIM_VALUE).transpose(0, 2, 1, 3)
        e = q @ k.transpose(0, 1, 3, 2) / TEMPERATURE
        e = jnp.where(target_mask[:, None, :, :] == 0, NEG_FILL, e)
        a = jax.nn.softmax(e, axis=-1)
        o = (a @ v).transpose(0, 2, 1, 3).reshape(B, S, NUM_HEADS * DIM_VALUE)
        o = o @ p["wo"] + p["bo"]
        x = ln(x + o, p["ln_g"], p["ln_b"])
        f = layer["ffn"]
        y = jnp.maximum(x @ f["w1"] + f["b1"], 0.0) @ f["w2"] + f["b2"]
        x = ln(x + y, f["ln_g"], f["ln_b"])

    logits = x @ params["fc"]["w"] + params["fc"]["b"]
    label_mask = ALLOWED_TABLE[label_ids_shifted]
    return jnp.where(label_mask == 0, NEG_FILL, logits)


# ----------------------------------- main -----------------------------------
if __name__ == "__main__":
    key = jax.random.PRNGKey(0)
    k_param, k_we, k_lab = jax.random.split(key, 3)

    params = init_params(k_param)
    packed = pack_params(params)

    word_embeddings = jax.random.normal(k_we, (B, S, INPUT_DIM), jnp.float32)
    label_ids = jax.random.randint(k_lab, (B, S), 0, NUM_LABELS, dtype=jnp.int32)
    pad_mask = jnp.array(
        [[True] * S,
         [True] * (S - 2) + [False] * 2])                       # (B, S) bool

    logits = ner_transformer_forward(packed, word_embeddings, label_ids, pad_mask)
    logits = jax.block_until_ready(logits)

    ref = _reference_forward(params, word_embeddings, label_ids, pad_mask)
    # Tolerance accounts for: the approximate (EUP) reciprocal in the kernel's
    # softmax, the E[x^2]-E[x]^2 layer-norm variance form, the fused QKV matmul
    # and 1/sqrt(dim_key) folding (different rounding/association order).
    np.testing.assert_allclose(np.asarray(logits), np.asarray(ref), rtol=2e-3, atol=2e-3)

    assert logits.shape == (B, S, NUM_LABELS)
    assert bool(jnp.all(jnp.isfinite(logits)))
    print("KERNEL_OK")
</pallas_src>

<mosaic_0001>
module attributes {stable_mosaic.version = 11 : i64} {
  func.func @fused_decoder_kernel(%arg0: i32, %arg1: memref<1x16x64xf32, #tpu.memory_space<vmem>>, %arg2: memref<1x16x16xf32, #tpu.memory_space<vmem>>, %arg3: memref<1x16x128xf32, #tpu.memory_space<vmem>>, %arg4: memref<2x64x192xf32, #tpu.memory_space<vmem>>, %arg5: memref<2x1x192xf32, #tpu.memory_space<vmem>>, %arg6: memref<2x64x64xf32, #tpu.memory_space<vmem>>, %arg7: memref<2x1x64xf32, #tpu.memory_space<vmem>>, %arg8: memref<2x1x64xf32, #tpu.memory_space<vmem>>, %arg9: memref<2x1x64xf32, #tpu.memory_space<vmem>>, %arg10: memref<2x64x64xf32, #tpu.memory_space<vmem>>, %arg11: memref<2x1x64xf32, #tpu.memory_space<vmem>>, %arg12: memref<2x64x64xf32, #tpu.memory_space<vmem>>, %arg13: memref<2x1x64xf32, #tpu.memory_space<vmem>>, %arg14: memref<2x1x64xf32, #tpu.memory_space<vmem>>, %arg15: memref<2x1x64xf32, #tpu.memory_space<vmem>>, %arg16: memref<64x128xf32, #tpu.memory_space<vmem>>, %arg17: memref<1x128xf32, #tpu.memory_space<vmem>>, %arg18: memref<1x16x128xf32, #tpu.memory_space<vmem>>, %arg19: memref<16x64xf32, #tpu.memory_space<vmem>>) attributes {dimension_semantics = [#tpu.dimension_semantics<parallel>], iteration_bounds = array<i64: 1>, scalar_prefetch = 0 : i64, scratch_operands = 1 : i64, tpu.core_type = #tpu.core_type<tc>, window_params = [{transform_indices = @transform_0, window_bounds = array<i64: 1, 16, 64>}, {transform_indices = @transform_1, window_bounds = array<i64: 1, 16, 16>}, {transform_indices = @transform_2, window_bounds = array<i64: 1, 16, 128>}, {pipeline_mode = #tpu.pipeline_mode<synchronous>, transform_indices = @transform_3, window_bounds = array<i64: 2, 64, 192>}, {pipeline_mode = #tpu.pipeline_mode<synchronous>, transform_indices = @transform_4, window_bounds = array<i64: 2, 1, 192>}, {pipeline_mode = #tpu.pipeline_mode<synchronous>, transform_indices = @transform_5, window_bounds = array<i64: 2, 64, 64>}, {pipeline_mode = #tpu.pipeline_mode<synchronous>, transform_indices = @transform_6, window_bounds = array<i64: 2, 1, 64>}, {pipeline_mode = #tpu.pipeline_mode<synchronous>, transform_indices = @transform_7, window_bounds = array<i64: 2, 1, 64>}, {pipeline_mode = #tpu.pipeline_mode<synchronous>, transform_indices = @transform_8, window_bounds = array<i64: 2, 1, 64>}, {pipeline_mode = #tpu.pipeline_mode<synchronous>, transform_indices = @transform_9, window_bounds = array<i64: 2, 64, 64>}, {pipeline_mode = #tpu.pipeline_mode<synchronous>, transform_indices = @transform_10, window_bounds = array<i64: 2, 1, 64>}, {pipeline_mode = #tpu.pipeline_mode<synchronous>, transform_indices = @transform_11, window_bounds = array<i64: 2, 64, 64>}, {pipeline_mode = #tpu.pipeline_mode<synchronous>, transform_indices = @transform_12, window_bounds = array<i64: 2, 1, 64>}, {pipeline_mode = #tpu.pipeline_mode<synchronous>, transform_indices = @transform_13, window_bounds = array<i64: 2, 1, 64>}, {pipeline_mode = #tpu.pipeline_mode<synchronous>, transform_indices = @transform_14, window_bounds = array<i64: 2, 1, 64>}, {pipeline_mode = #tpu.pipeline_mode<synchronous>, transform_indices = @transform_15, window_bounds = array<i64: 64, 128>}, {pipeline_mode = #tpu.pipeline_mode<synchronous>, transform_indices = @transform_16, window_bounds = array<i64: 1, 128>}, {transform_indices = @transform_17, window_bounds = array<i64: 1, 16, 128>}]} {
    %c0 = arith.constant 0 : index
    %c0_0 = arith.constant 0 : index
    %c0_1 = arith.constant 0 : index
    %0 = vector.load %arg1[%c0, %c0_0, %c0_1] : memref<1x16x64xf32, #tpu.memory_space<vmem>>, vector<1x16x64xf32>
    %1 = vector.shape_cast %0 : vector<1x16x64xf32> to vector<16x64xf32>
    %c0_2 = arith.constant 0 : index
    %c0_3 = arith.constant 0 : index
    %c0_4 = arith.constant 0 : index
    %2 = vector.load %arg2[%c0_2, %c0_3, %c0_4] : memref<1x16x16xf32, #tpu.memory_space<vmem>>, vector<1x16x16xf32>
    %3 = vector.shape_cast %2 : vector<1x16x16xf32> to vector<16x16xf32>
    %c0_5 = arith.constant 0 : index
    %c0_6 = arith.constant 0 : index
    %c0_7 = arith.constant 0 : index
    %4 = vector.load %arg4[%c0_5, %c0_6, %c0_7] : memref<2x64x192xf32, #tpu.memory_space<vmem>>, vector<1x64x192xf32>
    %5 = vector.shape_cast %4 : vector<1x64x192xf32> to vector<64x192xf32>
    %cst = arith.constant dense<0.000000e+00> : vector<16x192xf32>
    %6 = tpu.matmul %1, %5, %cst {dimension_numbers = #tpu.dot_dimension_numbers<[1], [0], [0], [1], [0, 0, 1, 1], [], []>} : vector<16x64xf32>, vector<64x192xf32>, vector<16x192xf32> -> vector<16x192xf32>
    %c0_8 = arith.constant 0 : index
    %c0_9 = arith.constant 0 : index
    %c0_10 = arith.constant 0 : index
    %7 = vector.load %arg5[%c0_8, %c0_9, %c0_10] : memref<2x1x192xf32, #tpu.memory_space<vmem>>, vector<1x1x192xf32>
    %8 = vector.shape_cast %7 : vector<1x1x192xf32> to vector<1x192xf32>
    %9 = vector.broadcast %8 : vector<1x192xf32> to vector<16x192xf32>
    %10 = arith.addf %6, %9 : vector<16x192xf32>
    %11 = vector.extract_strided_slice %10 {offsets = [0, 0], sizes = [16, 16], strides = [1, 1]} : vector<16x192xf32> to vector<16x16xf32>
    %12 = vector.extract_strided_slice %10 {offsets = [0, 64], sizes = [16, 16], strides = [1, 1]} : vector<16x192xf32> to vector<16x16xf32>
    %13 = vector.extract_strided_slice %10 {offsets = [0, 128], sizes = [16, 16], strides = [1, 1]} : vector<16x192xf32> to vector<16x16xf32>
    "tpu.trace_start"() <{level = 10 : i32, message = "qe,ke->qk"}> : () -> ()
    %cst_11 = arith.constant dense<0.000000e+00> : vector<16x16xf32>
    %14 = tpu.matmul %11, %12, %cst_11 {dimension_numbers = #tpu.dot_dimension_numbers<[1], [1], [0], [0], [0, 0, 1, 0], [], []>} : vector<16x16xf32>, vector<16x16xf32>, vector<16x16xf32> -> vector<16x16xf32>
    "tpu.trace_stop"() : () -> ()
    %15 = arith.addf %14, %3 : vector<16x16xf32>
    %cst_12 = arith.constant dense<0xFF800000> : vector<16xf32>
    %16 = vector.multi_reduction <maximumf>, %15, %cst_12 [1] : vector<16x16xf32> to vector<16xf32>
    %17 = vector.shape_cast %16 : vector<16xf32> to vector<16x1xf32>
    %18 = vector.broadcast %17 : vector<16x1xf32> to vector<16x16xf32>
    %19 = arith.subf %15, %18 : vector<16x16xf32>
    %20 = math.exp %19 : vector<16x16xf32>
    %cst_13 = arith.constant dense<0.000000e+00> : vector<16xf32>
    %21 = vector.multi_reduction <add>, %20, %cst_13 [1] : vector<16x16xf32> to vector<16xf32>
    %22 = vector.shape_cast %21 : vector<16xf32> to vector<16x1xf32>
    %23 = tpu.reciprocal %22 {approx = true} : vector<16x1xf32> -> vector<16x1xf32>
    %24 = vector.broadcast %23 : vector<16x1xf32> to vector<16x16xf32>
    %25 = arith.mulf %20, %24 : vector<16x16xf32>
    %cst_14 = arith.constant dense<0.000000e+00> : vector<16x16xf32>
    %26 = tpu.matmul %25, %13, %cst_14 {dimension_numbers = #tpu.dot_dimension_numbers<[1], [0], [0], [1], [0, 0, 1, 1], [], []>} : vector<16x16xf32>, vector<16x16xf32>, vector<16x16xf32> -> vector<16x16xf32>
    %c0_15 = arith.constant 0 : index
    %c0_16 = arith.constant 0 : index
    %27 = vector.load %arg19[%c0_15, %c0_16] : memref<16x64xf32, #tpu.memory_space<vmem>>, vector<16x16xf32>
    tpu.vector_store %arg19[%c0_15, %c0_16], %26 {strides = array<i32>} : memref<16x64xf32, #tpu.memory_space<vmem>>, vector<16x16xf32>,
    %28 = vector.extract_strided_slice %10 {offsets = [0, 16], sizes = [16, 16], strides = [1, 1]} : vector<16x192xf32> to vector<16x16xf32>
    %29 = vector.extract_strided_slice %10 {offsets = [0, 80], sizes = [16, 16], strides = [1, 1]} : vector<16x192xf32> to vector<16x16xf32>
    %30 = vector.extract_strided_slice %10 {offsets = [0, 144], sizes = [16, 16], strides = [1, 1]} : vector<16x192xf32> to vector<16x16xf32>
    "tpu.trace_start"() <{level = 10 : i32, message = "qe,ke->qk"}> : () -> ()
    %cst_17 = arith.constant dense<0.000000e+00> : vector<16x16xf32>
    %31 = tpu.matmul %28, %29, %cst_17 {dimension_numbers = #tpu.dot_dimension_numbers<[1], [1], [0], [0], [0, 0, 1, 0], [], []>} : vector<16x16xf32>, vector<16x16xf32>, vector<16x16xf32> -> vector<16x16xf32>
    "tpu.trace_stop"() : () -> ()
    %32 = arith.addf %31, %3 : vector<16x16xf32>
    %cst_18 = arith.constant dense<0xFF800000> : vector<16xf32>
    %33 = vector.multi_reduction <maximumf>, %32, %cst_18 [1] : vector<16x16xf32> to vector<16xf32>
    %34 = vector.shape_cast %33 : vector<16xf32> to vector<16x1xf32>
    %35 = vector.broadcast %34 : vector<16x1xf32> to vector<16x16xf32>
    %36 = arith.subf %32, %35 : vector<16x16xf32>
    %37 = math.exp %36 : vector<16x16xf32>
    %cst_19 = arith.constant dense<0.000000e+00> : vector<16xf32>
    %38 = vector.multi_reduction <add>, %37, %cst_19 [1] : vector<16x16xf32> to vector<16xf32>
    %39 = vector.shape_cast %38 : vector<16xf32> to vector<16x1xf32>
    %40 = tpu.reciprocal %39 {approx = true} : vector<16x1xf32> -> vector<16x1xf32>
    %41 = vector.broadcast %40 : vector<16x1xf32> to vector<16x16xf32>
    %42 = arith.mulf %37, %41 : vector<16x16xf32>
    %cst_20 = arith.constant dense<0.000000e+00> : vector<16x16xf32>
    %43 = tpu.matmul %42, %30, %cst_20 {dimension_numbers = #tpu.dot_dimension_numbers<[1], [0], [0], [1], [0, 0, 1, 1], [], []>} : vector<16x16xf32>, vector<16x16xf32>, vector<16x16xf32> -> vector<16x16xf32>
    %c0_21 = arith.constant 0 : index
    %c16 = arith.constant 16 : index
    %44 = vector.load %arg19[%c0_21, %c16] : memref<16x64xf32, #tpu.memory_space<vmem>>, vector<16x16xf32>
    tpu.vector_store %arg19[%c0_21, %c16], %43 {strides = array<i32>} : memref<16x64xf32, #tpu.memory_space<vmem>>, vector<16x16xf32>,
    %45 = vector.extract_strided_slice %10 {offsets = [0, 32], sizes = [16, 16], strides = [1, 1]} : vector<16x192xf32> to vector<16x16xf32>
    %46 = vector.extract_strided_slice %10 {offsets = [0, 96], sizes = [16, 16], strides = [1, 1]} : vector<16x192xf32> to vector<16x16xf32>
    %47 = vector.extract_strided_slice %10 {offsets = [0, 160], sizes = [16, 16], strides = [1, 1]} : vector<16x192xf32> to vector<16x16xf32>
    "tpu.trace_start"() <{level = 10 : i32, message = "qe,ke->qk"}> : () -> ()
    %cst_22 = arith.constant dense<0.000000e+00> : vector<16x16xf32>
    %48 = tpu.matmul %45, %46, %cst_22 {dimension_numbers = #tpu.dot_dimension_numbers<[1], [1], [0], [0], [0, 0, 1, 0], [], []>} : vector<16x16xf32>, vector<16x16xf32>, vector<16x16xf32> -> vector<16x16xf32>
    "tpu.trace_stop"() : () -> ()
    %49 = arith.addf %48, %3 : vector<16x16xf32>
    %cst_23 = arith.constant dense<0xFF800000> : vector<16xf32>
    %50 = vector.multi_reduction <maximumf>, %49, %cst_23 [1] : vector<16x16xf32> to vector<16xf32>
    %51 = vector.shape_cast %50 : vector<16xf32> to vector<16x1xf32>
    %52 = vector.broadcast %51 : vector<16x1xf32> to vector<16x16xf32>
    %53 = arith.subf %49, %52 : vector<16x16xf32>
    %54 = math.exp %53 : vector<16x16xf32>
    %cst_24 = arith.constant dense<0.000000e+00> : vector<16xf32>
    %55 = vector.multi_reduction <add>, %54, %cst_24 [1] : vector<16x16xf32> to vector<16xf32>
    %56 = vector.shape_cast %55 : vector<16xf32> to vector<16x1xf32>
    %57 = tpu.reciprocal %56 {approx = true} : vector<16x1xf32> -> vector<16x1xf32>
    %58 = vector.broadcast %57 : vector<16x1xf32> to vector<16x16xf32>
    %59 = arith.mulf %54, %58 : vector<16x16xf32>
    %cst_25 = arith.constant dense<0.000000e+00> : vector<16x16xf32>
    %60 = tpu.matmul %59, %47, %cst_25 {dimension_numbers = #tpu.dot_dimension_numbers<[1], [0], [0], [1], [0, 0, 1, 1], [], []>} : vector<16x16xf32>, vector<16x16xf32>, vector<16x16xf32> -> vector<16x16xf32>
    %c0_26 = arith.constant 0 : index
    %c32 = arith.constant 32 : index
    %61 = vector.load %arg19[%c0_26, %c32] : memref<16x64xf32, #tpu.memory_space<vmem>>, vector<16x16xf32>
    tpu.vector_store %arg19[%c0_26, %c32], %60 {strides = array<i32>} : memref<16x64xf32, #tpu.memory_space<vmem>>, vector<16x16xf32>,
    %62 = vector.extract_strided_slice %10 {offsets = [0, 48], sizes = [16, 16], strides = [1, 1]} : vector<16x192xf32> to vector<16x16xf32>
    %63 = vector.extract_strided_slice %10 {offsets = [0, 112], sizes = [16, 16], strides = [1, 1]} : vector<16x192xf32> to vector<16x16xf32>
    %64 = vector.extract_strided_slice %10 {offsets = [0, 176], sizes = [16, 16], strides = [1, 1]} : vector<16x192xf32> to vector<16x16xf32>
    "tpu.trace_start"() <{level = 10 : i32, message = "qe,ke->qk"}> : () -> ()
    %cst_27 = arith.constant dense<0.000000e+00> : vector<16x16xf32>
    %65 = tpu.matmul %62, %63, %cst_27 {dimension_numbers = #tpu.dot_dimension_numbers<[1], [1], [0], [0], [0, 0, 1, 0], [], []>} : vector<16x16xf32>, vector<16x16xf32>, vector<16x16xf32> -> vector<16x16xf32>
    "tpu.trace_stop"() : () -> ()
    %66 = arith.addf %65, %3 : vector<16x16xf32>
    %cst_28 = arith.constant dense<0xFF800000> : vector<16xf32>
    %67 = vector.multi_reduction <maximumf>, %66, %cst_28 [1] : vector<16x16xf32> to vector<16xf32>
    %68 = vector.shape_cast %67 : vector<16xf32> to vector<16x1xf32>
    %69 = vector.broadcast %68 : vector<16x1xf32> to vector<16x16xf32>
    %70 = arith.subf %66, %69 : vector<16x16xf32>
    %71 = math.exp %70 : vector<16x16xf32>
    %cst_29 = arith.constant dense<0.000000e+00> : vector<16xf32>
    %72 = vector.multi_reduction <add>, %71, %cst_29 [1] : vector<16x16xf32> to vector<16xf32>
    %73 = vector.shape_cast %72 : vector<16xf32> to vector<16x1xf32>
    %74 = tpu.reciprocal %73 {approx = true} : vector<16x1xf32> -> vector<16x1xf32>
    %75 = vector.broadcast %74 : vector<16x1xf32> to vector<16x16xf32>
    %76 = arith.mulf %71, %75 : vector<16x16xf32>
    %cst_30 = arith.constant dense<0.000000e+00> : vector<16x16xf32>
    %77 = tpu.matmul %76, %64, %cst_30 {dimension_numbers = #tpu.dot_dimension_numbers<[1], [0], [0], [1], [0, 0, 1, 1], [], []>} : vector<16x16xf32>, vector<16x16xf32>, vector<16x16xf32> -> vector<16x16xf32>
    %c0_31 = arith.constant 0 : index
    %c48 = arith.constant 48 : index
    %78 = vector.load %arg19[%c0_31, %c48] : memref<16x64xf32, #tpu.memory_space<vmem>>, vector<16x16xf32>
    tpu.vector_store %arg19[%c0_31, %c48], %77 {strides = array<i32>} : memref<16x64xf32, #tpu.memory_space<vmem>>, vector<16x16xf32>,
    %c0_32 = arith.constant 0 : index
    %c0_33 = arith.constant 0 : index
    %79 = vector.load %arg19[%c0_32, %c0_33] : memref<16x64xf32, #tpu.memory_space<vmem>>, vector<16x64xf32>
    %c0_34 = arith.constant 0 : index
    %c0_35 = arith.constant 0 : index
    %c0_36 = arith.constant 0 : index
    %80 = vector.load %arg6[%c0_34, %c0_35, %c0_36] : memref<2x64x64xf32, #tpu.memory_space<vmem>>, vector<1x64x64xf32>
    %81 = vector.shape_cast %80 : vector<1x64x64xf32> to vector<64x64xf32>
    %cst_37 = arith.constant dense<0.000000e+00> : vector<16x64xf32>
    %82 = tpu.matmul %79, %81, %cst_37 {dimension_numbers = #tpu.dot_dimension_numbers<[1], [0], [0], [1], [0, 0, 1, 1], [], []>} : vector<16x64xf32>, vector<64x64xf32>, vector<16x64xf32> -> vector<16x64xf32>
    %c0_38 = arith.constant 0 : index
    %c0_39 = arith.constant 0 : index
    %c0_40 = arith.constant 0 : index
    %83 = vector.load %arg7[%c0_38, %c0_39, %c0_40] : memref<2x1x64xf32, #tpu.memory_space<vmem>>, vector<1x1x64xf32>
    %84 = vector.shape_cast %83 : vector<1x1x64xf32> to vector<1x64xf32>
    %85 = vector.broadcast %84 : vector<1x64xf32> to vector<16x64xf32>
    %86 = arith.addf %82, %85 : vector<16x64xf32>
    %87 = arith.addf %1, %86 : vector<16x64xf32>
    %c0_41 = arith.constant 0 : index
    %c0_42 = arith.constant 0 : index
    %c0_43 = arith.constant 0 : index
    %88 = vector.load %arg8[%c0_41, %c0_42, %c0_43] : memref<2x1x64xf32, #tpu.memory_space<vmem>>, vector<1x1x64xf32>
    %89 = vector.shape_cast %88 : vector<1x1x64xf32> to vector<1x64xf32>
    %c0_44 = arith.constant 0 : index
    %c0_45 = arith.constant 0 : index
    %c0_46 = arith.constant 0 : index
    %90 = vector.load %arg9[%c0_44, %c0_45, %c0_46] : memref<2x1x64xf32, #tpu.memory_space<vmem>>, vector<1x1x64xf32>
    %91 = vector.shape_cast %90 : vector<1x1x64xf32> to vector<1x64xf32>
    %cst_47 = arith.constant dense<0.000000e+00> : vector<16xf32>
    %92 = vector.multi_reduction <add>, %87, %cst_47 [1] : vector<16x64xf32> to vector<16xf32>
    %93 = vector.shape_cast %92 : vector<16xf32> to vector<16x1xf32>
    %94 = arith.mulf %87, %87 : vector<16x64xf32>
    %cst_48 = arith.constant dense<0.000000e+00> : vector<16xf32>
    %95 = vector.multi_reduction <add>, %94, %cst_48 [1] : vector<16x64xf32> to vector<16xf32>
    %96 = vector.shape_cast %95 : vector<16xf32> to vector<16x1xf32>
    %cst_49 = arith.constant 1.562500e-02 : f32
    %97 = vector.broadcast %cst_49 : f32 to vector<16x1xf32>
    %98 = arith.mulf %93, %97 : vector<16x1xf32>
    %cst_50 = arith.constant 1.562500e-02 : f32
    %99 = vector.broadcast %cst_50 : f32 to vector<16x1xf32>
    %100 = arith.mulf %96, %99 : vector<16x1xf32>
    %101 = arith.mulf %98, %98 : vector<16x1xf32>
    %102 = arith.subf %100, %101 : vector<16x1xf32>
    %103 = vector.broadcast %98 : vector<16x1xf32> to vector<16x64xf32>
    %104 = arith.subf %87, %103 : vector<16x64xf32>
    %cst_51 = arith.constant 9.99999974E-6 : f32
    %105 = vector.broadcast %cst_51 : f32 to vector<16x1xf32>
    %106 = arith.addf %102, %105 : vector<16x1xf32>
    %107 = math.rsqrt %106 : vector<16x1xf32>
    %108 = vector.broadcast %107 : vector<16x1xf32> to vector<16x64xf32>
    %109 = vector.broadcast %89 : vector<1x64xf32> to vector<16x64xf32>
    %110 = arith.mulf %108, %109 : vector<16x64xf32>
    %111 = arith.mulf %104, %110 : vector<16x64xf32>
    %112 = vector.broadcast %91 : vector<1x64xf32> to vector<16x64xf32>
    %113 = arith.addf %111, %112 : vector<16x64xf32>
    %c0_52 = arith.constant 0 : index
    %c0_53 = arith.constant 0 : index
    %c0_54 = arith.constant 0 : index
    %114 = vector.load %arg10[%c0_52, %c0_53, %c0_54] : memref<2x64x64xf32, #tpu.memory_space<vmem>>, vector<1x64x64xf32>
    %115 = vector.shape_cast %114 : vector<1x64x64xf32> to vector<64x64xf32>
    %cst_55 = arith.constant dense<0.000000e+00> : vector<16x64xf32>
    %116 = tpu.matmul %113, %115, %cst_55 {dimension_numbers = #tpu.dot_dimension_numbers<[1], [0], [0], [1], [0, 0, 1, 1], [], []>} : vector<16x64xf32>, vector<64x64xf32>, vector<16x64xf32> -> vector<16x64xf32>
    %c0_56 = arith.constant 0 : index
    %c0_57 = arith.constant 0 : index
    %c0_58 = arith.constant 0 : index
    %117 = vector.load %arg11[%c0_56, %c0_57, %c0_58] : memref<2x1x64xf32, #tpu.memory_space<vmem>>, vector<1x1x64xf32>
    %118 = vector.shape_cast %117 : vector<1x1x64xf32> to vector<1x64xf32>
    %119 = vector.broadcast %118 : vector<1x64xf32> to vector<16x64xf32>
    %120 = arith.addf %116, %119 : vector<16x64xf32>
    %cst_59 = arith.constant 0.000000e+00 : f32
    %121 = vector.broadcast %cst_59 : f32 to vector<16x64xf32>
    %122 = arith.maximumf %120, %121 : vector<16x64xf32>
    %c0_60 = arith.constant 0 : index
    %c0_61 = arith.constant 0 : index
    %c0_62 = arith.constant 0 : index
    %123 = vector.load %arg12[%c0_60, %c0_61, %c0_62] : memref<2x64x64xf32, #tpu.memory_space<vmem>>, vector<1x64x64xf32>
    %124 = vector.shape_cast %123 : vector<1x64x64xf32> to vector<64x64xf32>
    %cst_63 = arith.constant dense<0.000000e+00> : vector<16x64xf32>
    %125 = tpu.matmul %122, %124, %cst_63 {dimension_numbers = #tpu.dot_dimension_numbers<[1], [0], [0], [1], [0, 0, 1, 1], [], []>} : vector<16x64xf32>, vector<64x64xf32>, vector<16x64xf32> -> vector<16x64xf32>
    %c0_64 = arith.constant 0 : index
    %c0_65 = arith.constant 0 : index
    %c0_66 = arith.constant 0 : index
    %126 = vector.load %arg13[%c0_64, %c0_65, %c0_66] : memref<2x1x64xf32, #tpu.memory_space<vmem>>, vector<1x1x64xf32>
    %127 = vector.shape_cast %126 : vector<1x1x64xf32> to vector<1x64xf32>
    %128 = vector.broadcast %127 : vector<1x64xf32> to vector<16x64xf32>
    %129 = arith.addf %125, %128 : vector<16x64xf32>
    %130 = arith.addf %113, %129 : vector<16x64xf32>
    %c0_67 = arith.constant 0 : index
    %c0_68 = arith.constant 0 : index
    %c0_69 = arith.constant 0 : index
    %131 = vector.load %arg14[%c0_67, %c0_68, %c0_69] : memref<2x1x64xf32, #tpu.memory_space<vmem>>, vector<1x1x64xf32>
    %132 = vector.shape_cast %131 : vector<1x1x64xf32> to vector<1x64xf32>
    %c0_70 = arith.constant 0 : index
    %c0_71 = arith.constant 0 : index
    %c0_72 = arith.constant 0 : index
    %133 = vector.load %arg15[%c0_70, %c0_71, %c0_72] : memref<2x1x64xf32, #tpu.memory_space<vmem>>, vector<1x1x64xf32>
    %134 = vector.shape_cast %133 : vector<1x1x64xf32> to vector<1x64xf32>
    %cst_73 = arith.constant dense<0.000000e+00> : vector<16xf32>
    %135 = vector.multi_reduction <add>, %130, %cst_73 [1] : vector<16x64xf32> to vector<16xf32>
    %136 = vector.shape_cast %135 : vector<16xf32> to vector<16x1xf32>
    %137 = arith.mulf %130, %130 : vector<16x64xf32>
    %cst_74 = arith.constant dense<0.000000e+00> : vector<16xf32>
    %138 = vector.multi_reduction <add>, %137, %cst_74 [1] : vector<16x64xf32> to vector<16xf32>
    %139 = vector.shape_cast %138 : vector<16xf32> to vector<16x1xf32>
    %cst_75 = arith.constant 1.562500e-02 : f32
    %140 = vector.broadcast %cst_75 : f32 to vector<16x1xf32>
    %141 = arith.mulf %136, %140 : vector<16x1xf32>
    %cst_76 = arith.constant 1.562500e-02 : f32
    %142 = vector.broadcast %cst_76 : f32 to vector<16x1xf32>
    %143 = arith.mulf %139, %142 : vector<16x1xf32>
    %144 = arith.mulf %141, %141 : vector<16x1xf32>
    %145 = arith.subf %143, %144 : vector<16x1xf32>
    %146 = vector.broadcast %141 : vector<16x1xf32> to vector<16x64xf32>
    %147 = arith.subf %130, %146 : vector<16x64xf32>
    %cst_77 = arith.constant 9.99999974E-6 : f32
    %148 = vector.broadcast %cst_77 : f32 to vector<16x1xf32>
    %149 = arith.addf %145, %148 : vector<16x1xf32>
    %150 = math.rsqrt %149 : vector<16x1xf32>
    %151 = vector.broadcast %150 : vector<16x1xf32> to vector<16x64xf32>
    %152 = vector.broadcast %132 : vector<1x64xf32> to vector<16x64xf32>
    %153 = arith.mulf %151, %152 : vector<16x64xf32>
    %154 = arith.mulf %147, %153 : vector<16x64xf32>
    %155 = vector.broadcast %134 : vector<1x64xf32> to vector<16x64xf32>
    %156 = arith.addf %154, %155 : vector<16x64xf32>
    %c1 = arith.constant 1 : index
    %c0_78 = arith.constant 0 : index
    %c0_79 = arith.constant 0 : index
    %157 = vector.load %arg4[%c1, %c0_78, %c0_79] : memref<2x64x192xf32, #tpu.memory_space<vmem>>, vector<1x64x192xf32>
    %158 = vector.shape_cast %157 : vector<1x64x192xf32> to vector<64x192xf32>
    %cst_80 = arith.constant dense<0.000000e+00> : vector<16x192xf32>
    %159 = tpu.matmul %156, %158, %cst_80 {dimension_numbers = #tpu.dot_dimension_numbers<[1], [0], [0], [1], [0, 0, 1, 1], [], []>} : vector<16x64xf32>, vector<64x192xf32>, vector<16x192xf32> -> vector<16x192xf32>
    %c1_81 = arith.constant 1 : index
    %c0_82 = arith.constant 0 : index
    %c0_83 = arith.constant 0 : index
    %160 = vector.load %arg5[%c1_81, %c0_82, %c0_83] : memref<2x1x192xf32, #tpu.memory_space<vmem>>, vector<1x1x192xf32>
    %161 = vector.shape_cast %160 : vector<1x1x192xf32> to vector<1x192xf32>
    %162 = vector.broadcast %161 : vector<1x192xf32> to vector<16x192xf32>
    %163 = arith.addf %159, %162 : vector<16x192xf32>
    %164 = vector.extract_strided_slice %163 {offsets = [0, 0], sizes = [16, 16], strides = [1, 1]} : vector<16x192xf32> to vector<16x16xf32>
    %165 = vector.extract_strided_slice %163 {offsets = [0, 64], sizes = [16, 16], strides = [1, 1]} : vector<16x192xf32> to vector<16x16xf32>
    %166 = vector.extract_strided_slice %163 {offsets = [0, 128], sizes = [16, 16], strides = [1, 1]} : vector<16x192xf32> to vector<16x16xf32>
    "tpu.trace_start"() <{level = 10 : i32, message = "qe,ke->qk"}> : () -> ()
    %cst_84 = arith.constant dense<0.000000e+00> : vector<16x16xf32>
    %167 = tpu.matmul %164, %165, %cst_84 {dimension_numbers = #tpu.dot_dimension_numbers<[1], [1], [0], [0], [0, 0, 1, 0], [], []>} : vector<16x16xf32>, vector<16x16xf32>, vector<16x16xf32> -> vector<16x16xf32>
    "tpu.trace_stop"() : () -> ()
    %168 = arith.addf %167, %3 : vector<16x16xf32>
    %cst_85 = arith.constant dense<0xFF800000> : vector<16xf32>
    %169 = vector.multi_reduction <maximumf>, %168, %cst_85 [1] : vector<16x16xf32> to vector<16xf32>
    %170 = vector.shape_cast %169 : vector<16xf32> to vector<16x1xf32>
    %171 = vector.broadcast %170 : vector<16x1xf32> to vector<16x16xf32>
    %172 = arith.subf %168, %171 : vector<16x16xf32>
    %173 = math.exp %172 : vector<16x16xf32>
    %cst_86 = arith.constant dense<0.000000e+00> : vector<16xf32>
    %174 = vector.multi_reduction <add>, %173, %cst_86 [1] : vector<16x16xf32> to vector<16xf32>
    %175 = vector.shape_cast %174 : vector<16xf32> to vector<16x1xf32>
    %176 = tpu.reciprocal %175 {approx = true} : vector<16x1xf32> -> vector<16x1xf32>
    %177 = vector.broadcast %176 : vector<16x1xf32> to vector<16x16xf32>
    %178 = arith.mulf %173, %177 : vector<16x16xf32>
    %cst_87 = arith.constant dense<0.000000e+00> : vector<16x16xf32>
    %179 = tpu.matmul %178, %166, %cst_87 {dimension_numbers = #tpu.dot_dimension_numbers<[1], [0], [0], [1], [0, 0, 1, 1], [], []>} : vector<16x16xf32>, vector<16x16xf32>, vector<16x16xf32> -> vector<16x16xf32>
    %c0_88 = arith.constant 0 : index
    %c0_89 = arith.constant 0 : index
    %180 = vector.load %arg19[%c0_88, %c0_89] : memref<16x64xf32, #tpu.memory_space<vmem>>, vector<16x16xf32>
    tpu.vector_store %arg19[%c0_88, %c0_89], %179 {strides = array<i32>} : memref<16x64xf32, #tpu.memory_space<vmem>>, vector<16x16xf32>,
    %181 = vector.extract_strided_slice %163 {offsets = [0, 16], sizes = [16, 16], strides = [1, 1]} : vector<16x192xf32> to vector<16x16xf32>
    %182 = vector.extract_strided_slice %163 {offsets = [0, 80], sizes = [16, 16], strides = [1, 1]} : vector<16x192xf32> to vector<16x16xf32>
    %183 = vector.extract_strided_slice %163 {offsets = [0, 144], sizes = [16, 16], strides = [1, 1]} : vector<16x192xf32> to vector<16x16xf32>
    "tpu.trace_start"() <{level = 10 : i32, message = "qe,ke->qk"}> : () -> ()
    %cst_90 = arith.constant dense<0.000000e+00> : vector<16x16xf32>
    %184 = tpu.matmul %181, %182, %cst_90 {dimension_numbers = #tpu.dot_dimension_numbers<[1], [1], [0], [0], [0, 0, 1, 0], [], []>} : vector<16x16xf32>, vector<16x16xf32>, vector<16x16xf32> -> vector<16x16xf32>
    "tpu.trace_stop"() : () -> ()
    %185 = arith.addf %184, %3 : vector<16x16xf32>
    %cst_91 = arith.constant dense<0xFF800000> : vector<16xf32>
    %186 = vector.multi_reduction <maximumf>, %185, %cst_91 [1] : vector<16x16xf32> to vector<16xf32>
    %187 = vector.shape_cast %186 : vector<16xf32> to vector<16x1xf32>
    %188 = vector.broadcast %187 : vector<16x1xf32> to vector<16x16xf32>
    %189 = arith.subf %185, %188 : vector<16x16xf32>
    %190 = math.exp %189 : vector<16x16xf32>
    %cst_92 = arith.constant dense<0.000000e+00> : vector<16xf32>
    %191 = vector.multi_reduction <add>, %190, %cst_92 [1] : vector<16x16xf32> to vector<16xf32>
    %192 = vector.shape_cast %191 : vector<16xf32> to vector<16x1xf32>
    %193 = tpu.reciprocal %192 {approx = true} : vector<16x1xf32> -> vector<16x1xf32>
    %194 = vector.broadcast %193 : vector<16x1xf32> to vector<16x16xf32>
    %195 = arith.mulf %190, %194 : vector<16x16xf32>
    %cst_93 = arith.constant dense<0.000000e+00> : vector<16x16xf32>
    %196 = tpu.matmul %195, %183, %cst_93 {dimension_numbers = #tpu.dot_dimension_numbers<[1], [0], [0], [1], [0, 0, 1, 1], [], []>} : vector<16x16xf32>, vector<16x16xf32>, vector<16x16xf32> -> vector<16x16xf32>
    %c0_94 = arith.constant 0 : index
    %c16_95 = arith.constant 16 : index
    %197 = vector.load %arg19[%c0_94, %c16_95] : memref<16x64xf32, #tpu.memory_space<vmem>>, vector<16x16xf32>
    tpu.vector_store %arg19[%c0_94, %c16_95], %196 {strides = array<i32>} : memref<16x64xf32, #tpu.memory_space<vmem>>, vector<16x16xf32>,
    %198 = vector.extract_strided_slice %163 {offsets = [0, 32], sizes = [16, 16], strides = [1, 1]} : vector<16x192xf32> to vector<16x16xf32>
    %199 = vector.extract_strided_slice %163 {offsets = [0, 96], sizes = [16, 16], strides = [1, 1]} : vector<16x192xf32> to vector<16x16xf32>
    %200 = vector.extract_strided_slice %163 {offsets = [0, 160], sizes = [16, 16], strides = [1, 1]} : vector<16x192xf32> to vector<16x16xf32>
    "tpu.trace_start"() <{level = 10 : i32, message = "qe,ke->qk"}> : () -> ()
    %cst_96 = arith.constant dense<0.000000e+00> : vector<16x16xf32>
    %201 = tpu.matmul %198, %199, %cst_96 {dimension_numbers = #tpu.dot_dimension_numbers<[1], [1], [0], [0], [0, 0, 1, 0], [], []>} : vector<16x16xf32>, vector<16x16xf32>, vector<16x16xf32> -> vector<16x16xf32>
    "tpu.trace_stop"() : () -> ()
    %202 = arith.addf %201, %3 : vector<16x16xf32>
    %cst_97 = arith.constant dense<0xFF800000> : vector<16xf32>
    %203 = vector.multi_reduction <maximumf>, %202, %cst_97 [1] : vector<16x16xf32> to vector<16xf32>
    %204 = vector.shape_cast %203 : vector<16xf32> to vector<16x1xf32>
    %205 = vector.broadcast %204 : vector<16x1xf32> to vector<16x16xf32>
    %206 = arith.subf %202, %205 : vector<16x16xf32>
    %207 = math.exp %206 : vector<16x16xf32>
    %cst_98 = arith.constant dense<0.000000e+00> : vector<16xf32>
    %208 = vector.multi_reduction <add>, %207, %cst_98 [1] : vector<16x16xf32> to vector<16xf32>
    %209 = vector.shape_cast %208 : vector<16xf32> to vector<16x1xf32>
    %210 = tpu.reciprocal %209 {approx = true} : vector<16x1xf32> -> vector<16x1xf32>
    %211 = vector.broadcast %210 : vector<16x1xf32> to vector<16x16xf32>
    %212 = arith.mulf %207, %211 : vector<16x16xf32>
    %cst_99 = arith.constant dense<0.000000e+00> : vector<16x16xf32>
    %213 = tpu.matmul %212, %200, %cst_99 {dimension_numbers = #tpu.dot_dimension_numbers<[1], [0], [0], [1], [0, 0, 1, 1], [], []>} : vector<16x16xf32>, vector<16x16xf32>, vector<16x16xf32> -> vector<16x16xf32>
    %c0_100 = arith.constant 0 : index
    %c32_101 = arith.constant 32 : index
    %214 = vector.load %arg19[%c0_100, %c32_101] : memref<16x64xf32, #tpu.memory_space<vmem>>, vector<16x16xf32>
    tpu.vector_store %arg19[%c0_100, %c32_101], %213 {strides = array<i32>} : memref<16x64xf32, #tpu.memory_space<vmem>>, vector<16x16xf32>,
    %215 = vector.extract_strided_slice %163 {offsets = [0, 48], sizes = [16, 16], strides = [1, 1]} : vector<16x192xf32> to vector<16x16xf32>
    %216 = vector.extract_strided_slice %163 {offsets = [0, 112], sizes = [16, 16], strides = [1, 1]} : vector<16x192xf32> to vector<16x16xf32>
    %217 = vector.extract_strided_slice %163 {offsets = [0, 176], sizes = [16, 16], strides = [1, 1]} : vector<16x192xf32> to vector<16x16xf32>
    "tpu.trace_start"() <{level = 10 : i32, message = "qe,ke->qk"}> : () -> ()
    %cst_102 = arith.constant dense<0.000000e+00> : vector<16x16xf32>
    %218 = tpu.matmul %215, %216, %cst_102 {dimension_numbers = #tpu.dot_dimension_numbers<[1], [1], [0], [0], [0, 0, 1, 0], [], []>} : vector<16x16xf32>, vector<16x16xf32>, vector<16x16xf32> -> vector<16x16xf32>
    "tpu.trace_stop"() : () -> ()
    %219 = arith.addf %218, %3 : vector<16x16xf32>
    %cst_103 = arith.constant dense<0xFF800000> : vector<16xf32>
    %220 = vector.multi_reduction <maximumf>, %219, %cst_103 [1] : vector<16x16xf32> to vector<16xf32>
    %221 = vector.shape_cast %220 : vector<16xf32> to vector<16x1xf32>
    %222 = vector.broadcast %221 : vector<16x1xf32> to vector<16x16xf32>
    %223 = arith.subf %219, %222 : vector<16x16xf32>
    %224 = math.exp %223 : vector<16x16xf32>
    %cst_104 = arith.constant dense<0.000000e+00> : vector<16xf32>
    %225 = vector.multi_reduction <add>, %224, %cst_104 [1] : vector<16x16xf32> to vector<16xf32>
    %226 = vector.shape_cast %225 : vector<16xf32> to vector<16x1xf32>
    %227 = tpu.reciprocal %226 {approx = true} : vector<16x1xf32> -> vector<16x1xf32>
    %228 = vector.broadcast %227 : vector<16x1xf32> to vector<16x16xf32>
    %229 = arith.mulf %224, %228 : vector<16x16xf32>
    %cst_105 = arith.constant dense<0.000000e+00> : vector<16x16xf32>
    %230 = tpu.matmul %229, %217, %cst_105 {dimension_numbers = #tpu.dot_dimension_numbers<[1], [0], [0], [1], [0, 0, 1, 1], [], []>} : vector<16x16xf32>, vector<16x16xf32>, vector<16x16xf32> -> vector<16x16xf32>
    %c0_106 = arith.constant 0 : index
    %c48_107 = arith.constant 48 : index
    %231 = vector.load %arg19[%c0_106, %c48_107] : memref<16x64xf32, #tpu.memory_space<vmem>>, vector<16x16xf32>
    tpu.vector_store %arg19[%c0_106, %c48_107], %230 {strides = array<i32>} : memref<16x64xf32, #tpu.memory_space<vmem>>, vector<16x16xf32>,
    %c0_108 = arith.constant 0 : index
    %c0_109 = arith.constant 0 : index
    %232 = vector.load %arg19[%c0_108, %c0_109] : memref<16x64xf32, #tpu.memory_space<vmem>>, vector<16x64xf32>
    %c1_110 = arith.constant 1 : index
    %c0_111 = arith.constant 0 : index
    %c0_112 = arith.constant 0 : index
    %233 = vector.load %arg6[%c1_110, %c0_111, %c0_112] : memref<2x64x64xf32, #tpu.memory_space<vmem>>, vector<1x64x64xf32>
    %234 = vector.shape_cast %233 : vector<1x64x64xf32> to vector<64x64xf32>
    %cst_113 = arith.constant dense<0.000000e+00> : vector<16x64xf32>
    %235 = tpu.matmul %232, %234, %cst_113 {dimension_numbers = #tpu.dot_dimension_numbers<[1], [0], [0], [1], [0, 0, 1, 1], [], []>} : vector<16x64xf32>, vector<64x64xf32>, vector<16x64xf32> -> vector<16x64xf32>
    %c1_114 = arith.constant 1 : index
    %c0_115 = arith.constant 0 : index
    %c0_116 = arith.constant 0 : index
    %236 = vector.load %arg7[%c1_114, %c0_115, %c0_116] : memref<2x1x64xf32, #tpu.memory_space<vmem>>, vector<1x1x64xf32>
    %237 = vector.shape_cast %236 : vector<1x1x64xf32> to vector<1x64xf32>
    %238 = vector.broadcast %237 : vector<1x64xf32> to vector<16x64xf32>
    %239 = arith.addf %235, %238 : vector<16x64xf32>
    %240 = arith.addf %156, %239 : vector<16x64xf32>
    %c1_117 = arith.constant 1 : index
    %c0_118 = arith.constant 0 : index
    %c0_119 = arith.constant 0 : index
    %241 = vector.load %arg8[%c1_117, %c0_118, %c0_119] : memref<2x1x64xf32, #tpu.memory_space<vmem>>, vector<1x1x64xf32>
    %242 = vector.shape_cast %241 : vector<1x1x64xf32> to vector<1x64xf32>
    %c1_120 = arith.constant 1 : index
    %c0_121 = arith.constant 0 : index
    %c0_122 = arith.constant 0 : index
    %243 = vector.load %arg9[%c1_120, %c0_121, %c0_122] : memref<2x1x64xf32, #tpu.memory_space<vmem>>, vector<1x1x64xf32>
    %244 = vector.shape_cast %243 : vector<1x1x64xf32> to vector<1x64xf32>
    %cst_123 = arith.constant dense<0.000000e+00> : vector<16xf32>
    %245 = vector.multi_reduction <add>, %240, %cst_123 [1] : vector<16x64xf32> to vector<16xf32>
    %246 = vector.shape_cast %245 : vector<16xf32> to vector<16x1xf32>
    %247 = arith.mulf %240, %240 : vector<16x64xf32>
    %cst_124 = arith.constant dense<0.000000e+00> : vector<16xf32>
    %248 = vector.multi_reduction <add>, %247, %cst_124 [1] : vector<16x64xf32> to vector<16xf32>
    %249 = vector.shape_cast %248 : vector<16xf32> to vector<16x1xf32>
    %cst_125 = arith.constant 1.562500e-02 : f32
    %250 = vector.broadcast %cst_125 : f32 to vector<16x1xf32>
    %251 = arith.mulf %246, %250 : vector<16x1xf32>
    %cst_126 = arith.constant 1.562500e-02 : f32
    %252 = vector.broadcast %cst_126 : f32 to vector<16x1xf32>
    %253 = arith.mulf %249, %252 : vector<16x1xf32>
    %254 = arith.mulf %251, %251 : vector<16x1xf32>
    %255 = arith.subf %253, %254 : vector<16x1xf32>
    %256 = vector.broadcast %251 : vector<16x1xf32> to vector<16x64xf32>
    %257 = arith.subf %240, %256 : vector<16x64xf32>
    %cst_127 = arith.constant 9.99999974E-6 : f32
    %258 = vector.broadcast %cst_127 : f32 to vector<16x1xf32>
    %259 = arith.addf %255, %258 : vector<16x1xf32>
    %260 = math.rsqrt %259 : vector<16x1xf32>
    %261 = vector.broadcast %260 : vector<16x1xf32> to vector<16x64xf32>
    %262 = vector.broadcast %242 : vector<1x64xf32> to vector<16x64xf32>
    %263 = arith.mulf %261, %262 : vector<16x64xf32>
    %264 = arith.mulf %257, %263 : vector<16x64xf32>
    %265 = vector.broadcast %244 : vector<1x64xf32> to vector<16x64xf32>
    %266 = arith.addf %264, %265 : vector<16x64xf32>
    %c1_128 = arith.constant 1 : index
    %c0_129 = arith.constant 0 : index
    %c0_130 = arith.constant 0 : index
    %267 = vector.load %arg10[%c1_128, %c0_129, %c0_130] : memref<2x64x64xf32, #tpu.memory_space<vmem>>, vector<1x64x64xf32>
    %268 = vector.shape_cast %267 : vector<1x64x64xf32> to vector<64x64xf32>
    %cst_131 = arith.constant dense<0.000000e+00> : vector<16x64xf32>
    %269 = tpu.matmul %266, %268, %cst_131 {dimension_numbers = #tpu.dot_dimension_numbers<[1], [0], [0], [1], [0, 0, 1, 1], [], []>} : vector<16x64xf32>, vector<64x64xf32>, vector<16x64xf32> -> vector<16x64xf32>
    %c1_132 = arith.constant 1 : index
    %c0_133 = arith.constant 0 : index
    %c0_134 = arith.constant 0 : index
    %270 = vector.load %arg11[%c1_132, %c0_133, %c0_134] : memref<2x1x64xf32, #tpu.memory_space<vmem>>, vector<1x1x64xf32>
    %271 = vector.shape_cast %270 : vector<1x1x64xf32> to vector<1x64xf32>
    %272 = vector.broadcast %271 : vector<1x64xf32> to vector<16x64xf32>
    %273 = arith.addf %269, %272 : vector<16x64xf32>
    %cst_135 = arith.constant 0.000000e+00 : f32
    %274 = vector.broadcast %cst_135 : f32 to vector<16x64xf32>
    %275 = arith.maximumf %273, %274 : vector<16x64xf32>
    %c1_136 = arith.constant 1 : index
    %c0_137 = arith.constant 0 : index
    %c0_138 = arith.constant 0 : index
    %276 = vector.load %arg12[%c1_136, %c0_137, %c0_138] : memref<2x64x64xf32, #tpu.memory_space<vmem>>, vector<1x64x64xf32>
    %277 = vector.shape_cast %276 : vector<1x64x64xf32> to vector<64x64xf32>
    %cst_139 = arith.constant dense<0.000000e+00> : vector<16x64xf32>
    %278 = tpu.matmul %275, %277, %cst_139 {dimension_numbers = #tpu.dot_dimension_numbers<[1], [0], [0], [1], [0, 0, 1, 1], [], []>} : vector<16x64xf32>, vector<64x64xf32>, vector<16x64xf32> -> vector<16x64xf32>
    %c1_140 = arith.constant 1 : index
    %c0_141 = arith.constant 0 : index
    %c0_142 = arith.constant 0 : index
    %279 = vector.load %arg13[%c1_140, %c0_141, %c0_142] : memref<2x1x64xf32, #tpu.memory_space<vmem>>, vector<1x1x64xf32>
    %280 = vector.shape_cast %279 : vector<1x1x64xf32> to vector<1x64xf32>
    %281 = vector.broadcast %280 : vector<1x64xf32> to vector<16x64xf32>
    %282 = arith.addf %278, %281 : vector<16x64xf32>
    %283 = arith.addf %266, %282 : vector<16x64xf32>
    %c1_143 = arith.constant 1 : index
    %c0_144 = arith.constant 0 : index
    %c0_145 = arith.constant 0 : index
    %284 = vector.load %arg14[%c1_143, %c0_144, %c0_145] : memref<2x1x64xf32, #tpu.memory_space<vmem>>, vector<1x1x64xf32>
    %285 = vector.shape_cast %284 : vector<1x1x64xf32> to vector<1x64xf32>
    %c1_146 = arith.constant 1 : index
    %c0_147 = arith.constant 0 : index
    %c0_148 = arith.constant 0 : index
    %286 = vector.load %arg15[%c1_146, %c0_147, %c0_148] : memref<2x1x64xf32, #tpu.memory_space<vmem>>, vector<1x1x64xf32>
    %287 = vector.shape_cast %286 : vector<1x1x64xf32> to vector<1x64xf32>
    %cst_149 = arith.constant dense<0.000000e+00> : vector<16xf32>
    %288 = vector.multi_reduction <add>, %283, %cst_149 [1] : vector<16x64xf32> to vector<16xf32>
    %289 = vector.shape_cast %288 : vector<16xf32> to vector<16x1xf32>
    %290 = arith.mulf %283, %283 : vector<16x64xf32>
    %cst_150 = arith.constant dense<0.000000e+00> : vector<16xf32>
    %291 = vector.multi_reduction <add>, %290, %cst_150 [1] : vector<16x64xf32> to vector<16xf32>
    %292 = vector.shape_cast %291 : vector<16xf32> to vector<16x1xf32>
    %cst_151 = arith.constant 1.562500e-02 : f32
    %293 = vector.broadcast %cst_151 : f32 to vector<16x1xf32>
    %294 = arith.mulf %289, %293 : vector<16x1xf32>
    %cst_152 = arith.constant 1.562500e-02 : f32
    %295 = vector.broadcast %cst_152 : f32 to vector<16x1xf32>
    %296 = arith.mulf %292, %295 : vector<16x1xf32>
    %297 = arith.mulf %294, %294 : vector<16x1xf32>
    %298 = arith.subf %296, %297 : vector<16x1xf32>
    %299 = vector.broadcast %294 : vector<16x1xf32> to vector<16x64xf32>
    %300 = arith.subf %283, %299 : vector<16x64xf32>
    %cst_153 = arith.constant 9.99999974E-6 : f32
    %301 = vector.broadcast %cst_153 : f32 to vector<16x1xf32>
    %302 = arith.addf %298, %301 : vector<16x1xf32>
    %303 = math.rsqrt %302 : vector<16x1xf32>
    %304 = vector.broadcast %303 : vector<16x1xf32> to vector<16x64xf32>
    %305 = vector.broadcast %285 : vector<1x64xf32> to vector<16x64xf32>
    %306 = arith.mulf %304, %305 : vector<16x64xf32>
    %307 = arith.mulf %300, %306 : vector<16x64xf32>
    %308 = vector.broadcast %287 : vector<1x64xf32> to vector<16x64xf32>
    %309 = arith.addf %307, %308 : vector<16x64xf32>
    %c0_154 = arith.constant 0 : index
    %c0_155 = arith.constant 0 : index
    %310 = vector.load %arg16[%c0_154, %c0_155] : memref<64x128xf32, #tpu.memory_space<vmem>>, vector<64x128xf32>
    %cst_156 = arith.constant dense<0.000000e+00> : vector<16x128xf32>
    %311 = tpu.matmul %309, %310, %cst_156 {dimension_numbers = #tpu.dot_dimension_numbers<[1], [0], [0], [1], [0, 0, 1, 1], [], []>} : vector<16x64xf32>, vector<64x128xf32>, vector<16x128xf32> -> vector<16x128xf32>
    %c0_157 = arith.constant 0 : index
    %c0_158 = arith.constant 0 : index
    %312 = vector.load %arg17[%c0_157, %c0_158] : memref<1x128xf32, #tpu.memory_space<vmem>>, vector<1x128xf32>
    %313 = vector.broadcast %312 : vector<1x128xf32> to vector<16x128xf32>
    %314 = arith.addf %311, %313 : vector<16x128xf32>
    %c0_159 = arith.constant 0 : index
    %c0_160 = arith.constant 0 : index
    %c0_161 = arith.constant 0 : index
    %315 = vector.load %arg3[%c0_159, %c0_160, %c0_161] : memref<1x16x128xf32, #tpu.memory_space<vmem>>, vector<1x16x128xf32>
    %316 = vector.shape_cast %315 : vector<1x16x128xf32> to vector<16x128xf32>
    %cst_162 = arith.constant 0.000000e+00 : f32
    %317 = vector.broadcast %cst_162 : f32 to vector<16x128xf32>
    %318 = arith.cmpf oeq, %316, %317 : vector<16x128xf32>
    %cst_163 = arith.constant -1.000000e+04 : f32
    %319 = vector.broadcast %cst_163 : f32 to vector<16x128xf32>
    %320 = arith.select %318, %319, %314 : vector<16x128xi1>, vector<16x128xf32>
    %c0_164 = arith.constant 0 : index
    %c0_165 = arith.constant 0 : index
    %c0_166 = arith.constant 0 : index
    %321 = vector.load %arg18[%c0_164, %c0_165, %c0_166] : memref<1x16x128xf32, #tpu.memory_space<vmem>>, vector<1x16x128xf32>
    %322 = vector.shape_cast %321 : vector<1x16x128xf32> to vector<16x128xf32>
    %323 = vector.shape_cast %320 : vector<16x128xf32> to vector<1x16x128xf32>
    tpu.vector_store %arg18[%c0_164, %c0_165, %c0_166], %323 {strides = array<i32>} : memref<1x16x128xf32, #tpu.memory_space<vmem>>, vector<1x16x128xf32>,
    return
  }
  func.func @transform_0(%arg0: i32) -> (i32, i32, i32) {
    %c0_i32 = arith.constant 0 : i32
    %c0_i32_0 = arith.constant 0 : i32
    %c0_i32_1 = arith.constant 0 : i32
    return %arg0, %c0_i32, %c0_i32_0 : i32, i32, i32
  }
  func.func @transform_1(%arg0: i32) -> (i32, i32, i32) {
    %c0_i32 = arith.constant 0 : i32
    %c0_i32_0 = arith.constant 0 : i32
    %c0_i32_1 = arith.constant 0 : i32
    return %arg0, %c0_i32, %c0_i32_0 : i32, i32, i32
  }
  func.func @transform_2(%arg0: i32) -> (i32, i32, i32) {
    %c0_i32 = arith.constant 0 : i32
    %c0_i32_0 = arith.constant 0 : i32
    %c0_i32_1 = arith.constant 0 : i32
    return %arg0, %c0_i32, %c0_i32_0 : i32, i32, i32
  }
  func.func @transform_3(%arg0: i32) -> (i32, i32, i32) {
    %c0_i32 = arith.constant 0 : i32
    %c0_i32_0 = arith.constant 0 : i32
    %c0_i32_1 = arith.constant 0 : i32
    %c0_i32_2 = arith.constant 0 : i32
    return %c0_i32, %c0_i32_0, %c0_i32_1 : i32, i32, i32
  }
  func.func @transform_4(%arg0: i32) -> (i32, i32, i32) {
    %c0_i32 = arith.constant 0 : i32
    %c0_i32_0 = arith.constant 0 : i32
    %c0_i32_1 = arith.constant 0 : i32
    %c0_i32_2 = arith.constant 0 : i32
    return %c0_i32, %c0_i32_0, %c0_i32_1 : i32, i32, i32
  }
  func.func @transform_5(%arg0: i32) -> (i32, i32, i32) {
    %c0_i32 = arith.constant 0 : i32
    %c0_i32_0 = arith.constant 0 : i32
    %c0_i32_1 = arith.constant 0 : i32
    %c0_i32_2 = arith.constant 0 : i32
    return %c0_i32, %c0_i32_0, %c0_i32_1 : i32, i32, i32
  }
  func.func @transform_6(%arg0: i32) -> (i32, i32, i32) {
    %c0_i32 = arith.constant 0 : i32
    %c0_i32_0 = arith.constant 0 : i32
    %c0_i32_1 = arith.constant 0 : i32
    %c0_i32_2 = arith.constant 0 : i32
    return %c0_i32, %c0_i32_0, %c0_i32_1 : i32, i32, i32
  }
  func.func @transform_7(%arg0: i32) -> (i32, i32, i32) {
    %c0_i32 = arith.constant 0 : i32
    %c0_i32_0 = arith.constant 0 : i32
    %c0_i32_1 = arith.constant 0 : i32
    %c0_i32_2 = arith.constant 0 : i32
    return %c0_i32, %c0_i32_0, %c0_i32_1 : i32, i32, i32
  }
  func.func @transform_8(%arg0: i32) -> (i32, i32, i32) {
    %c0_i32 = arith.constant 0 : i32
    %c0_i32_0 = arith.constant 0 : i32
    %c0_i32_1 = arith.constant 0 : i32
    %c0_i32_2 = arith.constant 0 : i32
    return %c0_i32, %c0_i32_0, %c0_i32_1 : i32, i32, i32
  }
  func.func @transform_9(%arg0: i32) -> (i32, i32, i32) {
    %c0_i32 = arith.constant 0 : i32
    %c0_i32_0 = arith.constant 0 : i32
    %c0_i32_1 = arith.constant 0 : i32
    %c0_i32_2 = arith.constant 0 : i32
    return %c0_i32, %c0_i32_0, %c0_i32_1 : i32, i32, i32
  }
  func.func @transform_10(%arg0: i32) -> (i32, i32, i32) {
    %c0_i32 = arith.constant 0 : i32
    %c0_i32_0 = arith.constant 0 : i32
    %c0_i32_1 = arith.constant 0 : i32
    %c0_i32_2 = arith.constant 0 : i32
    return %c0_i32, %c0_i32_0, %c0_i32_1 : i32, i32, i32
  }
  func.func @transform_11(%arg0: i32) -> (i32, i32, i32) {
    %c0_i32 = arith.constant 0 : i32
    %c0_i32_0 = arith.constant 0 : i32
    %c0_i32_1 = arith.constant 0 : i32
    %c0_i32_2 = arith.constant 0 : i32
    return %c0_i32, %c0_i32_0, %c0_i32_1 : i32, i32, i32
  }
  func.func @transform_12(%arg0: i32) -> (i32, i32, i32) {
    %c0_i32 = arith.constant 0 : i32
    %c0_i32_0 = arith.constant 0 : i32
    %c0_i32_1 = arith.constant 0 : i32
    %c0_i32_2 = arith.constant 0 : i32
    return %c0_i32, %c0_i32_0, %c0_i32_1 : i32, i32, i32
  }
  func.func @transform_13(%arg0: i32) -> (i32, i32, i32) {
    %c0_i32 = arith.constant 0 : i32
    %c0_i32_0 = arith.constant 0 : i32
    %c0_i32_1 = arith.constant 0 : i32
    %c0_i32_2 = arith.constant 0 : i32
    return %c0_i32, %c0_i32_0, %c0_i32_1 : i32, i32, i32
  }
  func.func @transform_14(%arg0: i32) -> (i32, i32, i32) {
    %c0_i32 = arith.constant 0 : i32
    %c0_i32_0 = arith.constant 0 : i32
    %c0_i32_1 = arith.constant 0 : i32
    %c0_i32_2 = arith.constant 0 : i32
    return %c0_i32, %c0_i32_0, %c0_i32_1 : i32, i32, i32
  }
  func.func @transform_15(%arg0: i32) -> (i32, i32) {
    %c0_i32 = arith.constant 0 : i32
    %c0_i32_0 = arith.constant 0 : i32
    %c0_i32_1 = arith.constant 0 : i32
    return %c0_i32, %c0_i32_0 : i32, i32
  }
  func.func @transform_16(%arg0: i32) -> (i32, i32) {
    %c0_i32 = arith.constant 0 : i32
    %c0_i32_0 = arith.constant 0 : i32
    %c0_i32_1 = arith.constant 0 : i32
    return %c0_i32, %c0_i32_0 : i32, i32
  }
  func.func @transform_17(%arg0: i32) -> (i32, i32, i32) {
    %c0_i32 = arith.constant 0 : i32
    %c0_i32_0 = arith.constant 0 : i32
    %c0_i32_1 = arith.constant 0 : i32
    return %arg0, %c0_i32, %c0_i32_0 : i32, i32, i32
  }
}

</mosaic_0001>

<llo_original>
// kernel: ner_transformer_forward.1
$region0: #{ner_transformer_forward.1}
  #allocation0 [shape = 'u32[]', space=smem, size = 0x4, offset = 0x4, fixed_abs, tag = 'smem constant byte address 0x4 - core index']
  #allocation1 [shape = 'u32[144,128]{1,0:T(1,128)}', space=vmem, size = 0x12000, scoped, tag = 'internal scratch']
  #allocation2 [shape = 'f32[16,64]{1,0:T(8,128)}', space=vmem, size = 0x2000, scoped, tag = 'scratch operand']
  %s0 = inlined_call_operand.vmem [shape: f32[1,16,64], index: 0, kind: input, shape index: {}]
  %s1 = inlined_call_operand.vmem [shape: f32[1,16,16], index: 1, kind: input, shape index: {}]
  %s2 = inlined_call_operand.vmem [shape: f32[1,16,128], index: 2, kind: input, shape index: {}]
  %s3 = inlined_call_operand.vmem [shape: f32[2,64,192], index: 3, kind: input, shape index: {}]
  %s4 = inlined_call_operand.vmem [shape: f32[2,1,192], index: 4, kind: input, shape index: {}]
  %s5 = inlined_call_operand.vmem [shape: f32[2,64,64], index: 5, kind: input, shape index: {}]
  %s6 = inlined_call_operand.vmem [shape: f32[2,1,64], index: 6, kind: input, shape index: {}]
  %s7 = inlined_call_operand.vmem [shape: f32[2,1,64], index: 7, kind: input, shape index: {}]
  %s8 = inlined_call_operand.vmem [shape: f32[2,1,64], index: 8, kind: input, shape index: {}]
  %s9 = inlined_call_operand.vmem [shape: f32[2,64,64], index: 9, kind: input, shape index: {}]
  %s10 = inlined_call_operand.vmem [shape: f32[2,1,64], index: 10, kind: input, shape index: {}]
  %s11 = inlined_call_operand.vmem [shape: f32[2,64,64], index: 11, kind: input, shape index: {}]
  %s12 = inlined_call_operand.vmem [shape: f32[2,1,64], index: 12, kind: input, shape index: {}]
  %s13 = inlined_call_operand.vmem [shape: f32[2,1,64], index: 13, kind: input, shape index: {}]
  %s14 = inlined_call_operand.vmem [shape: f32[2,1,64], index: 14, kind: input, shape index: {}]
  %s15 = inlined_call_operand.hbm [shape: f32[64,128], index: 15, kind: input, shape index: {}]
  %s16 = inlined_call_operand.vmem [shape: f32[1,128], index: 16, kind: input, shape index: {}]
  %s17 = inlined_call_operand.vmem [shape: f32[1,16,128], index: 17, kind: output, shape index: {}]
  %s18 = sld [smem:[#allocation0]]
  $region82: #{ner_transformer_forward.1} parent=0
    _
  %s20 = ssub.s32 1, %s18
  %s21 = scalar_select 0, %s20, %s18
  $region1: #{ner_transformer_forward.1} parent=0
    #allocation3 [shape = 'u8[32768]{0}', space=vmem, size = 0x8000, scoped, tag = 'input window, operand 15, single buffered']
    #allocation4 [shape = 's32[1]{0}', space=sflag, size = 0x4, scoped, tag = 'scoped memory for ner_transformer_forward.1']
    %22 = vsyncpa [#allocation4], 0
    // Predicated region
    $region2: #{ner_transformer_forward.1} parent=1 // pred_check
      _
    $region3: #{ner_transformer_forward.1} parent=1 // pred_check_branch
      %24 = sbr.rel (0) target = $region5
    $region4: #{ner_transformer_forward.1} parent=1 // pred_region
      _
    $region5: #{ner_transformer_forward.1} parent=1 // pred_fallthru
      _
    // Predicated region
    $region6: #{ner_transformer_forward.1} parent=1 // pred_check
      _
    $region7: #{ner_transformer_forward.1} parent=1 // pred_check_branch
      %26 = sbr.rel (0) target = $region9
    $region8: #{ner_transformer_forward.1} parent=1 // pred_region
      _
    $region9: #{ner_transformer_forward.1} parent=1 // pred_fallthru
      _
    // Predicated region
    $region10: #{ner_transformer_forward.1} parent=1 // pred_check
      _
    $region11: #{ner_transformer_forward.1} parent=1 // pred_check_branch
      %28 = sbr.rel (0) target = $region13
    $region12: #{ner_transformer_forward.1} parent=1 // pred_region
      _
    $region13: #{ner_transformer_forward.1} parent=1 // pred_fallthru
      _
    // Predicated region
    $region14: #{ner_transformer_forward.1} parent=1 // pred_check
      _
    $region15: #{ner_transformer_forward.1} parent=1 // pred_check_branch
      %30 = sbr.rel (0) target = $region17
    $region16: #{ner_transformer_forward.1} parent=1 // pred_region
      _
    $region17: #{ner_transformer_forward.1} parent=1 // pred_fallthru
      _
    // Predicated region
    $region18: #{ner_transformer_forward.1} parent=1 // pred_check
      _
    $region19: #{ner_transformer_forward.1} parent=1 // pred_check_branch
      %32 = sbr.rel (0) target = $region21
    $region20: #{ner_transformer_forward.1} parent=1 // pred_region
      _
    $region21: #{ner_transformer_forward.1} parent=1 // pred_fallthru
      _
    // Predicated region
    $region22: #{ner_transformer_forward.1} parent=1 // pred_check
      _
    $region23: #{ner_transformer_forward.1} parent=1 // pred_check_branch
      %34 = sbr.rel (0) target = $region25
    $region24: #{ner_transformer_forward.1} parent=1 // pred_region
      _
    $region25: #{ner_transformer_forward.1} parent=1 // pred_fallthru
      _
    // Predicated region
    $region26: #{ner_transformer_forward.1} parent=1 // pred_check
      _
    $region27: #{ner_transformer_forward.1} parent=1 // pred_check_branch
      %36 = sbr.rel (0) target = $region29
    $region28: #{ner_transformer_forward.1} parent=1 // pred_region
      _
    $region29: #{ner_transformer_forward.1} parent=1 // pred_fallthru
      _
    // Predicated region
    $region30: #{ner_transformer_forward.1} parent=1 // pred_check
      _
    $region31: #{ner_transformer_forward.1} parent=1 // pred_check_branch
      %38 = sbr.rel (0) target = $region33
    $region32: #{ner_transformer_forward.1} parent=1 // pred_region
      _
    $region33: #{ner_transformer_forward.1} parent=1 // pred_fallthru
      _
    // Predicated region
    $region34: #{ner_transformer_forward.1} parent=1 // pred_check
      _
    $region35: #{ner_transformer_forward.1} parent=1 // pred_check_branch
      %40 = sbr.rel (0) target = $region37
    $region36: #{ner_transformer_forward.1} parent=1 // pred_region
      _
    $region37: #{ner_transformer_forward.1} parent=1 // pred_fallthru
      _
    // Predicated region
    $region38: #{ner_transformer_forward.1} parent=1 // pred_check
      _
    $region39: #{ner_transformer_forward.1} parent=1 // pred_check_branch
      %42 = sbr.rel (0) target = $region41
    $region40: #{ner_transformer_forward.1} parent=1 // pred_region
      _
    $region41: #{ner_transformer_forward.1} parent=1 // pred_fallthru
      _
    // Predicated region
    $region42: #{ner_transformer_forward.1} parent=1 // pred_check
      _
    $region43: #{ner_transformer_forward.1} parent=1 // pred_check_branch
      %44 = sbr.rel (0) target = $region45
    $region44: #{ner_transformer_forward.1} parent=1 // pred_region
      _
    $region45: #{ner_transformer_forward.1} parent=1 // pred_fallthru
      _
    // Predicated region
    $region46: #{ner_transformer_forward.1} parent=1 // pred_check
      _
    $region47: #{ner_transformer_forward.1} parent=1 // pred_check_branch
      %46 = sbr.rel (0) target = $region49
    $region48: #{ner_transformer_forward.1} parent=1 // pred_region
      _
    $region49: #{ner_transformer_forward.1} parent=1 // pred_fallthru
      _
    // Predicated region
    $region50: #{ner_transformer_forward.1} parent=1 // pred_check
      _
    $region51: #{ner_transformer_forward.1} parent=1 // pred_check_branch
      %48 = sbr.rel (0) target = $region53
    $region52: #{ner_transformer_forward.1} parent=1 // pred_region
      _
    $region53: #{ner_transformer_forward.1} parent=1 // pred_fallthru
      _
    // Predicated region
    $region54: #{ner_transformer_forward.1} parent=1 // pred_check
      _
    $region55: #{ner_transformer_forward.1} parent=1 // pred_check_branch
      %50 = sbr.rel (0) target = $region57
    $region56: #{ner_transformer_forward.1} parent=1 // pred_region
      _
    $region57: #{ner_transformer_forward.1} parent=1 // pred_fallthru
      _
    // Predicated region
    $region58: #{ner_transformer_forward.1} parent=1 // pred_check
      _
    $region59: #{ner_transformer_forward.1} parent=1 // pred_check_branch
      %52 = sbr.rel (0) target = $region61
    $region60: #{ner_transformer_forward.1} parent=1 // pred_region
      _
    $region61: #{ner_transformer_forward.1} parent=1 // pred_fallthru
      _
    // Predicated region
    $region62: #{ner_transformer_forward.1} parent=1 // pred_check
      _
    $region63: #{ner_transformer_forward.1} parent=1 // pred_check_branch
      %54 = sbr.rel (0) target = $region65
    $region64: #{ner_transformer_forward.1} parent=1 // pred_region
      %s56 = ssub.s32 1024, 1024
      %57 = vsyncadd [#allocation4], %s56
      %s58 = sshll.u32 [#allocation3], 4
      %s59 = int_to_ptr.vmem [resolvable:$true] %s58
      %64 = dma.hbm_to_vmem [thread:$0]  %s15, 1024, %s59, [#allocation4], 128, 128, 8
    $region65: #{ner_transformer_forward.1} parent=1 // pred_fallthru
      _
    // Predicated region
    $region66: #{ner_transformer_forward.1} parent=1 // pred_check
      _
    $region67: #{ner_transformer_forward.1} parent=1 // pred_check_branch
      %66 = sbr.rel (0) target = $region69
    $region68: #{ner_transformer_forward.1} parent=1 // pred_region
      _
    $region69: #{ner_transformer_forward.1} parent=1 // pred_fallthru
      _
    // Predicated region
    $region70: #{ner_transformer_forward.1} parent=1 // pred_check
      _
    $region71: #{ner_transformer_forward.1} parent=1 // pred_check_branch
      %68 = sbr.rel (0) target = $region73
    $region72: #{ner_transformer_forward.1} parent=1 // pred_region
      %69 = dma.done [#allocation4], 1024
    $region73: #{ner_transformer_forward.1} parent=1 // pred_fallthru
      _
    %v70 = vld [vmem:[%s0] sm:$0xff]
    %v71 = vld [vmem:[%s0 + $0x8] sm:$0xff]
    %v72 = vld [vmem:[%s1] sm:$0xff]
    %v73 = vld [vmem:[%s1 + $0x8] sm:$0xff]
    %v74 = vld [vmem:[%s3] sm:$0xff]
    %v75 = vld [vmem:[%s3 + $0x8] sm:$0xff]
    %v76 = vld [vmem:[%s3 + $0x10] sm:$0xff]
    %v77 = vld [vmem:[%s3 + $0x18] sm:$0xff]
    %v78 = vld [vmem:[%s3 + $0x20] sm:$0xff]
    %v79 = vld [vmem:[%s3 + $0x28] sm:$0xff]
    %v80 = vld [vmem:[%s3 + $0x30] sm:$0xff]
    %v81 = vld [vmem:[%s3 + $0x38] sm:$0xff]
    %v82 = vld [vmem:[%s3 + $0x40] sm:$0xff]
    %v83 = vld [vmem:[%s3 + $0x48] sm:$0xff]
    %v84 = vld [vmem:[%s3 + $0x50] sm:$0xff]
    %v85 = vld [vmem:[%s3 + $0x58] sm:$0xff]
    %v86 = vld [vmem:[%s3 + $0x60] sm:$0xff]
    %v87 = vld [vmem:[%s3 + $0x68] sm:$0xff]
    %v88 = vld [vmem:[%s3 + $0x70] sm:$0xff]
    %v89 = vld [vmem:[%s3 + $0x78] sm:$0xff]
    %v90 = vld [vmem:[%s4] sm:$0x3]
    %v92 = vlaneseq
    %v93 = vshrl.u32 %v92, 7
    %v94 = vsub.s32 0, %v93
    %v95 = vrot.slane %v90, %v94
    %v96 = vlaneseq
    %v97 = vshrl.u32 %v96, 7
    %v98 = vsub.s32 1, %v97
    %v99 = vrot.slane %v90, %v98
    %vm102 = vcmask 523264
    %v104 = vsel %vm102, %v70, 0
    %v107 = vsel %vm102, %v71, 0
    %109 = vmatprep.subr.mxu0 0.0
    %110 = vmatpush1.msra.mxu0 0.0
    %111 = vmatprep.subr.mxu0 0.0
    %112 = vmatpush1.msra.mxu0 0.0
    %113 = vmatprep.subr.mxu0 0.0
    %114 = vmatpush1.msra.mxu0 0.0
    %115 = vmatprep.subr.mxu0 0.0
    %116 = vmatpush1.msra.mxu0 0.0
    %117 = vmatprep.subr.mxu0 0.0
    %118 = vmatpush1.msra.mxu0 0.0
    %119 = vmatprep.subr.mxu0 0.0
    %120 = vmatpush1.msra.mxu0 0.0
    %121 = vmatprep.subr.mxu0 0.0
    %122 = vmatpush1.msra.mxu0 0.0
    %123 = vmatprep.subr.mxu0 0.0
    %124 = vmatpush1.msra.mxu0 0.0
    %125 = vmatprep.subr.mxu0 %v89
    %126 = vmatpush1.msra.mxu0 %v88
    %127 = vmatprep.subr.mxu0 %v87
    %128 = vmatpush1.msra.mxu0 %v86
    %129 = vmatprep.subr.mxu0 %v85
    %130 = vmatpush1.msra.mxu0 %v84
    %131 = vmatprep.subr.mxu0 %v83
    %132 = vmatpush1.msra.mxu0 %v82
    %133 = vmatprep.subr.mxu0 %v81
    %134 = vmatpush1.msra.mxu0 %v80
    %135 = vmatprep.subr.mxu0 %v79
    %136 = vmatpush1.msra.mxu0 %v78
    %137 = vmatprep.subr.mxu0 %v77
    %138 = vmatpush1.msra.mxu0 %v76
    %139 = vmatprep.subr.mxu0 %v75
    %140 = vmatpush1.msra.mxu0 %v74
    %141 = vmatprep.subr.mxu0 0.0
    %142 = vmatpush2.msra.mxu0 0.0
    %143 = vmatprep.subr.mxu0 0.0
    %144 = vmatpush2.msra.mxu0 0.0
    %145 = vmatprep.subr.mxu0 0.0
    %146 = vmatpush2.msra.mxu0 0.0
    %147 = vmatprep.subr.mxu0 0.0
    %148 = vmatpush2.msra.mxu0 0.0
    %149 = vmatprep.subr.mxu0 0.0
    %150 = vmatpush2.msra.mxu0 0.0
    %151 = vmatprep.subr.mxu0 0.0
    %152 = vmatpush2.msra.mxu0 0.0
    %153 = vmatprep.subr.mxu0 0.0
    %154 = vmatpush2.msra.mxu0 0.0
    %155 = vmatprep.subr.mxu0 0.0
    %156 = vmatpush2.msra.mxu0 0.0
    %157 = vmatprep.subr.mxu0 0.0
    %158 = vmatpush2.msra.mxu0 0.0
    %159 = vmatprep.subr.mxu0 0.0
    %160 = vmatpush2.msra.mxu0 0.0
    %161 = vmatprep.subr.mxu0 0.0
    %162 = vmatpush2.msra.mxu0 0.0
    %163 = vmatprep.subr.mxu0 0.0
    %164 = vmatpush2.msra.mxu0 0.0
    %165 = vmatprep.subr.mxu0 0.0
    %166 = vmatpush2.msra.mxu0 0.0
    %167 = vmatprep.subr.mxu0 0.0
    %168 = vmatpush2.msra.mxu0 0.0
    %169 = vmatprep.subr.mxu0 0.0
    %170 = vmatpush2.msra.mxu0 0.0
    %171 = vmatprep.subr.mxu0 0.0
    %172 = vmatpush2.msra.mxu0 0.0
    %173 = vmatprep.mubr.f32.mxu0 0.0
    %174 = vmatmul.mubr.f32.gmra.mxu0 %v104
    %v175 = vpop.f32.mrf.mxu0
    %v176 = vadd.f32 %v95, %v175
    %v177 = vpop.f32.mrf.mxu0
    %v178 = vadd.f32 %v99, %v177
    %179 = vmatprep.mubr.f32.mxu0 0.0
    %180 = vmatmul.mubr.f32.gmra.mxu0 %v107
    %v181 = vpop.f32.mrf.mxu0
    %v182 = vadd.f32 %v95, %v181
    %v183 = vpop.f32.mrf.mxu0
    %v184 = vadd.f32 %v99, %v183
    %185 = vdwg.mxu0
    %188 = vrot.lane.b32.xlu0 %v176, 64
    %v189 = vpop.permute.xlu0 %188
    %190 = vrot.lane.b32.xlu0 %v182, 64
    %v191 = vpop.permute.xlu0 %190
    %vm192 = vcmask 130048
    %v193 = vsel %vm192, %v176, 0
    %v195 = vsel %vm192, %v182, 0
    %v197 = vsel %vm192, %v189, 0
    %v199 = vsel %vm192, %v191, 0
    %201 = vmatprep.subr.mxu0 0.0
    %202 = vmatpush1.xpose.msra.mxu0 0.0
    %203 = vmatprep.subr.mxu0 0.0
    %204 = vmatpush1.xpose.msra.mxu0 0.0
    %205 = vmatprep.subr.mxu0 0.0
    %206 = vmatpush1.xpose.msra.mxu0 0.0
    %207 = vmatprep.subr.mxu0 0.0
    %208 = vmatpush1.xpose.msra.mxu0 0.0
    %209 = vmatprep.subr.mxu0 0.0
    %210 = vmatpush1.xpose.msra.mxu0 0.0
    %211 = vmatprep.subr.mxu0 0.0
    %212 = vmatpush1.xpose.msra.mxu0 0.0
    %213 = vmatprep.subr.mxu0 0.0
    %214 = vmatpush1.xpose.msra.mxu0 0.0
    %215 = vmatprep.subr.mxu0 0.0
    %216 = vmatpush1.xpose.msra.mxu0 0.0
    %217 = vmatprep.subr.mxu0 0.0
    %218 = vmatpush1.xpose.msra.mxu0 0.0
    %219 = vmatprep.subr.mxu0 0.0
    %220 = vmatpush1.xpose.msra.mxu0 0.0
    %221 = vmatprep.subr.mxu0 0.0
    %222 = vmatpush1.xpose.msra.mxu0 0.0
    %223 = vmatprep.subr.mxu0 0.0
    %224 = vmatpush1.xpose.msra.mxu0 0.0
    %225 = vmatprep.subr.mxu0 0.0
    %226 = vmatpush1.xpose.msra.mxu0 0.0
    %227 = vmatprep.subr.mxu0 0.0
    %228 = vmatpush1.xpose.msra.mxu0 0.0
    %229 = vmatprep.subr.mxu0 0.0
    %230 = vmatpush1.xpose.msra.mxu0 %v199
    %231 = vmatprep.subr.mxu0 0.0
    %232 = vmatpush1.xpose.msra.mxu0 %v197
    %233 = vmatprep.subr.mxu0 0.0
    %234 = vmatpush2.xpose.msra.mxu0 0.0
    %235 = vmatprep.subr.mxu0 0.0
    %236 = vmatpush2.xpose.msra.mxu0 0.0
    %237 = vmatprep.subr.mxu0 0.0
    %238 = vmatpush2.xpose.msra.mxu0 0.0
    %239 = vmatprep.subr.mxu0 0.0
    %240 = vmatpush2.xpose.msra.mxu0 0.0
    %241 = vmatprep.subr.mxu0 0.0
    %242 = vmatpush2.xpose.msra.mxu0 0.0
    %243 = vmatprep.subr.mxu0 0.0
    %244 = vmatpush2.xpose.msra.mxu0 0.0
    %245 = vmatprep.subr.mxu0 0.0
    %246 = vmatpush2.xpose.msra.mxu0 0.0
    %247 = vmatprep.subr.mxu0 0.0
    %248 = vmatpush2.xpose.msra.mxu0 0.0
    %249 = vmatprep.subr.mxu0 0.0
    %250 = vmatpush2.xpose.msra.mxu0 0.0
    %251 = vmatprep.subr.mxu0 0.0
    %252 = vmatpush2.xpose.msra.mxu0 0.0
    %253 = vmatprep.subr.mxu0 0.0
    %254 = vmatpush2.xpose.msra.mxu0 0.0
    %255 = vmatprep.subr.mxu0 0.0
    %256 = vmatpush2.xpose.msra.mxu0 0.0
    %257 = vmatprep.subr.mxu0 0.0
    %258 = vmatpush2.xpose.msra.mxu0 0.0
    %259 = vmatprep.subr.mxu0 0.0
    %260 = vmatpush2.xpose.msra.mxu0 0.0
    %261 = vmatprep.subr.mxu0 0.0
    %262 = vmatpush2.xpose.msra.mxu0 0.0
    %263 = vmatprep.subr.mxu0 0.0
    %264 = vmatpush2.xpose.msra.mxu0 0.0
    %265 = vmatprep.mubr.f32.mxu0 0.0
    %266 = vmatmul.mubr.f32.gmra.mxu0 %v193
    %v267 = vpop.f32.mrf.mxu0
    %v268 = vadd.f32 %v72, %v267
    %v269 = vpop.f32.mrf.mxu0
    %270 = vmatprep.mubr.f32.mxu0 0.0
    %271 = vmatmul.mubr.f32.gmra.mxu0 %v195
    %v272 = vpop.f32.mrf.mxu0
    %v273 = vadd.f32 %v73, %v272
    %v274 = vpop.f32.mrf.mxu0
    %275 = vdwg.mxu0
    %v276 = vsel %vm192, %v268, -inf
    %277 = vmax.xlane.f32.xlu0 %v276
    %v278 = vpop.xlane.xlu0 %277
    %v279 = vsel %vm192, %v273, -inf
    %280 = vmax.xlane.f32.xlu0 %v279
    %v281 = vpop.xlane.xlu0 %280
    %v282 = vsub.f32 %v268, %v278
    %v283 = vsub.f32 %v273, %v281
    %v284 = vmul.f32 %v282, 1.442695
    %v285 = vpow.pop %v284
    %v286 = vmul.f32 %v283, 1.442695
    %v287 = vpow.pop %v286
    %v288 = vsel %vm192, %v285, 0.0
    %289 = vadd.xlane.f32.xlu0 %v288
    %v290 = vpop.xlane.xlu0 %289
    %v291 = vsel %vm192, %v287, 0.0
    %292 = vadd.xlane.f32.xlu0 %v291
    %v293 = vpop.xlane.xlu0 %292
    %v294 = vrcp.pop %v290
    %v295 = vrcp.pop %v293
    %v296 = vmul.f32 %v285, %v294
    %v297 = vmul.f32 %v287, %v295
    %v299 = vsel %vm192, %v296, 0
    %v302 = vsel %vm192, %v297, 0
    %304 = vmatprep.subr.mxu0 0.0
    %305 = vmatpush1.msra.mxu0 0.0
    %306 = vmatprep.subr.mxu0 0.0
    %307 = vmatpush1.msra.mxu0 0.0
    %308 = vmatprep.subr.mxu0 0.0
    %309 = vmatpush1.msra.mxu0 0.0
    %310 = vmatprep.subr.mxu0 0.0
    %311 = vmatpush1.msra.mxu0 0.0
    %312 = vmatprep.subr.mxu0 0.0
    %313 = vmatpush1.msra.mxu0 0.0
    %314 = vmatprep.subr.mxu0 0.0
    %315 = vmatpush1.msra.mxu0 0.0
    %316 = vmatprep.subr.mxu0 0.0
    %317 = vmatpush1.msra.mxu0 0.0
    %318 = vmatprep.subr.mxu0 0.0
    %319 = vmatpush1.msra.mxu0 0.0
    %320 = vmatprep.subr.mxu0 0.0
    %321 = vmatpush1.msra.mxu0 0.0
    %322 = vmatprep.subr.mxu0 0.0
    %323 = vmatpush1.msra.mxu0 0.0
    %324 = vmatprep.subr.mxu0 0.0
    %325 = vmatpush1.msra.mxu0 0.0
    %326 = vmatprep.subr.mxu0 0.0
    %327 = vmatpush1.msra.mxu0 0.0
    %328 = vmatprep.subr.mxu0 0.0
    %329 = vmatpush1.msra.mxu0 0.0
    %330 = vmatprep.subr.mxu0 0.0
    %331 = vmatpush1.msra.mxu0 0.0
    %332 = vmatprep.subr.mxu0 0.0
    %333 = vmatpush1.msra.mxu0 %v184
    %334 = vmatprep.subr.mxu0 0.0
    %335 = vmatpush1.msra.mxu0 %v178
    %336 = vmatprep.subr.mxu0 0.0
    %337 = vmatpush2.msra.mxu0 0.0
    %338 = vmatprep.subr.mxu0 0.0
    %339 = vmatpush2.msra.mxu0 0.0
    %340 = vmatprep.subr.mxu0 0.0
    %341 = vmatpush2.msra.mxu0 0.0
    %342 = vmatprep.subr.mxu0 0.0
    %343 = vmatpush2.msra.mxu0 0.0
    %344 = vmatprep.subr.mxu0 0.0
    %345 = vmatpush2.msra.mxu0 0.0
    %346 = vmatprep.subr.mxu0 0.0
    %347 = vmatpush2.msra.mxu0 0.0
    %348 = vmatprep.subr.mxu0 0.0
    %349 = vmatpush2.msra.mxu0 0.0
    %350 = vmatprep.subr.mxu0 0.0
    %351 = vmatpush2.msra.mxu0 0.0
    %352 = vmatprep.subr.mxu0 0.0
    %353 = vmatpush2.msra.mxu0 0.0
    %354 = vmatprep.subr.mxu0 0.0
    %355 = vmatpush2.msra.mxu0 0.0
    %356 = vmatprep.subr.mxu0 0.0
    %357 = vmatpush2.msra.mxu0 0.0
    %358 = vmatprep.subr.mxu0 0.0
    %359 = vmatpush2.msra.mxu0 0.0
    %360 = vmatprep.subr.mxu0 0.0
    %361 = vmatpush2.msra.mxu0 0.0
    %362 = vmatprep.subr.mxu0 0.0
    %363 = vmatpush2.msra.mxu0 0.0
    %364 = vmatprep.subr.mxu0 0.0
    %365 = vmatpush2.msra.mxu0 0.0
    %366 = vmatprep.subr.mxu0 0.0
    %367 = vmatpush2.msra.mxu0 0.0
    %368 = vmatprep.mubr.f32.mxu0 0.0
    %369 = vmatmul.mubr.f32.gmra.mxu0 %v299
    %v370 = vpop.f32.mrf.mxu0
    %v371 = vadd.f32 0.0, %v370
    %v372 = vpop.f32.mrf.mxu0
    %373 = vmatprep.mubr.f32.mxu0 0.0
    %374 = vmatmul.mubr.f32.gmra.mxu0 %v302
    %v375 = vpop.f32.mrf.mxu0
    %v376 = vadd.f32 0.0, %v375
    %v377 = vpop.f32.mrf.mxu0
    %378 = vdwg.mxu0
    %379 = vst.msk [vmem:[#allocation2] sm:$0xff] %vm192, %v371
    %380 = vst.msk [vmem:[#allocation2 + $0x8] sm:$0xff] %vm192, %v376
    %381 = vrot.lane.b32.xlu0 %v176, 112
    %v382 = vpop.permute.xlu0 %381
    %383 = vrot.lane.b32.xlu0 %v182, 112
    %v384 = vpop.permute.xlu0 %383
    %385 = vrot.lane.b32.xlu0 %v176, 48
    %v386 = vpop.permute.xlu0 %385
    %387 = vrot.lane.b32.xlu0 %v182, 48
    %v388 = vpop.permute.xlu0 %387
    %v389 = vsel %vm192, %v382, 0
    %v391 = vsel %vm192, %v384, 0
    %v393 = vsel %vm192, %v386, 0
    %v395 = vsel %vm192, %v388, 0
    %397 = vmatprep.subr.mxu0 0.0
    %398 = vmatpush1.xpose.msra.mxu0 0.0
    %399 = vmatprep.subr.mxu0 0.0
    %400 = vmatpush1.xpose.msra.mxu0 0.0
    %401 = vmatprep.subr.mxu0 0.0
    %402 = vmatpush1.xpose.msra.mxu0 0.0
    %403 = vmatprep.subr.mxu0 0.0
    %404 = vmatpush1.xpose.msra.mxu0 0.0
    %405 = vmatprep.subr.mxu0 0.0
    %406 = vmatpush1.xpose.msra.mxu0 0.0
    %407 = vmatprep.subr.mxu0 0.0
    %408 = vmatpush1.xpose.msra.mxu0 0.0
    %409 = vmatprep.subr.mxu0 0.0
    %410 = vmatpush1.xpose.msra.mxu0 0.0
    %411 = vmatprep.subr.mxu0 0.0
    %412 = vmatpush1.xpose.msra.mxu0 0.0
    %413 = vmatprep.subr.mxu0 0.0
    %414 = vmatpush1.xpose.msra.mxu0 0.0
    %415 = vmatprep.subr.mxu0 0.0
    %416 = vmatpush1.xpose.msra.mxu0 0.0
    %417 = vmatprep.subr.mxu0 0.0
    %418 = vmatpush1.xpose.msra.mxu0 0.0
    %419 = vmatprep.subr.mxu0 0.0
    %420 = vmatpush1.xpose.msra.mxu0 0.0
    %421 = vmatprep.subr.mxu0 0.0
    %422 = vmatpush1.xpose.msra.mxu0 0.0
    %423 = vmatprep.subr.mxu0 0.0
    %424 = vmatpush1.xpose.msra.mxu0 0.0
    %425 = vmatprep.subr.mxu0 0.0
    %426 = vmatpush1.xpose.msra.mxu0 %v395
    %427 = vmatprep.subr.mxu0 0.0
    %428 = vmatpush1.xpose.msra.mxu0 %v393
    %429 = vmatprep.subr.mxu0 0.0
    %430 = vmatpush2.xpose.msra.mxu0 0.0
    %431 = vmatprep.subr.mxu0 0.0
    %432 = vmatpush2.xpose.msra.mxu0 0.0
    %433 = vmatprep.subr.mxu0 0.0
    %434 = vmatpush2.xpose.msra.mxu0 0.0
    %435 = vmatprep.subr.mxu0 0.0
    %436 = vmatpush2.xpose.msra.mxu0 0.0
    %437 = vmatprep.subr.mxu0 0.0
    %438 = vmatpush2.xpose.msra.mxu0 0.0
    %439 = vmatprep.subr.mxu0 0.0
    %440 = vmatpush2.xpose.msra.mxu0 0.0
    %441 = vmatprep.subr.mxu0 0.0
    %442 = vmatpush2.xpose.msra.mxu0 0.0
    %443 = vmatprep.subr.mxu0 0.0
    %444 = vmatpush2.xpose.msra.mxu0 0.0
    %445 = vmatprep.subr.mxu0 0.0
    %446 = vmatpush2.xpose.msra.mxu0 0.0
    %447 = vmatprep.subr.mxu0 0.0
    %448 = vmatpush2.xpose.msra.mxu0 0.0
    %449 = vmatprep.subr.mxu0 0.0
    %450 = vmatpush2.xpose.msra.mxu0 0.0
    %451 = vmatprep.subr.mxu0 0.0
    %452 = vmatpush2.xpose.msra.mxu0 0.0
    %453 = vmatprep.subr.mxu0 0.0
    %454 = vmatpush2.xpose.msra.mxu0 0.0
    %455 = vmatprep.subr.mxu0 0.0
    %456 = vmatpush2.xpose.msra.mxu0 0.0
    %457 = vmatprep.subr.mxu0 0.0
    %458 = vmatpush2.xpose.msra.mxu0 0.0
    %459 = vmatprep.subr.mxu0 0.0
    %460 = vmatpush2.xpose.msra.mxu0 0.0
    %461 = vmatprep.mubr.f32.mxu0 0.0
    %462 = vmatmul.mubr.f32.gmra.mxu0 %v389
    %v463 = vpop.f32.mrf.mxu0
    %v464 = vadd.f32 %v72, %v463
    %v465 = vpop.f32.mrf.mxu0
    %466 = vmatprep.mubr.f32.mxu0 0.0
    %467 = vmatmul.mubr.f32.gmra.mxu0 %v391
    %v468 = vpop.f32.mrf.mxu0
    %v469 = vadd.f32 %v73, %v468
    %v470 = vpop.f32.mrf.mxu0
    %471 = vdwg.mxu0
    %v472 = vsel %vm192, %v464, -inf
    %473 = vmax.xlane.f32.xlu0 %v472
    %v474 = vpop.xlane.xlu0 %473
    %v475 = vsel %vm192, %v469, -inf
    %476 = vmax.xlane.f32.xlu0 %v475
    %v477 = vpop.xlane.xlu0 %476
    %v478 = vsub.f32 %v464, %v474
    %v479 = vsub.f32 %v469, %v477
    %v480 = vmul.f32 %v478, 1.442695
    %v481 = vpow.pop %v480
    %v482 = vmul.f32 %v479, 1.442695
    %v483 = vpow.pop %v482
    %v484 = vsel %vm192, %v481, 0.0
    %485 = vadd.xlane.f32.xlu0 %v484
    %v486 = vpop.xlane.xlu0 %485
    %v487 = vsel %vm192, %v483, 0.0
    %488 = vadd.xlane.f32.xlu0 %v487
    %v489 = vpop.xlane.xlu0 %488
    %v490 = vrcp.pop %v486
    %v491 = vrcp.pop %v489
    %v492 = vmul.f32 %v481, %v490
    %v493 = vmul.f32 %v483, %v491
    %496 = vrot.lane.b32.xlu0 %v178, 112
    %v497 = vpop.permute.xlu0 %496
    %498 = vrot.lane.b32.xlu0 %v184, 112
    %v499 = vpop.permute.xlu0 %498
    %v503 = vsel %vm192, %v492, 0
    %v506 = vsel %vm192, %v493, 0
    %508 = vmatprep.subr.mxu0 0.0
    %509 = vmatpush1.msra.mxu0 0.0
    %510 = vmatprep.subr.mxu0 0.0
    %511 = vmatpush1.msra.mxu0 0.0
    %512 = vmatprep.subr.mxu0 0.0
    %513 = vmatpush1.msra.mxu0 0.0
    %514 = vmatprep.subr.mxu0 0.0
    %515 = vmatpush1.msra.mxu0 0.0
    %516 = vmatprep.subr.mxu0 0.0
    %517 = vmatpush1.msra.mxu0 0.0
    %518 = vmatprep.subr.mxu0 0.0
    %519 = vmatpush1.msra.mxu0 0.0
    %520 = vmatprep.subr.mxu0 0.0
    %521 = vmatpush1.msra.mxu0 0.0
    %522 = vmatprep.subr.mxu0 0.0
    %523 = vmatpush1.msra.mxu0 0.0
    %524 = vmatprep.subr.mxu0 0.0
    %525 = vmatpush1.msra.mxu0 0.0
    %526 = vmatprep.subr.mxu0 0.0
    %527 = vmatpush1.msra.mxu0 0.0
    %528 = vmatprep.subr.mxu0 0.0
    %529 = vmatpush1.msra.mxu0 0.0
    %530 = vmatprep.subr.mxu0 0.0
    %531 = vmatpush1.msra.mxu0 0.0
    %532 = vmatprep.subr.mxu0 0.0
    %533 = vmatpush1.msra.mxu0 0.0
    %534 = vmatprep.subr.mxu0 0.0
    %535 = vmatpush1.msra.mxu0 0.0
    %536 = vmatprep.subr.mxu0 0.0
    %537 = vmatpush1.msra.mxu0 %v499
    %538 = vmatprep.subr.mxu0 0.0
    %539 = vmatpush1.msra.mxu0 %v497
    %540 = vmatprep.subr.mxu0 0.0
    %541 = vmatpush2.msra.mxu0 0.0
    %542 = vmatprep.subr.mxu0 0.0
    %543 = vmatpush2.msra.mxu0 0.0
    %544 = vmatprep.subr.mxu0 0.0
    %545 = vmatpush2.msra.mxu0 0.0
    %546 = vmatprep.subr.mxu0 0.0
    %547 = vmatpush2.msra.mxu0 0.0
    %548 = vmatprep.subr.mxu0 0.0
    %549 = vmatpush2.msra.mxu0 0.0
    %550 = vmatprep.subr.mxu0 0.0
    %551 = vmatpush2.msra.mxu0 0.0
    %552 = vmatprep.subr.mxu0 0.0
    %553 = vmatpush2.msra.mxu0 0.0
    %554 = vmatprep.subr.mxu0 0.0
    %555 = vmatpush2.msra.mxu0 0.0
    %556 = vmatprep.subr.mxu0 0.0
    %557 = vmatpush2.msra.mxu0 0.0
    %558 = vmatprep.subr.mxu0 0.0
    %559 = vmatpush2.msra.mxu0 0.0
    %560 = vmatprep.subr.mxu0 0.0
    %561 = vmatpush2.msra.mxu0 0.0
    %562 = vmatprep.subr.mxu0 0.0
    %563 = vmatpush2.msra.mxu0 0.0
    %564 = vmatprep.subr.mxu0 0.0
    %565 = vmatpush2.msra.mxu0 0.0
    %566 = vmatprep.subr.mxu0 0.0
    %567 = vmatpush2.msra.mxu0 0.0
    %568 = vmatprep.subr.mxu0 0.0
    %569 = vmatpush2.msra.mxu0 0.0
    %570 = vmatprep.subr.mxu0 0.0
    %571 = vmatpush2.msra.mxu0 0.0
    %572 = vmatprep.mubr.f32.mxu0 0.0
    %573 = vmatmul.mubr.f32.gmra.mxu0 %v503
    %v574 = vpop.f32.mrf.mxu0
    %v575 = vadd.f32 0.0, %v574
    %v576 = vpop.f32.mrf.mxu0
    %577 = vmatprep.mubr.f32.mxu0 0.0
    %578 = vmatmul.mubr.f32.gmra.mxu0 %v506
    %v579 = vpop.f32.mrf.mxu0
    %v580 = vadd.f32 0.0, %v579
    %v581 = vpop.f32.mrf.mxu0
    %582 = vdwg.mxu0
    %585 = vrot.lane.b32.xlu0 %v575, 16
    %v586 = vpop.permute.xlu0 %585
    %587 = vrot.lane.b32.xlu0 %v580, 16
    %v588 = vpop.permute.xlu0 %587
    %vm591 = vcmask 261248
    %592 = vst.msk [vmem:[#allocation2] sm:$0xff] %vm591, %v586
    %593 = vst.msk [vmem:[#allocation2 + $0x8] sm:$0xff] %vm591, %v588
    %594 = vrot.lane.b32.xlu0 %v176, 96
    %v595 = vpop.permute.xlu0 %594
    %596 = vrot.lane.b32.xlu0 %v182, 96
    %v597 = vpop.permute.xlu0 %596
    %598 = vrot.lane.b32.xlu0 %v176, 32
    %v599 = vpop.permute.xlu0 %598
    %600 = vrot.lane.b32.xlu0 %v182, 32
    %v601 = vpop.permute.xlu0 %600
    %v602 = vsel %vm192, %v595, 0
    %v604 = vsel %vm192, %v597, 0
    %v606 = vsel %vm192, %v599, 0
    %v608 = vsel %vm192, %v601, 0
    %610 = vmatprep.subr.mxu0 0.0
    %611 = vmatpush1.xpose.msra.mxu0 0.0
    %612 = vmatprep.subr.mxu0 0.0
    %613 = vmatpush1.xpose.msra.mxu0 0.0
    %614 = vmatprep.subr.mxu0 0.0
    %615 = vmatpush1.xpose.msra.mxu0 0.0
    %616 = vmatprep.subr.mxu0 0.0
    %617 = vmatpush1.xpose.msra.mxu0 0.0
    %618 = vmatprep.subr.mxu0 0.0
    %619 = vmatpush1.xpose.msra.mxu0 0.0
    %620 = vmatprep.subr.mxu0 0.0
    %621 = vmatpush1.xpose.msra.mxu0 0.0
    %622 = vmatprep.subr.mxu0 0.0
    %623 = vmatpush1.xpose.msra.mxu0 0.0
    %624 = vmatprep.subr.mxu0 0.0
    %625 = vmatpush1.xpose.msra.mxu0 0.0
    %626 = vmatprep.subr.mxu0 0.0
    %627 = vmatpush1.xpose.msra.mxu0 0.0
    %628 = vmatprep.subr.mxu0 0.0
    %629 = vmatpush1.xpose.msra.mxu0 0.0
    %630 = vmatprep.subr.mxu0 0.0
    %631 = vmatpush1.xpose.msra.mxu0 0.0
    %632 = vmatprep.subr.mxu0 0.0
    %633 = vmatpush1.xpose.msra.mxu0 0.0
    %634 = vmatprep.subr.mxu0 0.0
    %635 = vmatpush1.xpose.msra.mxu0 0.0
    %636 = vmatprep.subr.mxu0 0.0
    %637 = vmatpush1.xpose.msra.mxu0 0.0
    %638 = vmatprep.subr.mxu0 0.0
    %639 = vmatpush1.xpose.msra.mxu0 %v608
    %640 = vmatprep.subr.mxu0 0.0
    %641 = vmatpush1.xpose.msra.mxu0 %v606
    %642 = vmatprep.subr.mxu0 0.0
    %643 = vmatpush2.xpose.msra.mxu0 0.0
    %644 = vmatprep.subr.mxu0 0.0
    %645 = vmatpush2.xpose.msra.mxu0 0.0
    %646 = vmatprep.subr.mxu0 0.0
    %647 = vmatpush2.xpose.msra.mxu0 0.0
    %648 = vmatprep.subr.mxu0 0.0
    %649 = vmatpush2.xpose.msra.mxu0 0.0
    %650 = vmatprep.subr.mxu0 0.0
    %651 = vmatpush2.xpose.msra.mxu0 0.0
    %652 = vmatprep.subr.mxu0 0.0
    %653 = vmatpush2.xpose.msra.mxu0 0.0
    %654 = vmatprep.subr.mxu0 0.0
    %655 = vmatpush2.xpose.msra.mxu0 0.0
    %656 = vmatprep.subr.mxu0 0.0
    %657 = vmatpush2.xpose.msra.mxu0 0.0
    %658 = vmatprep.subr.mxu0 0.0
    %659 = vmatpush2.xpose.msra.mxu0 0.0
    %660 = vmatprep.subr.mxu0 0.0
    %661 = vmatpush2.xpose.msra.mxu0 0.0
    %662 = vmatprep.subr.mxu0 0.0
    %663 = vmatpush2.xpose.msra.mxu0 0.0
    %664 = vmatprep.subr.mxu0 0.0
    %665 = vmatpush2.xpose.msra.mxu0 0.0
    %666 = vmatprep.subr.mxu0 0.0
    %667 = vmatpush2.xpose.msra.mxu0 0.0
    %668 = vmatprep.subr.mxu0 0.0
    %669 = vmatpush2.xpose.msra.mxu0 0.0
    %670 = vmatprep.subr.mxu0 0.0
    %671 = vmatpush2.xpose.msra.mxu0 0.0
    %672 = vmatprep.subr.mxu0 0.0
    %673 = vmatpush2.xpose.msra.mxu0 0.0
    %674 = vmatprep.mubr.f32.mxu0 0.0
    %675 = vmatmul.mubr.f32.gmra.mxu0 %v602
    %v676 = vpop.f32.mrf.mxu0
    %v677 = vadd.f32 %v72, %v676
    %v678 = vpop.f32.mrf.mxu0
    %679 = vmatprep.mubr.f32.mxu0 0.0
    %680 = vmatmul.mubr.f32.gmra.mxu0 %v604
    %v681 = vpop.f32.mrf.mxu0
    %v682 = vadd.f32 %v73, %v681
    %v683 = vpop.f32.mrf.mxu0
    %684 = vdwg.mxu0
    %v685 = vsel %vm192, %v677, -inf
    %686 = vmax.xlane.f32.xlu0 %v685
    %v687 = vpop.xlane.xlu0 %686
    %v688 = vsel %vm192, %v682, -inf
    %689 = vmax.xlane.f32.xlu0 %v688
    %v690 = vpop.xlane.xlu0 %689
    %v691 = vsub.f32 %v677, %v687
    %v692 = vsub.f32 %v682, %v690
    %v693 = vmul.f32 %v691, 1.442695
    %v694 = vpow.pop %v693
    %v695 = vmul.f32 %v692, 1.442695
    %v696 = vpow.pop %v695
    %v697 = vsel %vm192, %v694, 0.0
    %698 = vadd.xlane.f32.xlu0 %v697
    %v699 = vpop.xlane.xlu0 %698
    %v700 = vsel %vm192, %v696, 0.0
    %701 = vadd.xlane.f32.xlu0 %v700
    %v702 = vpop.xlane.xlu0 %701
    %v703 = vrcp.pop %v699
    %v704 = vrcp.pop %v702
    %v705 = vmul.f32 %v694, %v703
    %v706 = vmul.f32 %v696, %v704
    %707 = vrot.lane.b32.xlu0 %v178, 96
    %v708 = vpop.permute.xlu0 %707
    %709 = vrot.lane.b32.xlu0 %v184, 96
    %v710 = vpop.permute.xlu0 %709
    %v714 = vsel %vm192, %v705, 0
    %v717 = vsel %vm192, %v706, 0
    %719 = vmatprep.subr.mxu0 0.0
    %720 = vmatpush1.msra.mxu0 0.0
    %721 = vmatprep.subr.mxu0 0.0
    %722 = vmatpush1.msra.mxu0 0.0
    %723 = vmatprep.subr.mxu0 0.0
    %724 = vmatpush1.msra.mxu0 0.0
    %725 = vmatprep.subr.mxu0 0.0
    %726 = vmatpush1.msra.mxu0 0.0
    %727 = vmatprep.subr.mxu0 0.0
    %728 = vmatpush1.msra.mxu0 0.0
    %729 = vmatprep.subr.mxu0 0.0
    %730 = vmatpush1.msra.mxu0 0.0
    %731 = vmatprep.subr.mxu0 0.0
    %732 = vmatpush1.msra.mxu0 0.0
    %733 = vmatprep.subr.mxu0 0.0
    %734 = vmatpush1.msra.mxu0 0.0
    %735 = vmatprep.subr.mxu0 0.0
    %736 = vmatpush1.msra.mxu0 0.0
    %737 = vmatprep.subr.mxu0 0.0
    %738 = vmatpush1.msra.mxu0 0.0
    %739 = vmatprep.subr.mxu0 0.0
    %740 = vmatpush1.msra.mxu0 0.0
    %741 = vmatprep.subr.mxu0 0.0
    %742 = vmatpush1.msra.mxu0 0.0
    %743 = vmatprep.subr.mxu0 0.0
    %744 = vmatpush1.msra.mxu0 0.0
    %745 = vmatprep.subr.mxu0 0.0
    %746 = vmatpush1.msra.mxu0 0.0
    %747 = vmatprep.subr.mxu0 0.0
    %748 = vmatpush1.msra.mxu0 %v710
    %749 = vmatprep.subr.mxu0 0.0
    %750 = vmatpush1.msra.mxu0 %v708
    %751 = vmatprep.subr.mxu0 0.0
    %752 = vmatpush2.msra.mxu0 0.0
    %753 = vmatprep.subr.mxu0 0.0
    %754 = vmatpush2.msra.mxu0 0.0
    %755 = vmatprep.subr.mxu0 0.0
    %756 = vmatpush2.msra.mxu0 0.0
    %757 = vmatprep.subr.mxu0 0.0
    %758 = vmatpush2.msra.mxu0 0.0
    %759 = vmatprep.subr.mxu0 0.0
    %760 = vmatpush2.msra.mxu0 0.0
    %761 = vmatprep.subr.mxu0 0.0
    %762 = vmatpush2.msra.mxu0 0.0
    %763 = vmatprep.subr.mxu0 0.0
    %764 = vmatpush2.msra.mxu0 0.0
    %765 = vmatprep.subr.mxu0 0.0
    %766 = vmatpush2.msra.mxu0 0.0
    %767 = vmatprep.subr.mxu0 0.0
    %768 = vmatpush2.msra.mxu0 0.0
    %769 = vmatprep.subr.mxu0 0.0
    %770 = vmatpush2.msra.mxu0 0.0
    %771 = vmatprep.subr.mxu0 0.0
    %772 = vmatpush2.msra.mxu0 0.0
    %773 = vmatprep.subr.mxu0 0.0
    %774 = vmatpush2.msra.mxu0 0.0
    %775 = vmatprep.subr.mxu0 0.0
    %776 = vmatpush2.msra.mxu0 0.0
    %777 = vmatprep.subr.mxu0 0.0
    %778 = vmatpush2.msra.mxu0 0.0
    %779 = vmatprep.subr.mxu0 0.0
    %780 = vmatpush2.msra.mxu0 0.0
    %781 = vmatprep.subr.mxu0 0.0
    %782 = vmatpush2.msra.mxu0 0.0
    %783 = vmatprep.mubr.f32.mxu0 0.0
    %784 = vmatmul.mubr.f32.gmra.mxu0 %v714
    %v785 = vpop.f32.mrf.mxu0
    %v786 = vadd.f32 0.0, %v785
    %v787 = vpop.f32.mrf.mxu0
    %788 = vmatprep.mubr.f32.mxu0 0.0
    %789 = vmatmul.mubr.f32.gmra.mxu0 %v717
    %v790 = vpop.f32.mrf.mxu0
    %v791 = vadd.f32 0.0, %v790
    %v792 = vpop.f32.mrf.mxu0
    %793 = vdwg.mxu0
    %796 = vrot.lane.b32.xlu0 %v786, 32
    %v797 = vpop.permute.xlu0 %796
    %798 = vrot.lane.b32.xlu0 %v791, 32
    %v799 = vpop.permute.xlu0 %798
    %vm802 = vcmask 392448
    %803 = vst.msk [vmem:[#allocation2] sm:$0xff] %vm802, %v797
    %804 = vst.msk [vmem:[#allocation2 + $0x8] sm:$0xff] %vm802, %v799
    %805 = vrot.lane.b32.xlu0 %v176, 80
    %v806 = vpop.permute.xlu0 %805
    %807 = vrot.lane.b32.xlu0 %v182, 80
    %v808 = vpop.permute.xlu0 %807
    %809 = vrot.lane.b32.xlu0 %v176, 16
    %v810 = vpop.permute.xlu0 %809
    %811 = vrot.lane.b32.xlu0 %v182, 16
    %v812 = vpop.permute.xlu0 %811
    %v813 = vsel %vm192, %v806, 0
    %v815 = vsel %vm192, %v808, 0
    %v817 = vsel %vm192, %v810, 0
    %v819 = vsel %vm192, %v812, 0
    %821 = vmatprep.subr.mxu0 0.0
    %822 = vmatpush1.xpose.msra.mxu0 0.0
    %823 = vmatprep.subr.mxu0 0.0
    %824 = vmatpush1.xpose.msra.mxu0 0.0
    %825 = vmatprep.subr.mxu0 0.0
    %826 = vmatpush1.xpose.msra.mxu0 0.0
    %827 = vmatprep.subr.mxu0 0.0
    %828 = vmatpush1.xpose.msra.mxu0 0.0
    %829 = vmatprep.subr.mxu0 0.0
    %830 = vmatpush1.xpose.msra.mxu0 0.0
    %831 = vmatprep.subr.mxu0 0.0
    %832 = vmatpush1.xpose.msra.mxu0 0.0
    %833 = vmatprep.subr.mxu0 0.0
    %834 = vmatpush1.xpose.msra.mxu0 0.0
    %835 = vmatprep.subr.mxu0 0.0
    %836 = vmatpush1.xpose.msra.mxu0 0.0
    %837 = vmatprep.subr.mxu0 0.0
    %838 = vmatpush1.xpose.msra.mxu0 0.0
    %839 = vmatprep.subr.mxu0 0.0
    %840 = vmatpush1.xpose.msra.mxu0 0.0
    %841 = vmatprep.subr.mxu0 0.0
    %842 = vmatpush1.xpose.msra.mxu0 0.0
    %843 = vmatprep.subr.mxu0 0.0
    %844 = vmatpush1.xpose.msra.mxu0 0.0
    %845 = vmatprep.subr.mxu0 0.0
    %846 = vmatpush1.xpose.msra.mxu0 0.0
    %847 = vmatprep.subr.mxu0 0.0
    %848 = vmatpush1.xpose.msra.mxu0 0.0
    %849 = vmatprep.subr.mxu0 0.0
    %850 = vmatpush1.xpose.msra.mxu0 %v819
    %851 = vmatprep.subr.mxu0 0.0
    %852 = vmatpush1.xpose.msra.mxu0 %v817
    %853 = vmatprep.subr.mxu0 0.0
    %854 = vmatpush2.xpose.msra.mxu0 0.0
    %855 = vmatprep.subr.mxu0 0.0
    %856 = vmatpush2.xpose.msra.mxu0 0.0
    %857 = vmatprep.subr.mxu0 0.0
    %858 = vmatpush2.xpose.msra.mxu0 0.0
    %859 = vmatprep.subr.mxu0 0.0
    %860 = vmatpush2.xpose.msra.mxu0 0.0
    %861 = vmatprep.subr.mxu0 0.0
    %862 = vmatpush2.xpose.msra.mxu0 0.0
    %863 = vmatprep.subr.mxu0 0.0
    %864 = vmatpush2.xpose.msra.mxu0 0.0
    %865 = vmatprep.subr.mxu0 0.0
    %866 = vmatpush2.xpose.msra.mxu0 0.0
    %867 = vmatprep.subr.mxu0 0.0
    %868 = vmatpush2.xpose.msra.mxu0 0.0
    %869 = vmatprep.subr.mxu0 0.0
    %870 = vmatpush2.xpose.msra.mxu0 0.0
    %871 = vmatprep.subr.mxu0 0.0
    %872 = vmatpush2.xpose.msra.mxu0 0.0
    %873 = vmatprep.subr.mxu0 0.0
    %874 = vmatpush2.xpose.msra.mxu0 0.0
    %875 = vmatprep.subr.mxu0 0.0
    %876 = vmatpush2.xpose.msra.mxu0 0.0
    %877 = vmatprep.subr.mxu0 0.0
    %878 = vmatpush2.xpose.msra.mxu0 0.0
    %879 = vmatprep.subr.mxu0 0.0
    %880 = vmatpush2.xpose.msra.mxu0 0.0
    %881 = vmatprep.subr.mxu0 0.0
    %882 = vmatpush2.xpose.msra.mxu0 0.0
    %883 = vmatprep.subr.mxu0 0.0
    %884 = vmatpush2.xpose.msra.mxu0 0.0
    %885 = vmatprep.mubr.f32.mxu0 0.0
    %886 = vmatmul.mubr.f32.gmra.mxu0 %v813
    %v887 = vpop.f32.mrf.mxu0
    %v888 = vadd.f32 %v72, %v887
    %v889 = vpop.f32.mrf.mxu0
    %890 = vmatprep.mubr.f32.mxu0 0.0
    %891 = vmatmul.mubr.f32.gmra.mxu0 %v815
    %v892 = vpop.f32.mrf.mxu0
    %v893 = vadd.f32 %v73, %v892
    %v894 = vpop.f32.mrf.mxu0
    %895 = vdwg.mxu0
    %v896 = vsel %vm192, %v888, -inf
    %897 = vmax.xlane.f32.xlu0 %v896
    %v898 = vpop.xlane.xlu0 %897
    %v899 = vsel %vm192, %v893, -inf
    %900 = vmax.xlane.f32.xlu0 %v899
    %v901 = vpop.xlane.xlu0 %900
    %v902 = vsub.f32 %v888, %v898
    %v903 = vsub.f32 %v893, %v901
    %v904 = vmul.f32 %v902, 1.442695
    %v905 = vpow.pop %v904
    %v906 = vmul.f32 %v903, 1.442695
    %v907 = vpow.pop %v906
    %v908 = vsel %vm192, %v905, 0.0
    %909 = vadd.xlane.f32.xlu0 %v908
    %v910 = vpop.xlane.xlu0 %909
    %v911 = vsel %vm192, %v907, 0.0
    %912 = vadd.xlane.f32.xlu0 %v911
    %v913 = vpop.xlane.xlu0 %912
    %v914 = vrcp.pop %v910
    %v915 = vrcp.pop %v913
    %v916 = vmul.f32 %v905, %v914
    %v917 = vmul.f32 %v907, %v915
    %918 = vrot.lane.b32.xlu0 %v178, 80
    %v919 = vpop.permute.xlu0 %918
    %920 = vrot.lane.b32.xlu0 %v184, 80
    %v921 = vpop.permute.xlu0 %920
    %v925 = vsel %vm192, %v916, 0
    %v928 = vsel %vm192, %v917, 0
    %930 = vmatprep.subr.mxu0 0.0
    %931 = vmatpush1.msra.mxu0 0.0
    %932 = vmatprep.subr.mxu0 0.0
    %933 = vmatpush1.msra.mxu0 0.0
    %934 = vmatprep.subr.mxu0 0.0
    %935 = vmatpush1.msra.mxu0 0.0
    %936 = vmatprep.subr.mxu0 0.0
    %937 = vmatpush1.msra.mxu0 0.0
    %938 = vmatprep.subr.mxu0 0.0
    %939 = vmatpush1.msra.mxu0 0.0
    %940 = vmatprep.subr.mxu0 0.0
    %941 = vmatpush1.msra.mxu0 0.0
    %942 = vmatprep.subr.mxu0 0.0
    %943 = vmatpush1.msra.mxu0 0.0
    %944 = vmatprep.subr.mxu0 0.0
    %945 = vmatpush1.msra.mxu0 0.0
    %946 = vmatprep.subr.mxu0 0.0
    %947 = vmatpush1.msra.mxu0 0.0
    %948 = vmatprep.subr.mxu0 0.0
    %949 = vmatpush1.msra.mxu0 0.0
    %950 = vmatprep.subr.mxu0 0.0
    %951 = vmatpush1.msra.mxu0 0.0
    %952 = vmatprep.subr.mxu0 0.0
    %953 = vmatpush1.msra.mxu0 0.0
    %954 = vmatprep.subr.mxu0 0.0
    %955 = vmatpush1.msra.mxu0 0.0
    %956 = vmatprep.subr.mxu0 0.0
    %957 = vmatpush1.msra.mxu0 0.0
    %958 = vmatprep.subr.mxu0 0.0
    %959 = vmatpush1.msra.mxu0 %v921
    %960 = vmatprep.subr.mxu0 0.0
    %961 = vmatpush1.msra.mxu0 %v919
    %962 = vmatprep.subr.mxu0 0.0
    %963 = vmatpush2.msra.mxu0 0.0
    %964 = vmatprep.subr.mxu0 0.0
    %965 = vmatpush2.msra.mxu0 0.0
    %966 = vmatprep.subr.mxu0 0.0
    %967 = vmatpush2.msra.mxu0 0.0
    %968 = vmatprep.subr.mxu0 0.0
    %969 = vmatpush2.msra.mxu0 0.0
    %970 = vmatprep.subr.mxu0 0.0
    %971 = vmatpush2.msra.mxu0 0.0
    %972 = vmatprep.subr.mxu0 0.0
    %973 = vmatpush2.msra.mxu0 0.0
    %974 = vmatprep.subr.mxu0 0.0
    %975 = vmatpush2.msra.mxu0 0.0
    %976 = vmatprep.subr.mxu0 0.0
    %977 = vmatpush2.msra.mxu0 0.0
    %978 = vmatprep.subr.mxu0 0.0
    %979 = vmatpush2.msra.mxu0 0.0
    %980 = vmatprep.subr.mxu0 0.0
    %981 = vmatpush2.msra.mxu0 0.0
    %982 = vmatprep.subr.mxu0 0.0
    %983 = vmatpush2.msra.mxu0 0.0
    %984 = vmatprep.subr.mxu0 0.0
    %985 = vmatpush2.msra.mxu0 0.0
    %986 = vmatprep.subr.mxu0 0.0
    %987 = vmatpush2.msra.mxu0 0.0
    %988 = vmatprep.subr.mxu0 0.0
    %989 = vmatpush2.msra.mxu0 0.0
    %990 = vmatprep.subr.mxu0 0.0
    %991 = vmatpush2.msra.mxu0 0.0
    %992 = vmatprep.subr.mxu0 0.0
    %993 = vmatpush2.msra.mxu0 0.0
    %994 = vmatprep.mubr.f32.mxu0 0.0
    %995 = vmatmul.mubr.f32.gmra.mxu0 %v925
    %v996 = vpop.f32.mrf.mxu0
    %v997 = vadd.f32 0.0, %v996
    %v998 = vpop.f32.mrf.mxu0
    %999 = vmatprep.mubr.f32.mxu0 0.0
    %1000 = vmatmul.mubr.f32.gmra.mxu0 %v928
    %v1001 = vpop.f32.mrf.mxu0
    %v1002 = vadd.f32 0.0, %v1001
    %v1003 = vpop.f32.mrf.mxu0
    %1004 = vdwg.mxu0
    %1007 = vrot.lane.b32.xlu0 %v997, 48
    %v1008 = vpop.permute.xlu0 %1007
    %1009 = vrot.lane.b32.xlu0 %v1002, 48
    %v1010 = vpop.permute.xlu0 %1009
    %vm1013 = vcmask 523648
    %1014 = vst.msk [vmem:[#allocation2] sm:$0xff] %vm1013, %v1008
    %1015 = vst.msk [vmem:[#allocation2 + $0x8] sm:$0xff] %vm1013, %v1010
    %v1016 = vld [vmem:[#allocation2] sm:$0xff]
    %v1017 = vld [vmem:[#allocation2 + $0x8] sm:$0xff]
    %v1018 = vld [vmem:[%s5] sm:$0xff]
    %v1019 = vld [vmem:[%s5 + $0x8] sm:$0xff]
    %v1020 = vld [vmem:[%s5 + $0x10] sm:$0xff]
    %v1021 = vld [vmem:[%s5 + $0x18] sm:$0xff]
    %v1022 = vld [vmem:[%s5 + $0x20] sm:$0xff]
    %v1023 = vld [vmem:[%s5 + $0x28] sm:$0xff]
    %v1024 = vld [vmem:[%s5 + $0x30] sm:$0xff]
    %v1025 = vld [vmem:[%s5 + $0x38] sm:$0xff]
    %v1026 = vld [vmem:[%s6] sm:$0x1]
    %v1028 = vlaneseq
    %v1029 = vshrl.u32 %v1028, 7
    %v1030 = vsub.s32 0, %v1029
    %v1031 = vrot.slane %v1026, %v1030
    %v1034 = vsel %vm102, %v1016, 0
    %v1037 = vsel %vm102, %v1017, 0
    %1039 = vmatprep.subr.mxu0 0.0
    %1040 = vmatpush1.msra.mxu0 0.0
    %1041 = vmatprep.subr.mxu0 0.0
    %1042 = vmatpush1.msra.mxu0 0.0
    %1043 = vmatprep.subr.mxu0 0.0
    %1044 = vmatpush1.msra.mxu0 0.0
    %1045 = vmatprep.subr.mxu0 0.0
    %1046 = vmatpush1.msra.mxu0 0.0
    %1047 = vmatprep.subr.mxu0 0.0
    %1048 = vmatpush1.msra.mxu0 0.0
    %1049 = vmatprep.subr.mxu0 0.0
    %1050 = vmatpush1.msra.mxu0 0.0
    %1051 = vmatprep.subr.mxu0 0.0
    %1052 = vmatpush1.msra.mxu0 0.0
    %1053 = vmatprep.subr.mxu0 0.0
    %1054 = vmatpush1.msra.mxu0 0.0
    %1055 = vmatprep.subr.mxu0 0.0
    %1056 = vmatpush1.msra.mxu0 %v1025
    %1057 = vmatprep.subr.mxu0 0.0
    %1058 = vmatpush1.msra.mxu0 %v1024
    %1059 = vmatprep.subr.mxu0 0.0
    %1060 = vmatpush1.msra.mxu0 %v1023
    %1061 = vmatprep.subr.mxu0 0.0
    %1062 = vmatpush1.msra.mxu0 %v1022
    %1063 = vmatprep.subr.mxu0 0.0
    %1064 = vmatpush1.msra.mxu0 %v1021
    %1065 = vmatprep.subr.mxu0 0.0
    %1066 = vmatpush1.msra.mxu0 %v1020
    %1067 = vmatprep.subr.mxu0 0.0
    %1068 = vmatpush1.msra.mxu0 %v1019
    %1069 = vmatprep.subr.mxu0 0.0
    %1070 = vmatpush1.msra.mxu0 %v1018
    %1071 = vmatprep.subr.mxu0 0.0
    %1072 = vmatpush2.msra.mxu0 0.0
    %1073 = vmatprep.subr.mxu0 0.0
    %1074 = vmatpush2.msra.mxu0 0.0
    %1075 = vmatprep.subr.mxu0 0.0
    %1076 = vmatpush2.msra.mxu0 0.0
    %1077 = vmatprep.subr.mxu0 0.0
    %1078 = vmatpush2.msra.mxu0 0.0
    %1079 = vmatprep.subr.mxu0 0.0
    %1080 = vmatpush2.msra.mxu0 0.0
    %1081 = vmatprep.subr.mxu0 0.0
    %1082 = vmatpush2.msra.mxu0 0.0
    %1083 = vmatprep.subr.mxu0 0.0
    %1084 = vmatpush2.msra.mxu0 0.0
    %1085 = vmatprep.subr.mxu0 0.0
    %1086 = vmatpush2.msra.mxu0 0.0
    %1087 = vmatprep.subr.mxu0 0.0
    %1088 = vmatpush2.msra.mxu0 0.0
    %1089 = vmatprep.subr.mxu0 0.0
    %1090 = vmatpush2.msra.mxu0 0.0
    %1091 = vmatprep.subr.mxu0 0.0
    %1092 = vmatpush2.msra.mxu0 0.0
    %1093 = vmatprep.subr.mxu0 0.0
    %1094 = vmatpush2.msra.mxu0 0.0
    %1095 = vmatprep.subr.mxu0 0.0
    %1096 = vmatpush2.msra.mxu0 0.0
    %1097 = vmatprep.subr.mxu0 0.0
    %1098 = vmatpush2.msra.mxu0 0.0
    %1099 = vmatprep.subr.mxu0 0.0
    %1100 = vmatpush2.msra.mxu0 0.0
    %1101 = vmatprep.subr.mxu0 0.0
    %1102 = vmatpush2.msra.mxu0 0.0
    %1103 = vmatprep.mubr.f32.mxu0 0.0
    %1104 = vmatmul.mubr.f32.gmra.mxu0 %v1034
    %v1105 = vpop.f32.mrf.mxu0
    %v1106 = vadd.f32 %v1031, %v1105
    %v1107 = vpop.f32.mrf.mxu0
    %1108 = vmatprep.mubr.f32.mxu0 0.0
    %1109 = vmatmul.mubr.f32.gmra.mxu0 %v1037
    %v1110 = vpop.f32.mrf.mxu0
    %v1111 = vadd.f32 %v1031, %v1110
    %v1112 = vpop.f32.mrf.mxu0
    %1113 = vdwg.mxu0
    %v1114 = vadd.f32 %v70, %v1106
    %v1115 = vadd.f32 %v71, %v1111
    %v1116 = vld [vmem:[%s7] sm:$0x1]
    %v1117 = vld [vmem:[%s8] sm:$0x1]
    %v1118 = vsel %vm102, %v1114, 0.0
    %1119 = vadd.xlane.f32.xlu0 %v1118
    %v1120 = vpop.xlane.xlu0 %1119
    %v1121 = vsel %vm102, %v1115, 0.0
    %1122 = vadd.xlane.f32.xlu0 %v1121
    %v1123 = vpop.xlane.xlu0 %1122
    %v1124 = vmul.f32 %v1114, %v1114
    %v1125 = vmul.f32 %v1115, %v1115
    %v1126 = vsel %vm102, %v1124, 0.0
    %1127 = vadd.xlane.f32.xlu0 %v1126
    %v1128 = vpop.xlane.xlu0 %1127
    %v1129 = vsel %vm102, %v1125, 0.0
    %1130 = vadd.xlane.f32.xlu0 %v1129
    %v1131 = vpop.xlane.xlu0 %1130
    %v1132 = vmul.f32 %v1120, 0.015625
    %v1133 = vmul.f32 %v1123, 0.015625
    %v1134 = vmul.f32 %v1128, 0.015625
    %v1135 = vmul.f32 %v1131, 0.015625
    %v1136 = vmul.f32 %v1132, %v1132
    %v1137 = vmul.f32 %v1133, %v1133
    %v1138 = vsub.f32 %v1134, %v1136
    %v1139 = vsub.f32 %v1135, %v1137
    %v1140 = vsub.f32 %v1114, %v1132
    %v1141 = vsub.f32 %v1115, %v1133
    %v1142 = vadd.f32 %v1138, 1e-05
    %v1143 = vadd.f32 %v1139, 1e-05
    %v1144 = vrsqrt.pop %v1142
    %v1145 = vrsqrt.pop %v1143
    %v1147 = vlaneseq
    %v1148 = vshrl.u32 %v1147, 7
    %v1149 = vsub.s32 0, %v1148
    %v1150 = vrot.slane %v1116, %v1149
    %v1152 = vmul.f32 %v1144, %v1150
    %v1153 = vmul.f32 %v1145, %v1150
    %v1154 = vmul.f32 %v1140, %v1152
    %v1155 = vmul.f32 %v1141, %v1153
    %v1157 = vlaneseq
    %v1158 = vshrl.u32 %v1157, 7
    %v1159 = vsub.s32 0, %v1158
    %v1160 = vrot.slane %v1117, %v1159
    %v1162 = vadd.f32 %v1154, %v1160
    %v1163 = vadd.f32 %v1155, %v1160
    %v1164 = vld [vmem:[%s9] sm:$0xff]
    %v1165 = vld [vmem:[%s9 + $0x8] sm:$0xff]
    %v1166 = vld [vmem:[%s9 + $0x10] sm:$0xff]
    %v1167 = vld [vmem:[%s9 + $0x18] sm:$0xff]
    %v1168 = vld [vmem:[%s9 + $0x20] sm:$0xff]
    %v1169 = vld [vmem:[%s9 + $0x28] sm:$0xff]
    %v1170 = vld [vmem:[%s9 + $0x30] sm:$0xff]
    %v1171 = vld [vmem:[%s9 + $0x38] sm:$0xff]
    %v1172 = vld [vmem:[%s10] sm:$0x1]
    %v1174 = vlaneseq
    %v1175 = vshrl.u32 %v1174, 7
    %v1176 = vsub.s32 0, %v1175
    %v1177 = vrot.slane %v1172, %v1176
    %v1180 = vsel %vm102, %v1162, 0
    %v1183 = vsel %vm102, %v1163, 0
    %1185 = vmatprep.subr.mxu0 0.0
    %1186 = vmatpush1.msra.mxu0 0.0
    %1187 = vmatprep.subr.mxu0 0.0
    %1188 = vmatpush1.msra.mxu0 0.0
    %1189 = vmatprep.subr.mxu0 0.0
    %1190 = vmatpush1.msra.mxu0 0.0
    %1191 = vmatprep.subr.mxu0 0.0
    %1192 = vmatpush1.msra.mxu0 0.0
    %1193 = vmatprep.subr.mxu0 0.0
    %1194 = vmatpush1.msra.mxu0 0.0
    %1195 = vmatprep.subr.mxu0 0.0
    %1196 = vmatpush1.msra.mxu0 0.0
    %1197 = vmatprep.subr.mxu0 0.0
    %1198 = vmatpush1.msra.mxu0 0.0
    %1199 = vmatprep.subr.mxu0 0.0
    %1200 = vmatpush1.msra.mxu0 0.0
    %1201 = vmatprep.subr.mxu0 0.0
    %1202 = vmatpush1.msra.mxu0 %v1171
    %1203 = vmatprep.subr.mxu0 0.0
    %1204 = vmatpush1.msra.mxu0 %v1170
    %1205 = vmatprep.subr.mxu0 0.0
    %1206 = vmatpush1.msra.mxu0 %v1169
    %1207 = vmatprep.subr.mxu0 0.0
    %1208 = vmatpush1.msra.mxu0 %v1168
    %1209 = vmatprep.subr.mxu0 0.0
    %1210 = vmatpush1.msra.mxu0 %v1167
    %1211 = vmatprep.subr.mxu0 0.0
    %1212 = vmatpush1.msra.mxu0 %v1166
    %1213 = vmatprep.subr.mxu0 0.0
    %1214 = vmatpush1.msra.mxu0 %v1165
    %1215 = vmatprep.subr.mxu0 0.0
    %1216 = vmatpush1.msra.mxu0 %v1164
    %1217 = vmatprep.subr.mxu0 0.0
    %1218 = vmatpush2.msra.mxu0 0.0
    %1219 = vmatprep.subr.mxu0 0.0
    %1220 = vmatpush2.msra.mxu0 0.0
    %1221 = vmatprep.subr.mxu0 0.0
    %1222 = vmatpush2.msra.mxu0 0.0
    %1223 = vmatprep.subr.mxu0 0.0
    %1224 = vmatpush2.msra.mxu0 0.0
    %1225 = vmatprep.subr.mxu0 0.0
    %1226 = vmatpush2.msra.mxu0 0.0
    %1227 = vmatprep.subr.mxu0 0.0
    %1228 = vmatpush2.msra.mxu0 0.0
    %1229 = vmatprep.subr.mxu0 0.0
    %1230 = vmatpush2.msra.mxu0 0.0
    %1231 = vmatprep.subr.mxu0 0.0
    %1232 = vmatpush2.msra.mxu0 0.0
    %1233 = vmatprep.subr.mxu0 0.0
    %1234 = vmatpush2.msra.mxu0 0.0
    %1235 = vmatprep.subr.mxu0 0.0
    %1236 = vmatpush2.msra.mxu0 0.0
    %1237 = vmatprep.subr.mxu0 0.0
    %1238 = vmatpush2.msra.mxu0 0.0
    %1239 = vmatprep.subr.mxu0 0.0
    %1240 = vmatpush2.msra.mxu0 0.0
    %1241 = vmatprep.subr.mxu0 0.0
    %1242 = vmatpush2.msra.mxu0 0.0
    %1243 = vmatprep.subr.mxu0 0.0
    %1244 = vmatpush2.msra.mxu0 0.0
    %1245 = vmatprep.subr.mxu0 0.0
    %1246 = vmatpush2.msra.mxu0 0.0
    %1247 = vmatprep.subr.mxu0 0.0
    %1248 = vmatpush2.msra.mxu0 0.0
    %1249 = vmatprep.mubr.f32.mxu0 0.0
    %1250 = vmatmul.mubr.f32.gmra.mxu0 %v1180
    %v1251 = vpop.f32.mrf.mxu0
    %v1252 = vadd.f32 %v1177, %v1251
    %v1253 = vpop.f32.mrf.mxu0
    %1254 = vmatprep.mubr.f32.mxu0 0.0
    %1255 = vmatmul.mubr.f32.gmra.mxu0 %v1183
    %v1256 = vpop.f32.mrf.mxu0
    %v1257 = vadd.f32 %v1177, %v1256
    %v1258 = vpop.f32.mrf.mxu0
    %1259 = vdwg.mxu0
    %v1260 = vmax.f32 %v1252, 0.0
    %v1261 = vmax.f32 %v1257, 0.0
    %v1262 = vld [vmem:[%s11] sm:$0xff]
    %v1263 = vld [vmem:[%s11 + $0x8] sm:$0xff]
    %v1264 = vld [vmem:[%s11 + $0x10] sm:$0xff]
    %v1265 = vld [vmem:[%s11 + $0x18] sm:$0xff]
    %v1266 = vld [vmem:[%s11 + $0x20] sm:$0xff]
    %v1267 = vld [vmem:[%s11 + $0x28] sm:$0xff]
    %v1268 = vld [vmem:[%s11 + $0x30] sm:$0xff]
    %v1269 = vld [vmem:[%s11 + $0x38] sm:$0xff]
    %v1270 = vld [vmem:[%s12] sm:$0x1]
    %v1272 = vlaneseq
    %v1273 = vshrl.u32 %v1272, 7
    %v1274 = vsub.s32 0, %v1273
    %v1275 = vrot.slane %v1270, %v1274
    %v1278 = vsel %vm102, %v1260, 0
    %v1281 = vsel %vm102, %v1261, 0
    %1283 = vmatprep.subr.mxu0 0.0
    %1284 = vmatpush1.msra.mxu0 0.0
    %1285 = vmatprep.subr.mxu0 0.0
    %1286 = vmatpush1.msra.mxu0 0.0
    %1287 = vmatprep.subr.mxu0 0.0
    %1288 = vmatpush1.msra.mxu0 0.0
    %1289 = vmatprep.subr.mxu0 0.0
    %1290 = vmatpush1.msra.mxu0 0.0
    %1291 = vmatprep.subr.mxu0 0.0
    %1292 = vmatpush1.msra.mxu0 0.0
    %1293 = vmatprep.subr.mxu0 0.0
    %1294 = vmatpush1.msra.mxu0 0.0
    %1295 = vmatprep.subr.mxu0 0.0
    %1296 = vmatpush1.msra.mxu0 0.0
    %1297 = vmatprep.subr.mxu0 0.0
    %1298 = vmatpush1.msra.mxu0 0.0
    %1299 = vmatprep.subr.mxu0 0.0
    %1300 = vmatpush1.msra.mxu0 %v1269
    %1301 = vmatprep.subr.mxu0 0.0
    %1302 = vmatpush1.msra.mxu0 %v1268
    %1303 = vmatprep.subr.mxu0 0.0
    %1304 = vmatpush1.msra.mxu0 %v1267
    %1305 = vmatprep.subr.mxu0 0.0
    %1306 = vmatpush1.msra.mxu0 %v1266
    %1307 = vmatprep.subr.mxu0 0.0
    %1308 = vmatpush1.msra.mxu0 %v1265
    %1309 = vmatprep.subr.mxu0 0.0
    %1310 = vmatpush1.msra.mxu0 %v1264
    %1311 = vmatprep.subr.mxu0 0.0
    %1312 = vmatpush1.msra.mxu0 %v1263
    %1313 = vmatprep.subr.mxu0 0.0
    %1314 = vmatpush1.msra.mxu0 %v1262
    %1315 = vmatprep.subr.mxu0 0.0
    %1316 = vmatpush2.msra.mxu0 0.0
    %1317 = vmatprep.subr.mxu0 0.0
    %1318 = vmatpush2.msra.mxu0 0.0
    %1319 = vmatprep.subr.mxu0 0.0
    %1320 = vmatpush2.msra.mxu0 0.0
    %1321 = vmatprep.subr.mxu0 0.0
    %1322 = vmatpush2.msra.mxu0 0.0
    %1323 = vmatprep.subr.mxu0 0.0
    %1324 = vmatpush2.msra.mxu0 0.0
    %1325 = vmatprep.subr.mxu0 0.0
    %1326 = vmatpush2.msra.mxu0 0.0
    %1327 = vmatprep.subr.mxu0 0.0
    %1328 = vmatpush2.msra.mxu0 0.0
    %1329 = vmatprep.subr.mxu0 0.0
    %1330 = vmatpush2.msra.mxu0 0.0
    %1331 = vmatprep.subr.mxu0 0.0
    %1332 = vmatpush2.msra.mxu0 0.0
    %1333 = vmatprep.subr.mxu0 0.0
    %1334 = vmatpush2.msra.mxu0 0.0
    %1335 = vmatprep.subr.mxu0 0.0
    %1336 = vmatpush2.msra.mxu0 0.0
    %1337 = vmatprep.subr.mxu0 0.0
    %1338 = vmatpush2.msra.mxu0 0.0
    %1339 = vmatprep.subr.mxu0 0.0
    %1340 = vmatpush2.msra.mxu0 0.0
    %1341 = vmatprep.subr.mxu0 0.0
    %1342 = vmatpush2.msra.mxu0 0.0
    %1343 = vmatprep.subr.mxu0 0.0
    %1344 = vmatpush2.msra.mxu0 0.0
    %1345 = vmatprep.subr.mxu0 0.0
    %1346 = vmatpush2.msra.mxu0 0.0
    %1347 = vmatprep.mubr.f32.mxu0 0.0
    %1348 = vmatmul.mubr.f32.gmra.mxu0 %v1278
    %v1349 = vpop.f32.mrf.mxu0
    %v1350 = vadd.f32 %v1275, %v1349
    %v1351 = vpop.f32.mrf.mxu0
    %1352 = vmatprep.mubr.f32.mxu0 0.0
    %1353 = vmatmul.mubr.f32.gmra.mxu0 %v1281
    %v1354 = vpop.f32.mrf.mxu0
    %v1355 = vadd.f32 %v1275, %v1354
    %v1356 = vpop.f32.mrf.mxu0
    %1357 = vdwg.mxu0
    %v1358 = vadd.f32 %v1162, %v1350
    %v1359 = vadd.f32 %v1163, %v1355
    %v1360 = vld [vmem:[%s13] sm:$0x1]
    %v1361 = vld [vmem:[%s14] sm:$0x1]
    %v1362 = vsel %vm102, %v1358, 0.0
    %1363 = vadd.xlane.f32.xlu0 %v1362
    %v1364 = vpop.xlane.xlu0 %1363
    %v1365 = vsel %vm102, %v1359, 0.0
    %1366 = vadd.xlane.f32.xlu0 %v1365
    %v1367 = vpop.xlane.xlu0 %1366
    %v1368 = vmul.f32 %v1358, %v1358
    %v1369 = vmul.f32 %v1359, %v1359
    %v1370 = vsel %vm102, %v1368, 0.0
    %1371 = vadd.xlane.f32.xlu0 %v1370
    %v1372 = vpop.xlane.xlu0 %1371
    %v1373 = vsel %vm102, %v1369, 0.0
    %1374 = vadd.xlane.f32.xlu0 %v1373
    %v1375 = vpop.xlane.xlu0 %1374
    %v1376 = vmul.f32 %v1364, 0.015625
    %v1377 = vmul.f32 %v1367, 0.015625
    %v1378 = vmul.f32 %v1372, 0.015625
    %v1379 = vmul.f32 %v1375, 0.015625
    %v1380 = vmul.f32 %v1376, %v1376
    %v1381 = vmul.f32 %v1377, %v1377
    %v1382 = vsub.f32 %v1378, %v1380
    %v1383 = vsub.f32 %v1379, %v1381
    %v1384 = vsub.f32 %v1358, %v1376
    %v1385 = vsub.f32 %v1359, %v1377
    %v1386 = vadd.f32 %v1382, 1e-05
    %v1387 = vadd.f32 %v1383, 1e-05
    %v1388 = vrsqrt.pop %v1386
    %v1389 = vrsqrt.pop %v1387
    %v1391 = vlaneseq
    %v1392 = vshrl.u32 %v1391, 7
    %v1393 = vsub.s32 0, %v1392
    %v1394 = vrot.slane %v1360, %v1393
    %v1396 = vmul.f32 %v1388, %v1394
    %v1397 = vmul.f32 %v1389, %v1394
    %v1398 = vmul.f32 %v1384, %v1396
    %v1399 = vmul.f32 %v1385, %v1397
    %v1401 = vlaneseq
    %v1402 = vshrl.u32 %v1401, 7
    %v1403 = vsub.s32 0, %v1402
    %v1404 = vrot.slane %v1361, %v1403
    %v1406 = vadd.f32 %v1398, %v1404
    %v1407 = vadd.f32 %v1399, %v1404
    %s1408 = scalar_lea.vmem %s3, 128
    %v1409 = vld [vmem:[%s1408] sm:$0xff]
    %v1410 = vld [vmem:[%s1408 + $0x8] sm:$0xff]
    %v1411 = vld [vmem:[%s1408 + $0x10] sm:$0xff]
    %v1412 = vld [vmem:[%s1408 + $0x18] sm:$0xff]
    %v1413 = vld [vmem:[%s1408 + $0x20] sm:$0xff]
    %v1414 = vld [vmem:[%s1408 + $0x28] sm:$0xff]
    %v1415 = vld [vmem:[%s1408 + $0x30] sm:$0xff]
    %v1416 = vld [vmem:[%s1408 + $0x38] sm:$0xff]
    %v1417 = vld [vmem:[%s1408 + $0x40] sm:$0xff]
    %v1418 = vld [vmem:[%s1408 + $0x48] sm:$0xff]
    %v1419 = vld [vmem:[%s1408 + $0x50] sm:$0xff]
    %v1420 = vld [vmem:[%s1408 + $0x58] sm:$0xff]
    %v1421 = vld [vmem:[%s1408 + $0x60] sm:$0xff]
    %v1422 = vld [vmem:[%s1408 + $0x68] sm:$0xff]
    %v1423 = vld [vmem:[%s1408 + $0x70] sm:$0xff]
    %v1424 = vld [vmem:[%s1408 + $0x78] sm:$0xff]
    %s1425 = scalar_lea.vmem %s4, 2
    %v1426 = vld [vmem:[%s1425] sm:$0x3]
    %v1428 = vlaneseq
    %v1429 = vshrl.u32 %v1428, 7
    %v1430 = vsub.s32 0, %v1429
    %v1431 = vrot.slane %v1426, %v1430
    %v1432 = vlaneseq
    %v1433 = vshrl.u32 %v1432, 7
    %v1434 = vsub.s32 1, %v1433
    %v1435 = vrot.slane %v1426, %v1434
    %v1439 = vsel %vm102, %v1406, 0
    %v1442 = vsel %vm102, %v1407, 0
    %1444 = vmatprep.subr.mxu0 0.0
    %1445 = vmatpush1.msra.mxu0 0.0
    %1446 = vmatprep.subr.mxu0 0.0
    %1447 = vmatpush1.msra.mxu0 0.0
    %1448 = vmatprep.subr.mxu0 0.0
    %1449 = vmatpush1.msra.mxu0 0.0
    %1450 = vmatprep.subr.mxu0 0.0
    %1451 = vmatpush1.msra.mxu0 0.0
    %1452 = vmatprep.subr.mxu0 0.0
    %1453 = vmatpush1.msra.mxu0 0.0
    %1454 = vmatprep.subr.mxu0 0.0
    %1455 = vmatpush1.msra.mxu0 0.0
    %1456 = vmatprep.subr.mxu0 0.0
    %1457 = vmatpush1.msra.mxu0 0.0
    %1458 = vmatprep.subr.mxu0 0.0
    %1459 = vmatpush1.msra.mxu0 0.0
    %1460 = vmatprep.subr.mxu0 %v1424
    %1461 = vmatpush1.msra.mxu0 %v1423
    %1462 = vmatprep.subr.mxu0 %v1422
    %1463 = vmatpush1.msra.mxu0 %v1421
    %1464 = vmatprep.subr.mxu0 %v1420
    %1465 = vmatpush1.msra.mxu0 %v1419
    %1466 = vmatprep.subr.mxu0 %v1418
    %1467 = vmatpush1.msra.mxu0 %v1417
    %1468 = vmatprep.subr.mxu0 %v1416
    %1469 = vmatpush1.msra.mxu0 %v1415
    %1470 = vmatprep.subr.mxu0 %v1414
    %1471 = vmatpush1.msra.mxu0 %v1413
    %1472 = vmatprep.subr.mxu0 %v1412
    %1473 = vmatpush1.msra.mxu0 %v1411
    %1474 = vmatprep.subr.mxu0 %v1410
    %1475 = vmatpush1.msra.mxu0 %v1409
    %1476 = vmatprep.subr.mxu0 0.0
    %1477 = vmatpush2.msra.mxu0 0.0
    %1478 = vmatprep.subr.mxu0 0.0
    %1479 = vmatpush2.msra.mxu0 0.0
    %1480 = vmatprep.subr.mxu0 0.0
    %1481 = vmatpush2.msra.mxu0 0.0
    %1482 = vmatprep.subr.mxu0 0.0
    %1483 = vmatpush2.msra.mxu0 0.0
    %1484 = vmatprep.subr.mxu0 0.0
    %1485 = vmatpush2.msra.mxu0 0.0
    %1486 = vmatprep.subr.mxu0 0.0
    %1487 = vmatpush2.msra.mxu0 0.0
    %1488 = vmatprep.subr.mxu0 0.0
    %1489 = vmatpush2.msra.mxu0 0.0
    %1490 = vmatprep.subr.mxu0 0.0
    %1491 = vmatpush2.msra.mxu0 0.0
    %1492 = vmatprep.subr.mxu0 0.0
    %1493 = vmatpush2.msra.mxu0 0.0
    %1494 = vmatprep.subr.mxu0 0.0
    %1495 = vmatpush2.msra.mxu0 0.0
    %1496 = vmatprep.subr.mxu0 0.0
    %1497 = vmatpush2.msra.mxu0 0.0
    %1498 = vmatprep.subr.mxu0 0.0
    %1499 = vmatpush2.msra.mxu0 0.0
    %1500 = vmatprep.subr.mxu0 0.0
    %1501 = vmatpush2.msra.mxu0 0.0
    %1502 = vmatprep.subr.mxu0 0.0
    %1503 = vmatpush2.msra.mxu0 0.0
    %1504 = vmatprep.subr.mxu0 0.0
    %1505 = vmatpush2.msra.mxu0 0.0
    %1506 = vmatprep.subr.mxu0 0.0
    %1507 = vmatpush2.msra.mxu0 0.0
    %1508 = vmatprep.mubr.f32.mxu0 0.0
    %1509 = vmatmul.mubr.f32.gmra.mxu0 %v1439
    %v1510 = vpop.f32.mrf.mxu0
    %v1511 = vadd.f32 %v1431, %v1510
    %v1512 = vpop.f32.mrf.mxu0
    %v1513 = vadd.f32 %v1435, %v1512
    %1514 = vmatprep.mubr.f32.mxu0 0.0
    %1515 = vmatmul.mubr.f32.gmra.mxu0 %v1442
    %v1516 = vpop.f32.mrf.mxu0
    %v1517 = vadd.f32 %v1431, %v1516
    %v1518 = vpop.f32.mrf.mxu0
    %v1519 = vadd.f32 %v1435, %v1518
    %1520 = vdwg.mxu0
    %1523 = vrot.lane.b32.xlu0 %v1511, 64
    %v1524 = vpop.permute.xlu0 %1523
    %1525 = vrot.lane.b32.xlu0 %v1517, 64
    %v1526 = vpop.permute.xlu0 %1525
    %v1527 = vsel %vm192, %v1511, 0
    %v1529 = vsel %vm192, %v1517, 0
    %v1531 = vsel %vm192, %v1524, 0
    %v1533 = vsel %vm192, %v1526, 0
    %1535 = vmatprep.subr.mxu0 0.0
    %1536 = vmatpush1.xpose.msra.mxu0 0.0
    %1537 = vmatprep.subr.mxu0 0.0
    %1538 = vmatpush1.xpose.msra.mxu0 0.0
    %1539 = vmatprep.subr.mxu0 0.0
    %1540 = vmatpush1.xpose.msra.mxu0 0.0
    %1541 = vmatprep.subr.mxu0 0.0
    %1542 = vmatpush1.xpose.msra.mxu0 0.0
    %1543 = vmatprep.subr.mxu0 0.0
    %1544 = vmatpush1.xpose.msra.mxu0 0.0
    %1545 = vmatprep.subr.mxu0 0.0
    %1546 = vmatpush1.xpose.msra.mxu0 0.0
    %1547 = vmatprep.subr.mxu0 0.0
    %1548 = vmatpush1.xpose.msra.mxu0 0.0
    %1549 = vmatprep.subr.mxu0 0.0
    %1550 = vmatpush1.xpose.msra.mxu0 0.0
    %1551 = vmatprep.subr.mxu0 0.0
    %1552 = vmatpush1.xpose.msra.mxu0 0.0
    %1553 = vmatprep.subr.mxu0 0.0
    %1554 = vmatpush1.xpose.msra.mxu0 0.0
    %1555 = vmatprep.subr.mxu0 0.0
    %1556 = vmatpush1.xpose.msra.mxu0 0.0
    %1557 = vmatprep.subr.mxu0 0.0
    %1558 = vmatpush1.xpose.msra.mxu0 0.0
    %1559 = vmatprep.subr.mxu0 0.0
    %1560 = vmatpush1.xpose.msra.mxu0 0.0
    %1561 = vmatprep.subr.mxu0 0.0
    %1562 = vmatpush1.xpose.msra.mxu0 0.0
    %1563 = vmatprep.subr.mxu0 0.0
    %1564 = vmatpush1.xpose.msra.mxu0 %v1533
    %1565 = vmatprep.subr.mxu0 0.0
    %1566 = vmatpush1.xpose.msra.mxu0 %v1531
    %1567 = vmatprep.subr.mxu0 0.0
    %1568 = vmatpush2.xpose.msra.mxu0 0.0
    %1569 = vmatprep.subr.mxu0 0.0
    %1570 = vmatpush2.xpose.msra.mxu0 0.0
    %1571 = vmatprep.subr.mxu0 0.0
    %1572 = vmatpush2.xpose.msra.mxu0 0.0
    %1573 = vmatprep.subr.mxu0 0.0
    %1574 = vmatpush2.xpose.msra.mxu0 0.0
    %1575 = vmatprep.subr.mxu0 0.0
    %1576 = vmatpush2.xpose.msra.mxu0 0.0
    %1577 = vmatprep.subr.mxu0 0.0
    %1578 = vmatpush2.xpose.msra.mxu0 0.0
    %1579 = vmatprep.subr.mxu0 0.0
    %1580 = vmatpush2.xpose.msra.mxu0 0.0
    %1581 = vmatprep.subr.mxu0 0.0
    %1582 = vmatpush2.xpose.msra.mxu0 0.0
    %1583 = vmatprep.subr.mxu0 0.0
    %1584 = vmatpush2.xpose.msra.mxu0 0.0
    %1585 = vmatprep.subr.mxu0 0.0
    %1586 = vmatpush2.xpose.msra.mxu0 0.0
    %1587 = vmatprep.subr.mxu0 0.0
    %1588 = vmatpush2.xpose.msra.mxu0 0.0
    %1589 = vmatprep.subr.mxu0 0.0
    %1590 = vmatpush2.xpose.msra.mxu0 0.0
    %1591 = vmatprep.subr.mxu0 0.0
    %1592 = vmatpush2.xpose.msra.mxu0 0.0
    %1593 = vmatprep.subr.mxu0 0.0
    %1594 = vmatpush2.xpose.msra.mxu0 0.0
    %1595 = vmatprep.subr.mxu0 0.0
    %1596 = vmatpush2.xpose.msra.mxu0 0.0
    %1597 = vmatprep.subr.mxu0 0.0
    %1598 = vmatpush2.xpose.msra.mxu0 0.0
    %1599 = vmatprep.mubr.f32.mxu0 0.0
    %1600 = vmatmul.mubr.f32.gmra.mxu0 %v1527
    %v1601 = vpop.f32.mrf.mxu0
    %v1602 = vadd.f32 %v72, %v1601
    %v1603 = vpop.f32.mrf.mxu0
    %1604 = vmatprep.mubr.f32.mxu0 0.0
    %1605 = vmatmul.mubr.f32.gmra.mxu0 %v1529
    %v1606 = vpop.f32.mrf.mxu0
    %v1607 = vadd.f32 %v73, %v1606
    %v1608 = vpop.f32.mrf.mxu0
    %1609 = vdwg.mxu0
    %v1610 = vsel %vm192, %v1602, -inf
    %1611 = vmax.xlane.f32.xlu0 %v1610
    %v1612 = vpop.xlane.xlu0 %1611
    %v1613 = vsel %vm192, %v1607, -inf
    %1614 = vmax.xlane.f32.xlu0 %v1613
    %v1615 = vpop.xlane.xlu0 %1614
    %v1616 = vsub.f32 %v1602, %v1612
    %v1617 = vsub.f32 %v1607, %v1615
    %v1618 = vmul.f32 %v1616, 1.442695
    %v1619 = vpow.pop %v1618
    %v1620 = vmul.f32 %v1617, 1.442695
    %v1621 = vpow.pop %v1620
    %v1622 = vsel %vm192, %v1619, 0.0
    %1623 = vadd.xlane.f32.xlu0 %v1622
    %v1624 = vpop.xlane.xlu0 %1623
    %v1625 = vsel %vm192, %v1621, 0.0
    %1626 = vadd.xlane.f32.xlu0 %v1625
    %v1627 = vpop.xlane.xlu0 %1626
    %v1628 = vrcp.pop %v1624
    %v1629 = vrcp.pop %v1627
    %v1630 = vmul.f32 %v1619, %v1628
    %v1631 = vmul.f32 %v1621, %v1629
    %v1633 = vsel %vm192, %v1630, 0
    %v1636 = vsel %vm192, %v1631, 0
    %1638 = vmatprep.subr.mxu0 0.0
    %1639 = vmatpush1.msra.mxu0 0.0
    %1640 = vmatprep.subr.mxu0 0.0
    %1641 = vmatpush1.msra.mxu0 0.0
    %1642 = vmatprep.subr.mxu0 0.0
    %1643 = vmatpush1.msra.mxu0 0.0
    %1644 = vmatprep.subr.mxu0 0.0
    %1645 = vmatpush1.msra.mxu0 0.0
    %1646 = vmatprep.subr.mxu0 0.0
    %1647 = vmatpush1.msra.mxu0 0.0
    %1648 = vmatprep.subr.mxu0 0.0
    %1649 = vmatpush1.msra.mxu0 0.0
    %1650 = vmatprep.subr.mxu0 0.0
    %1651 = vmatpush1.msra.mxu0 0.0
    %1652 = vmatprep.subr.mxu0 0.0
    %1653 = vmatpush1.msra.mxu0 0.0
    %1654 = vmatprep.subr.mxu0 0.0
    %1655 = vmatpush1.msra.mxu0 0.0
    %1656 = vmatprep.subr.mxu0 0.0
    %1657 = vmatpush1.msra.mxu0 0.0
    %1658 = vmatprep.subr.mxu0 0.0
    %1659 = vmatpush1.msra.mxu0 0.0
    %1660 = vmatprep.subr.mxu0 0.0
    %1661 = vmatpush1.msra.mxu0 0.0
    %1662 = vmatprep.subr.mxu0 0.0
    %1663 = vmatpush1.msra.mxu0 0.0
    %1664 = vmatprep.subr.mxu0 0.0
    %1665 = vmatpush1.msra.mxu0 0.0
    %1666 = vmatprep.subr.mxu0 0.0
    %1667 = vmatpush1.msra.mxu0 %v1519
    %1668 = vmatprep.subr.mxu0 0.0
    %1669 = vmatpush1.msra.mxu0 %v1513
    %1670 = vmatprep.subr.mxu0 0.0
    %1671 = vmatpush2.msra.mxu0 0.0
    %1672 = vmatprep.subr.mxu0 0.0
    %1673 = vmatpush2.msra.mxu0 0.0
    %1674 = vmatprep.subr.mxu0 0.0
    %1675 = vmatpush2.msra.mxu0 0.0
    %1676 = vmatprep.subr.mxu0 0.0
    %1677 = vmatpush2.msra.mxu0 0.0
    %1678 = vmatprep.subr.mxu0 0.0
    %1679 = vmatpush2.msra.mxu0 0.0
    %1680 = vmatprep.subr.mxu0 0.0
    %1681 = vmatpush2.msra.mxu0 0.0
    %1682 = vmatprep.subr.mxu0 0.0
    %1683 = vmatpush2.msra.mxu0 0.0
    %1684 = vmatprep.subr.mxu0 0.0
    %1685 = vmatpush2.msra.mxu0 0.0
    %1686 = vmatprep.subr.mxu0 0.0
    %1687 = vmatpush2.msra.mxu0 0.0
    %1688 = vmatprep.subr.mxu0 0.0
    %1689 = vmatpush2.msra.mxu0 0.0
    %1690 = vmatprep.subr.mxu0 0.0
    %1691 = vmatpush2.msra.mxu0 0.0
    %1692 = vmatprep.subr.mxu0 0.0
    %1693 = vmatpush2.msra.mxu0 0.0
    %1694 = vmatprep.subr.mxu0 0.0
    %1695 = vmatpush2.msra.mxu0 0.0
    %1696 = vmatprep.subr.mxu0 0.0
    %1697 = vmatpush2.msra.mxu0 0.0
    %1698 = vmatprep.subr.mxu0 0.0
    %1699 = vmatpush2.msra.mxu0 0.0
    %1700 = vmatprep.subr.mxu0 0.0
    %1701 = vmatpush2.msra.mxu0 0.0
    %1702 = vmatprep.mubr.f32.mxu0 0.0
    %1703 = vmatmul.mubr.f32.gmra.mxu0 %v1633
    %v1704 = vpop.f32.mrf.mxu0
    %v1705 = vadd.f32 0.0, %v1704
    %v1706 = vpop.f32.mrf.mxu0
    %1707 = vmatprep.mubr.f32.mxu0 0.0
    %1708 = vmatmul.mubr.f32.gmra.mxu0 %v1636
    %v1709 = vpop.f32.mrf.mxu0
    %v1710 = vadd.f32 0.0, %v1709
    %v1711 = vpop.f32.mrf.mxu0
    %1712 = vdwg.mxu0
    %1713 = vst.msk [vmem:[#allocation2] sm:$0xff] %vm192, %v1705
    %1714 = vst.msk [vmem:[#allocation2 + $0x8] sm:$0xff] %vm192, %v1710
    %1715 = vrot.lane.b32.xlu0 %v1511, 112
    %v1716 = vpop.permute.xlu0 %1715
    %1717 = vrot.lane.b32.xlu0 %v1517, 112
    %v1718 = vpop.permute.xlu0 %1717
    %1719 = vrot.lane.b32.xlu0 %v1511, 48
    %v1720 = vpop.permute.xlu0 %1719
    %1721 = vrot.lane.b32.xlu0 %v1517, 48
    %v1722 = vpop.permute.xlu0 %1721
    %v1723 = vsel %vm192, %v1716, 0
    %v1725 = vsel %vm192, %v1718, 0
    %v1727 = vsel %vm192, %v1720, 0
    %v1729 = vsel %vm192, %v1722, 0
    %1731 = vmatprep.subr.mxu0 0.0
    %1732 = vmatpush1.xpose.msra.mxu0 0.0
    %1733 = vmatprep.subr.mxu0 0.0
    %1734 = vmatpush1.xpose.msra.mxu0 0.0
    %1735 = vmatprep.subr.mxu0 0.0
    %1736 = vmatpush1.xpose.msra.mxu0 0.0
    %1737 = vmatprep.subr.mxu0 0.0
    %1738 = vmatpush1.xpose.msra.mxu0 0.0
    %1739 = vmatprep.subr.mxu0 0.0
    %1740 = vmatpush1.xpose.msra.mxu0 0.0
    %1741 = vmatprep.subr.mxu0 0.0
    %1742 = vmatpush1.xpose.msra.mxu0 0.0
    %1743 = vmatprep.subr.mxu0 0.0
    %1744 = vmatpush1.xpose.msra.mxu0 0.0
    %1745 = vmatprep.subr.mxu0 0.0
    %1746 = vmatpush1.xpose.msra.mxu0 0.0
    %1747 = vmatprep.subr.mxu0 0.0
    %1748 = vmatpush1.xpose.msra.mxu0 0.0
    %1749 = vmatprep.subr.mxu0 0.0
    %1750 = vmatpush1.xpose.msra.mxu0 0.0
    %1751 = vmatprep.subr.mxu0 0.0
    %1752 = vmatpush1.xpose.msra.mxu0 0.0
    %1753 = vmatprep.subr.mxu0 0.0
    %1754 = vmatpush1.xpose.msra.mxu0 0.0
    %1755 = vmatprep.subr.mxu0 0.0
    %1756 = vmatpush1.xpose.msra.mxu0 0.0
    %1757 = vmatprep.subr.mxu0 0.0
    %1758 = vmatpush1.xpose.msra.mxu0 0.0
    %1759 = vmatprep.subr.mxu0 0.0
    %1760 = vmatpush1.xpose.msra.mxu0 %v1729
    %1761 = vmatprep.subr.mxu0 0.0
    %1762 = vmatpush1.xpose.msra.mxu0 %v1727
    %1763 = vmatprep.subr.mxu0 0.0
    %1764 = vmatpush2.xpose.msra.mxu0 0.0
    %1765 = vmatprep.subr.mxu0 0.0
    %1766 = vmatpush2.xpose.msra.mxu0 0.0
    %1767 = vmatprep.subr.mxu0 0.0
    %1768 = vmatpush2.xpose.msra.mxu0 0.0
    %1769 = vmatprep.subr.mxu0 0.0
    %1770 = vmatpush2.xpose.msra.mxu0 0.0
    %1771 = vmatprep.subr.mxu0 0.0
    %1772 = vmatpush2.xpose.msra.mxu0 0.0
    %1773 = vmatprep.subr.mxu0 0.0
    %1774 = vmatpush2.xpose.msra.mxu0 0.0
    %1775 = vmatprep.subr.mxu0 0.0
    %1776 = vmatpush2.xpose.msra.mxu0 0.0
    %1777 = vmatprep.subr.mxu0 0.0
    %1778 = vmatpush2.xpose.msra.mxu0 0.0
    %1779 = vmatprep.subr.mxu0 0.0
    %1780 = vmatpush2.xpose.msra.mxu0 0.0
    %1781 = vmatprep.subr.mxu0 0.0
    %1782 = vmatpush2.xpose.msra.mxu0 0.0
    %1783 = vmatprep.subr.mxu0 0.0
    %1784 = vmatpush2.xpose.msra.mxu0 0.0
    %1785 = vmatprep.subr.mxu0 0.0
    %1786 = vmatpush2.xpose.msra.mxu0 0.0
    %1787 = vmatprep.subr.mxu0 0.0
    %1788 = vmatpush2.xpose.msra.mxu0 0.0
    %1789 = vmatprep.subr.mxu0 0.0
    %1790 = vmatpush2.xpose.msra.mxu0 0.0
    %1791 = vmatprep.subr.mxu0 0.0
    %1792 = vmatpush2.xpose.msra.mxu0 0.0
    %1793 = vmatprep.subr.mxu0 0.0
    %1794 = vmatpush2.xpose.msra.mxu0 0.0
    %1795 = vmatprep.mubr.f32.mxu0 0.0
    %1796 = vmatmul.mubr.f32.gmra.mxu0 %v1723
    %v1797 = vpop.f32.mrf.mxu0
    %v1798 = vadd.f32 %v72, %v1797
    %v1799 = vpop.f32.mrf.mxu0
    %1800 = vmatprep.mubr.f32.mxu0 0.0
    %1801 = vmatmul.mubr.f32.gmra.mxu0 %v1725
    %v1802 = vpop.f32.mrf.mxu0
    %v1803 = vadd.f32 %v73, %v1802
    %v1804 = vpop.f32.mrf.mxu0
    %1805 = vdwg.mxu0
    %v1806 = vsel %vm192, %v1798, -inf
    %1807 = vmax.xlane.f32.xlu0 %v1806
    %v1808 = vpop.xlane.xlu0 %1807
    %v1809 = vsel %vm192, %v1803, -inf
    %1810 = vmax.xlane.f32.xlu0 %v1809
    %v1811 = vpop.xlane.xlu0 %1810
    %v1812 = vsub.f32 %v1798, %v1808
    %v1813 = vsub.f32 %v1803, %v1811
    %v1814 = vmul.f32 %v1812, 1.442695
    %v1815 = vpow.pop %v1814
    %v1816 = vmul.f32 %v1813, 1.442695
    %v1817 = vpow.pop %v1816
    %v1818 = vsel %vm192, %v1815, 0.0
    %1819 = vadd.xlane.f32.xlu0 %v1818
    %v1820 = vpop.xlane.xlu0 %1819
    %v1821 = vsel %vm192, %v1817, 0.0
    %1822 = vadd.xlane.f32.xlu0 %v1821
    %v1823 = vpop.xlane.xlu0 %1822
    %v1824 = vrcp.pop %v1820
    %v1825 = vrcp.pop %v1823
    %v1826 = vmul.f32 %v1815, %v1824
    %v1827 = vmul.f32 %v1817, %v1825
    %1830 = vrot.lane.b32.xlu0 %v1513, 112
    %v1831 = vpop.permute.xlu0 %1830
    %1832 = vrot.lane.b32.xlu0 %v1519, 112
    %v1833 = vpop.permute.xlu0 %1832
    %v1837 = vsel %vm192, %v1826, 0
    %v1840 = vsel %vm192, %v1827, 0
    %1842 = vmatprep.subr.mxu0 0.0
    %1843 = vmatpush1.msra.mxu0 0.0
    %1844 = vmatprep.subr.mxu0 0.0
    %1845 = vmatpush1.msra.mxu0 0.0
    %1846 = vmatprep.subr.mxu0 0.0
    %1847 = vmatpush1.msra.mxu0 0.0
    %1848 = vmatprep.subr.mxu0 0.0
    %1849 = vmatpush1.msra.mxu0 0.0
    %1850 = vmatprep.subr.mxu0 0.0
    %1851 = vmatpush1.msra.mxu0 0.0
    %1852 = vmatprep.subr.mxu0 0.0
    %1853 = vmatpush1.msra.mxu0 0.0
    %1854 = vmatprep.subr.mxu0 0.0
    %1855 = vmatpush1.msra.mxu0 0.0
    %1856 = vmatprep.subr.mxu0 0.0
    %1857 = vmatpush1.msra.mxu0 0.0
    %1858 = vmatprep.subr.mxu0 0.0
    %1859 = vmatpush1.msra.mxu0 0.0
    %1860 = vmatprep.subr.mxu0 0.0
    %1861 = vmatpush1.msra.mxu0 0.0
    %1862 = vmatprep.subr.mxu0 0.0
    %1863 = vmatpush1.msra.mxu0 0.0
    %1864 = vmatprep.subr.mxu0 0.0
    %1865 = vmatpush1.msra.mxu0 0.0
    %1866 = vmatprep.subr.mxu0 0.0
    %1867 = vmatpush1.msra.mxu0 0.0
    %1868 = vmatprep.subr.mxu0 0.0
    %1869 = vmatpush1.msra.mxu0 0.0
    %1870 = vmatprep.subr.mxu0 0.0
    %1871 = vmatpush1.msra.mxu0 %v1833
    %1872 = vmatprep.subr.mxu0 0.0
    %1873 = vmatpush1.msra.mxu0 %v1831
    %1874 = vmatprep.subr.mxu0 0.0
    %1875 = vmatpush2.msra.mxu0 0.0
    %1876 = vmatprep.subr.mxu0 0.0
    %1877 = vmatpush2.msra.mxu0 0.0
    %1878 = vmatprep.subr.mxu0 0.0
    %1879 = vmatpush2.msra.mxu0 0.0
    %1880 = vmatprep.subr.mxu0 0.0
    %1881 = vmatpush2.msra.mxu0 0.0
    %1882 = vmatprep.subr.mxu0 0.0
    %1883 = vmatpush2.msra.mxu0 0.0
    %1884 = vmatprep.subr.mxu0 0.0
    %1885 = vmatpush2.msra.mxu0 0.0
    %1886 = vmatprep.subr.mxu0 0.0
    %1887 = vmatpush2.msra.mxu0 0.0
    %1888 = vmatprep.subr.mxu0 0.0
    %1889 = vmatpush2.msra.mxu0 0.0
    %1890 = vmatprep.subr.mxu0 0.0
    %1891 = vmatpush2.msra.mxu0 0.0
    %1892 = vmatprep.subr.mxu0 0.0
    %1893 = vmatpush2.msra.mxu0 0.0
    %1894 = vmatprep.subr.mxu0 0.0
    %1895 = vmatpush2.msra.mxu0 0.0
    %1896 = vmatprep.subr.mxu0 0.0
    %1897 = vmatpush2.msra.mxu0 0.0
    %1898 = vmatprep.subr.mxu0 0.0
    %1899 = vmatpush2.msra.mxu0 0.0
    %1900 = vmatprep.subr.mxu0 0.0
    %1901 = vmatpush2.msra.mxu0 0.0
    %1902 = vmatprep.subr.mxu0 0.0
    %1903 = vmatpush2.msra.mxu0 0.0
    %1904 = vmatprep.subr.mxu0 0.0
    %1905 = vmatpush2.msra.mxu0 0.0
    %1906 = vmatprep.mubr.f32.mxu0 0.0
    %1907 = vmatmul.mubr.f32.gmra.mxu0 %v1837
    %v1908 = vpop.f32.mrf.mxu0
    %v1909 = vadd.f32 0.0, %v1908
    %v1910 = vpop.f32.mrf.mxu0
    %1911 = vmatprep.mubr.f32.mxu0 0.0
    %1912 = vmatmul.mubr.f32.gmra.mxu0 %v1840
    %v1913 = vpop.f32.mrf.mxu0
    %v1914 = vadd.f32 0.0, %v1913
    %v1915 = vpop.f32.mrf.mxu0
    %1916 = vdwg.mxu0
    %1919 = vrot.lane.b32.xlu0 %v1909, 16
    %v1920 = vpop.permute.xlu0 %1919
    %1921 = vrot.lane.b32.xlu0 %v1914, 16
    %v1922 = vpop.permute.xlu0 %1921
    %1925 = vst.msk [vmem:[#allocation2] sm:$0xff] %vm591, %v1920
    %1926 = vst.msk [vmem:[#allocation2 + $0x8] sm:$0xff] %vm591, %v1922
    %1927 = vrot.lane.b32.xlu0 %v1511, 96
    %v1928 = vpop.permute.xlu0 %1927
    %1929 = vrot.lane.b32.xlu0 %v1517, 96
    %v1930 = vpop.permute.xlu0 %1929
    %1931 = vrot.lane.b32.xlu0 %v1511, 32
    %v1932 = vpop.permute.xlu0 %1931
    %1933 = vrot.lane.b32.xlu0 %v1517, 32
    %v1934 = vpop.permute.xlu0 %1933
    %v1935 = vsel %vm192, %v1928, 0
    %v1937 = vsel %vm192, %v1930, 0
    %v1939 = vsel %vm192, %v1932, 0
    %v1941 = vsel %vm192, %v1934, 0
    %1943 = vmatprep.subr.mxu0 0.0
    %1944 = vmatpush1.xpose.msra.mxu0 0.0
    %1945 = vmatprep.subr.mxu0 0.0
    %1946 = vmatpush1.xpose.msra.mxu0 0.0
    %1947 = vmatprep.subr.mxu0 0.0
    %1948 = vmatpush1.xpose.msra.mxu0 0.0
    %1949 = vmatprep.subr.mxu0 0.0
    %1950 = vmatpush1.xpose.msra.mxu0 0.0
    %1951 = vmatprep.subr.mxu0 0.0
    %1952 = vmatpush1.xpose.msra.mxu0 0.0
    %1953 = vmatprep.subr.mxu0 0.0
    %1954 = vmatpush1.xpose.msra.mxu0 0.0
    %1955 = vmatprep.subr.mxu0 0.0
    %1956 = vmatpush1.xpose.msra.mxu0 0.0
    %1957 = vmatprep.subr.mxu0 0.0
    %1958 = vmatpush1.xpose.msra.mxu0 0.0
    %1959 = vmatprep.subr.mxu0 0.0
    %1960 = vmatpush1.xpose.msra.mxu0 0.0
    %1961 = vmatprep.subr.mxu0 0.0
    %1962 = vmatpush1.xpose.msra.mxu0 0.0
    %1963 = vmatprep.subr.mxu0 0.0
    %1964 = vmatpush1.xpose.msra.mxu0 0.0
    %1965 = vmatprep.subr.mxu0 0.0
    %1966 = vmatpush1.xpose.msra.mxu0 0.0
    %1967 = vmatprep.subr.mxu0 0.0
    %1968 = vmatpush1.xpose.msra.mxu0 0.0
    %1969 = vmatprep.subr.mxu0 0.0
    %1970 = vmatpush1.xpose.msra.mxu0 0.0
    %1971 = vmatprep.subr.mxu0 0.0
    %1972 = vmatpush1.xpose.msra.mxu0 %v1941
    %1973 = vmatprep.subr.mxu0 0.0
    %1974 = vmatpush1.xpose.msra.mxu0 %v1939
    %1975 = vmatprep.subr.mxu0 0.0
    %1976 = vmatpush2.xpose.msra.mxu0 0.0
    %1977 = vmatprep.subr.mxu0 0.0
    %1978 = vmatpush2.xpose.msra.mxu0 0.0
    %1979 = vmatprep.subr.mxu0 0.0
    %1980 = vmatpush2.xpose.msra.mxu0 0.0
    %1981 = vmatprep.subr.mxu0 0.0
    %1982 = vmatpush2.xpose.msra.mxu0 0.0
    %1983 = vmatprep.subr.mxu0 0.0
    %1984 = vmatpush2.xpose.msra.mxu0 0.0
    %1985 = vmatprep.subr.mxu0 0.0
    %1986 = vmatpush2.xpose.msra.mxu0 0.0
    %1987 = vmatprep.subr.mxu0 0.0
    %1988 = vmatpush2.xpose.msra.mxu0 0.0
    %1989 = vmatprep.subr.mxu0 0.0
    %1990 = vmatpush2.xpose.msra.mxu0 0.0
    %1991 = vmatprep.subr.mxu0 0.0
    %1992 = vmatpush2.xpose.msra.mxu0 0.0
    %1993 = vmatprep.subr.mxu0 0.0
    %1994 = vmatpush2.xpose.msra.mxu0 0.0
    %1995 = vmatprep.subr.mxu0 0.0
    %1996 = vmatpush2.xpose.msra.mxu0 0.0
    %1997 = vmatprep.subr.mxu0 0.0
    %1998 = vmatpush2.xpose.msra.mxu0 0.0
    %1999 = vmatprep.subr.mxu0 0.0
    %2000 = vmatpush2.xpose.msra.mxu0 0.0
    %2001 = vmatprep.subr.mxu0 0.0
    %2002 = vmatpush2.xpose.msra.mxu0 0.0
    %2003 = vmatprep.subr.mxu0 0.0
    %2004 = vmatpush2.xpose.msra.mxu0 0.0
    %2005 = vmatprep.subr.mxu0 0.0
    %2006 = vmatpush2.xpose.msra.mxu0 0.0
    %2007 = vmatprep.mubr.f32.mxu0 0.0
    %2008 = vmatmul.mubr.f32.gmra.mxu0 %v1935
    %v2009 = vpop.f32.mrf.mxu0
    %v2010 = vadd.f32 %v72, %v2009
    %v2011 = vpop.f32.mrf.mxu0
    %2012 = vmatprep.mubr.f32.mxu0 0.0
    %2013 = vmatmul.mubr.f32.gmra.mxu0 %v1937
    %v2014 = vpop.f32.mrf.mxu0
    %v2015 = vadd.f32 %v73, %v2014
    %v2016 = vpop.f32.mrf.mxu0
    %2017 = vdwg.mxu0
    %v2018 = vsel %vm192, %v2010, -inf
    %2019 = vmax.xlane.f32.xlu0 %v2018
    %v2020 = vpop.xlane.xlu0 %2019
    %v2021 = vsel %vm192, %v2015, -inf
    %2022 = vmax.xlane.f32.xlu0 %v2021
    %v2023 = vpop.xlane.xlu0 %2022
    %v2024 = vsub.f32 %v2010, %v2020
    %v2025 = vsub.f32 %v2015, %v2023
    %v2026 = vmul.f32 %v2024, 1.442695
    %v2027 = vpow.pop %v2026
    %v2028 = vmul.f32 %v2025, 1.442695
    %v2029 = vpow.pop %v2028
    %v2030 = vsel %vm192, %v2027, 0.0
    %2031 = vadd.xlane.f32.xlu0 %v2030
    %v2032 = vpop.xlane.xlu0 %2031
    %v2033 = vsel %vm192, %v2029, 0.0
    %2034 = vadd.xlane.f32.xlu0 %v2033
    %v2035 = vpop.xlane.xlu0 %2034
    %v2036 = vrcp.pop %v2032
    %v2037 = vrcp.pop %v2035
    %v2038 = vmul.f32 %v2027, %v2036
    %v2039 = vmul.f32 %v2029, %v2037
    %2040 = vrot.lane.b32.xlu0 %v1513, 96
    %v2041 = vpop.permute.xlu0 %2040
    %2042 = vrot.lane.b32.xlu0 %v1519, 96
    %v2043 = vpop.permute.xlu0 %2042
    %v2047 = vsel %vm192, %v2038, 0
    %v2050 = vsel %vm192, %v2039, 0
    %2052 = vmatprep.subr.mxu0 0.0
    %2053 = vmatpush1.msra.mxu0 0.0
    %2054 = vmatprep.subr.mxu0 0.0
    %2055 = vmatpush1.msra.mxu0 0.0
    %2056 = vmatprep.subr.mxu0 0.0
    %2057 = vmatpush1.msra.mxu0 0.0
    %2058 = vmatprep.subr.mxu0 0.0
    %2059 = vmatpush1.msra.mxu0 0.0
    %2060 = vmatprep.subr.mxu0 0.0
    %2061 = vmatpush1.msra.mxu0 0.0
    %2062 = vmatprep.subr.mxu0 0.0
    %2063 = vmatpush1.msra.mxu0 0.0
    %2064 = vmatprep.subr.mxu0 0.0
    %2065 = vmatpush1.msra.mxu0 0.0
    %2066 = vmatprep.subr.mxu0 0.0
    %2067 = vmatpush1.msra.mxu0 0.0
    %2068 = vmatprep.subr.mxu0 0.0
    %2069 = vmatpush1.msra.mxu0 0.0
    %2070 = vmatprep.subr.mxu0 0.0
    %2071 = vmatpush1.msra.mxu0 0.0
    %2072 = vmatprep.subr.mxu0 0.0
    %2073 = vmatpush1.msra.mxu0 0.0
    %2074 = vmatprep.subr.mxu0 0.0
    %2075 = vmatpush1.msra.mxu0 0.0
    %2076 = vmatprep.subr.mxu0 0.0
    %2077 = vmatpush1.msra.mxu0 0.0
    %2078 = vmatprep.subr.mxu0 0.0
    %2079 = vmatpush1.msra.mxu0 0.0
    %2080 = vmatprep.subr.mxu0 0.0
    %2081 = vmatpush1.msra.mxu0 %v2043
    %2082 = vmatprep.subr.mxu0 0.0
    %2083 = vmatpush1.msra.mxu0 %v2041
    %2084 = vmatprep.subr.mxu0 0.0
    %2085 = vmatpush2.msra.mxu0 0.0
    %2086 = vmatprep.subr.mxu0 0.0
    %2087 = vmatpush2.msra.mxu0 0.0
    %2088 = vmatprep.subr.mxu0 0.0
    %2089 = vmatpush2.msra.mxu0 0.0
    %2090 = vmatprep.subr.mxu0 0.0
    %2091 = vmatpush2.msra.mxu0 0.0
    %2092 = vmatprep.subr.mxu0 0.0
    %2093 = vmatpush2.msra.mxu0 0.0
    %2094 = vmatprep.subr.mxu0 0.0
    %2095 = vmatpush2.msra.mxu0 0.0
    %2096 = vmatprep.subr.mxu0 0.0
    %2097 = vmatpush2.msra.mxu0 0.0
    %2098 = vmatprep.subr.mxu0 0.0
    %2099 = vmatpush2.msra.mxu0 0.0
    %2100 = vmatprep.subr.mxu0 0.0
    %2101 = vmatpush2.msra.mxu0 0.0
    %2102 = vmatprep.subr.mxu0 0.0
    %2103 = vmatpush2.msra.mxu0 0.0
    %2104 = vmatprep.subr.mxu0 0.0
    %2105 = vmatpush2.msra.mxu0 0.0
    %2106 = vmatprep.subr.mxu0 0.0
    %2107 = vmatpush2.msra.mxu0 0.0
    %2108 = vmatprep.subr.mxu0 0.0
    %2109 = vmatpush2.msra.mxu0 0.0
    %2110 = vmatprep.subr.mxu0 0.0
    %2111 = vmatpush2.msra.mxu0 0.0
    %2112 = vmatprep.subr.mxu0 0.0
    %2113 = vmatpush2.msra.mxu0 0.0
    %2114 = vmatprep.subr.mxu0 0.0
    %2115 = vmatpush2.msra.mxu0 0.0
    %2116 = vmatprep.mubr.f32.mxu0 0.0
    %2117 = vmatmul.mubr.f32.gmra.mxu0 %v2047
    %v2118 = vpop.f32.mrf.mxu0
    %v2119 = vadd.f32 0.0, %v2118
    %v2120 = vpop.f32.mrf.mxu0
    %2121 = vmatprep.mubr.f32.mxu0 0.0
    %2122 = vmatmul.mubr.f32.gmra.mxu0 %v2050
    %v2123 = vpop.f32.mrf.mxu0
    %v2124 = vadd.f32 0.0, %v2123
    %v2125 = vpop.f32.mrf.mxu0
    %2126 = vdwg.mxu0
    %2129 = vrot.lane.b32.xlu0 %v2119, 32
    %v2130 = vpop.permute.xlu0 %2129
    %2131 = vrot.lane.b32.xlu0 %v2124, 32
    %v2132 = vpop.permute.xlu0 %2131
    %2135 = vst.msk [vmem:[#allocation2] sm:$0xff] %vm802, %v2130
    %2136 = vst.msk [vmem:[#allocation2 + $0x8] sm:$0xff] %vm802, %v2132
    %2137 = vrot.lane.b32.xlu0 %v1511, 80
    %v2138 = vpop.permute.xlu0 %2137
    %2139 = vrot.lane.b32.xlu0 %v1517, 80
    %v2140 = vpop.permute.xlu0 %2139
    %2141 = vrot.lane.b32.xlu0 %v1511, 16
    %v2142 = vpop.permute.xlu0 %2141
    %2143 = vrot.lane.b32.xlu0 %v1517, 16
    %v2144 = vpop.permute.xlu0 %2143
    %v2145 = vsel %vm192, %v2138, 0
    %v2147 = vsel %vm192, %v2140, 0
    %v2149 = vsel %vm192, %v2142, 0
    %v2151 = vsel %vm192, %v2144, 0
    %2153 = vmatprep.subr.mxu0 0.0
    %2154 = vmatpush1.xpose.msra.mxu0 0.0
    %2155 = vmatprep.subr.mxu0 0.0
    %2156 = vmatpush1.xpose.msra.mxu0 0.0
    %2157 = vmatprep.subr.mxu0 0.0
    %2158 = vmatpush1.xpose.msra.mxu0 0.0
    %2159 = vmatprep.subr.mxu0 0.0
    %2160 = vmatpush1.xpose.msra.mxu0 0.0
    %2161 = vmatprep.subr.mxu0 0.0
    %2162 = vmatpush1.xpose.msra.mxu0 0.0
    %2163 = vmatprep.subr.mxu0 0.0
    %2164 = vmatpush1.xpose.msra.mxu0 0.0
    %2165 = vmatprep.subr.mxu0 0.0
    %2166 = vmatpush1.xpose.msra.mxu0 0.0
    %2167 = vmatprep.subr.mxu0 0.0
    %2168 = vmatpush1.xpose.msra.mxu0 0.0
    %2169 = vmatprep.subr.mxu0 0.0
    %2170 = vmatpush1.xpose.msra.mxu0 0.0
    %2171 = vmatprep.subr.mxu0 0.0
    %2172 = vmatpush1.xpose.msra.mxu0 0.0
    %2173 = vmatprep.subr.mxu0 0.0
    %2174 = vmatpush1.xpose.msra.mxu0 0.0
    %2175 = vmatprep.subr.mxu0 0.0
    %2176 = vmatpush1.xpose.msra.mxu0 0.0
    %2177 = vmatprep.subr.mxu0 0.0
    %2178 = vmatpush1.xpose.msra.mxu0 0.0
    %2179 = vmatprep.subr.mxu0 0.0
    %2180 = vmatpush1.xpose.msra.mxu0 0.0
    %2181 = vmatprep.subr.mxu0 0.0
    %2182 = vmatpush1.xpose.msra.mxu0 %v2151
    %2183 = vmatprep.subr.mxu0 0.0
    %2184 = vmatpush1.xpose.msra.mxu0 %v2149
    %2185 = vmatprep.subr.mxu0 0.0
    %2186 = vmatpush2.xpose.msra.mxu0 0.0
    %2187 = vmatprep.subr.mxu0 0.0
    %2188 = vmatpush2.xpose.msra.mxu0 0.0
    %2189 = vmatprep.subr.mxu0 0.0
    %2190 = vmatpush2.xpose.msra.mxu0 0.0
    %2191 = vmatprep.subr.mxu0 0.0
    %2192 = vmatpush2.xpose.msra.mxu0 0.0
    %2193 = vmatprep.subr.mxu0 0.0
    %2194 = vmatpush2.xpose.msra.mxu0 0.0
    %2195 = vmatprep.subr.mxu0 0.0
    %2196 = vmatpush2.xpose.msra.mxu0 0.0
    %2197 = vmatprep.subr.mxu0 0.0
    %2198 = vmatpush2.xpose.msra.mxu0 0.0
    %2199 = vmatprep.subr.mxu0 0.0
    %2200 = vmatpush2.xpose.msra.mxu0 0.0
    %2201 = vmatprep.subr.mxu0 0.0
    %2202 = vmatpush2.xpose.msra.mxu0 0.0
    %2203 = vmatprep.subr.mxu0 0.0
    %2204 = vmatpush2.xpose.msra.mxu0 0.0
    %2205 = vmatprep.subr.mxu0 0.0
    %2206 = vmatpush2.xpose.msra.mxu0 0.0
    %2207 = vmatprep.subr.mxu0 0.0
    %2208 = vmatpush2.xpose.msra.mxu0 0.0
    %2209 = vmatprep.subr.mxu0 0.0
    %2210 = vmatpush2.xpose.msra.mxu0 0.0
    %2211 = vmatprep.subr.mxu0 0.0
    %2212 = vmatpush2.xpose.msra.mxu0 0.0
    %2213 = vmatprep.subr.mxu0 0.0
    %2214 = vmatpush2.xpose.msra.mxu0 0.0
    %2215 = vmatprep.subr.mxu0 0.0
    %2216 = vmatpush2.xpose.msra.mxu0 0.0
    %2217 = vmatprep.mubr.f32.mxu0 0.0
    %2218 = vmatmul.mubr.f32.gmra.mxu0 %v2145
    %v2219 = vpop.f32.mrf.mxu0
    %v2220 = vadd.f32 %v72, %v2219
    %v2221 = vpop.f32.mrf.mxu0
    %2222 = vmatprep.mubr.f32.mxu0 0.0
    %2223 = vmatmul.mubr.f32.gmra.mxu0 %v2147
    %v2224 = vpop.f32.mrf.mxu0
    %v2225 = vadd.f32 %v73, %v2224
    %v2226 = vpop.f32.mrf.mxu0
    %2227 = vdwg.mxu0
    %v2228 = vsel %vm192, %v2220, -inf
    %2229 = vmax.xlane.f32.xlu0 %v2228
    %v2230 = vpop.xlane.xlu0 %2229
    %v2231 = vsel %vm192, %v2225, -inf
    %2232 = vmax.xlane.f32.xlu0 %v2231
    %v2233 = vpop.xlane.xlu0 %2232
    %v2234 = vsub.f32 %v2220, %v2230
    %v2235 = vsub.f32 %v2225, %v2233
    %v2236 = vmul.f32 %v2234, 1.442695
    %v2237 = vpow.pop %v2236
    %v2238 = vmul.f32 %v2235, 1.442695
    %v2239 = vpow.pop %v2238
    %v2240 = vsel %vm192, %v2237, 0.0
    %2241 = vadd.xlane.f32.xlu0 %v2240
    %v2242 = vpop.xlane.xlu0 %2241
    %v2243 = vsel %vm192, %v2239, 0.0
    %2244 = vadd.xlane.f32.xlu0 %v2243
    %v2245 = vpop.xlane.xlu0 %2244
    %v2246 = vrcp.pop %v2242
    %v2247 = vrcp.pop %v2245
    %v2248 = vmul.f32 %v2237, %v2246
    %v2249 = vmul.f32 %v2239, %v2247
    %2250 = vrot.lane.b32.xlu0 %v1513, 80
    %v2251 = vpop.permute.xlu0 %2250
    %2252 = vrot.lane.b32.xlu0 %v1519, 80
    %v2253 = vpop.permute.xlu0 %2252
    %v2257 = vsel %vm192, %v2248, 0
    %v2260 = vsel %vm192, %v2249, 0
    %2262 = vmatprep.subr.mxu0 0.0
    %2263 = vmatpush1.msra.mxu0 0.0
    %2264 = vmatprep.subr.mxu0 0.0
    %2265 = vmatpush1.msra.mxu0 0.0
    %2266 = vmatprep.subr.mxu0 0.0
    %2267 = vmatpush1.msra.mxu0 0.0
    %2268 = vmatprep.subr.mxu0 0.0
    %2269 = vmatpush1.msra.mxu0 0.0
    %2270 = vmatprep.subr.mxu0 0.0
    %2271 = vmatpush1.msra.mxu0 0.0
    %2272 = vmatprep.subr.mxu0 0.0
    %2273 = vmatpush1.msra.mxu0 0.0
    %2274 = vmatprep.subr.mxu0 0.0
    %2275 = vmatpush1.msra.mxu0 0.0
    %2276 = vmatprep.subr.mxu0 0.0
    %2277 = vmatpush1.msra.mxu0 0.0
    %2278 = vmatprep.subr.mxu0 0.0
    %2279 = vmatpush1.msra.mxu0 0.0
    %2280 = vmatprep.subr.mxu0 0.0
    %2281 = vmatpush1.msra.mxu0 0.0
    %2282 = vmatprep.subr.mxu0 0.0
    %2283 = vmatpush1.msra.mxu0 0.0
    %2284 = vmatprep.subr.mxu0 0.0
    %2285 = vmatpush1.msra.mxu0 0.0
    %2286 = vmatprep.subr.mxu0 0.0
    %2287 = vmatpush1.msra.mxu0 0.0
    %2288 = vmatprep.subr.mxu0 0.0
    %2289 = vmatpush1.msra.mxu0 0.0
    %2290 = vmatprep.subr.mxu0 0.0
    %2291 = vmatpush1.msra.mxu0 %v2253
    %2292 = vmatprep.subr.mxu0 0.0
    %2293 = vmatpush1.msra.mxu0 %v2251
    %2294 = vmatprep.subr.mxu0 0.0
    %2295 = vmatpush2.msra.mxu0 0.0
    %2296 = vmatprep.subr.mxu0 0.0
    %2297 = vmatpush2.msra.mxu0 0.0
    %2298 = vmatprep.subr.mxu0 0.0
    %2299 = vmatpush2.msra.mxu0 0.0
    %2300 = vmatprep.subr.mxu0 0.0
    %2301 = vmatpush2.msra.mxu0 0.0
    %2302 = vmatprep.subr.mxu0 0.0
    %2303 = vmatpush2.msra.mxu0 0.0
    %2304 = vmatprep.subr.mxu0 0.0
    %2305 = vmatpush2.msra.mxu0 0.0
    %2306 = vmatprep.subr.mxu0 0.0
    %2307 = vmatpush2.msra.mxu0 0.0
    %2308 = vmatprep.subr.mxu0 0.0
    %2309 = vmatpush2.msra.mxu0 0.0
    %2310 = vmatprep.subr.mxu0 0.0
    %2311 = vmatpush2.msra.mxu0 0.0
    %2312 = vmatprep.subr.mxu0 0.0
    %2313 = vmatpush2.msra.mxu0 0.0
    %2314 = vmatprep.subr.mxu0 0.0
    %2315 = vmatpush2.msra.mxu0 0.0
    %2316 = vmatprep.subr.mxu0 0.0
    %2317 = vmatpush2.msra.mxu0 0.0
    %2318 = vmatprep.subr.mxu0 0.0
    %2319 = vmatpush2.msra.mxu0 0.0
    %2320 = vmatprep.subr.mxu0 0.0
    %2321 = vmatpush2.msra.mxu0 0.0
    %2322 = vmatprep.subr.mxu0 0.0
    %2323 = vmatpush2.msra.mxu0 0.0
    %2324 = vmatprep.subr.mxu0 0.0
    %2325 = vmatpush2.msra.mxu0 0.0
    %2326 = vmatprep.mubr.f32.mxu0 0.0
    %2327 = vmatmul.mubr.f32.gmra.mxu0 %v2257
    %v2328 = vpop.f32.mrf.mxu0
    %v2329 = vadd.f32 0.0, %v2328
    %v2330 = vpop.f32.mrf.mxu0
    %2331 = vmatprep.mubr.f32.mxu0 0.0
    %2332 = vmatmul.mubr.f32.gmra.mxu0 %v2260
    %v2333 = vpop.f32.mrf.mxu0
    %v2334 = vadd.f32 0.0, %v2333
    %v2335 = vpop.f32.mrf.mxu0
    %2336 = vdwg.mxu0
    %2339 = vrot.lane.b32.xlu0 %v2329, 48
    %v2340 = vpop.permute.xlu0 %2339
    %2341 = vrot.lane.b32.xlu0 %v2334, 48
    %v2342 = vpop.permute.xlu0 %2341
    %2345 = vst.msk [vmem:[#allocation2] sm:$0xff] %vm1013, %v2340
    %2346 = vst.msk [vmem:[#allocation2 + $0x8] sm:$0xff] %vm1013, %v2342
    %v2347 = vld [vmem:[#allocation2] sm:$0xff]
    %v2348 = vld [vmem:[#allocation2 + $0x8] sm:$0xff]
    %s2349 = scalar_lea.vmem %s5, 64
    %v2350 = vld [vmem:[%s2349] sm:$0xff]
    %v2351 = vld [vmem:[%s2349 + $0x8] sm:$0xff]
    %v2352 = vld [vmem:[%s2349 + $0x10] sm:$0xff]
    %v2353 = vld [vmem:[%s2349 + $0x18] sm:$0xff]
    %v2354 = vld [vmem:[%s2349 + $0x20] sm:$0xff]
    %v2355 = vld [vmem:[%s2349 + $0x28] sm:$0xff]
    %v2356 = vld [vmem:[%s2349 + $0x30] sm:$0xff]
    %v2357 = vld [vmem:[%s2349 + $0x38] sm:$0xff]
    %s2358 = scalar_lea.vmem %s6, 1
    %v2359 = vld [vmem:[%s2358] sm:$0x1]
    %v2361 = vlaneseq
    %v2362 = vshrl.u32 %v2361, 7
    %v2363 = vsub.s32 0, %v2362
    %v2364 = vrot.slane %v2359, %v2363
    %v2367 = vsel %vm102, %v2347, 0
    %v2370 = vsel %vm102, %v2348, 0
    %2372 = vmatprep.subr.mxu0 0.0
    %2373 = vmatpush1.msra.mxu0 0.0
    %2374 = vmatprep.subr.mxu0 0.0
    %2375 = vmatpush1.msra.mxu0 0.0
    %2376 = vmatprep.subr.mxu0 0.0
    %2377 = vmatpush1.msra.mxu0 0.0
    %2378 = vmatprep.subr.mxu0 0.0
    %2379 = vmatpush1.msra.mxu0 0.0
    %2380 = vmatprep.subr.mxu0 0.0
    %2381 = vmatpush1.msra.mxu0 0.0
    %2382 = vmatprep.subr.mxu0 0.0
    %2383 = vmatpush1.msra.mxu0 0.0
    %2384 = vmatprep.subr.mxu0 0.0
    %2385 = vmatpush1.msra.mxu0 0.0
    %2386 = vmatprep.subr.mxu0 0.0
    %2387 = vmatpush1.msra.mxu0 0.0
    %2388 = vmatprep.subr.mxu0 0.0
    %2389 = vmatpush1.msra.mxu0 %v2357
    %2390 = vmatprep.subr.mxu0 0.0
    %2391 = vmatpush1.msra.mxu0 %v2356
    %2392 = vmatprep.subr.mxu0 0.0
    %2393 = vmatpush1.msra.mxu0 %v2355
    %2394 = vmatprep.subr.mxu0 0.0
    %2395 = vmatpush1.msra.mxu0 %v2354
    %2396 = vmatprep.subr.mxu0 0.0
    %2397 = vmatpush1.msra.mxu0 %v2353
    %2398 = vmatprep.subr.mxu0 0.0
    %2399 = vmatpush1.msra.mxu0 %v2352
    %2400 = vmatprep.subr.mxu0 0.0
    %2401 = vmatpush1.msra.mxu0 %v2351
    %2402 = vmatprep.subr.mxu0 0.0
    %2403 = vmatpush1.msra.mxu0 %v2350
    %2404 = vmatprep.subr.mxu0 0.0
    %2405 = vmatpush2.msra.mxu0 0.0
    %2406 = vmatprep.subr.mxu0 0.0
    %2407 = vmatpush2.msra.mxu0 0.0
    %2408 = vmatprep.subr.mxu0 0.0
    %2409 = vmatpush2.msra.mxu0 0.0
    %2410 = vmatprep.subr.mxu0 0.0
    %2411 = vmatpush2.msra.mxu0 0.0
    %2412 = vmatprep.subr.mxu0 0.0
    %2413 = vmatpush2.msra.mxu0 0.0
    %2414 = vmatprep.subr.mxu0 0.0
    %2415 = vmatpush2.msra.mxu0 0.0
    %2416 = vmatprep.subr.mxu0 0.0
    %2417 = vmatpush2.msra.mxu0 0.0
    %2418 = vmatprep.subr.mxu0 0.0
    %2419 = vmatpush2.msra.mxu0 0.0
    %2420 = vmatprep.subr.mxu0 0.0
    %2421 = vmatpush2.msra.mxu0 0.0
    %2422 = vmatprep.subr.mxu0 0.0
    %2423 = vmatpush2.msra.mxu0 0.0
    %2424 = vmatprep.subr.mxu0 0.0
    %2425 = vmatpush2.msra.mxu0 0.0
    %2426 = vmatprep.subr.mxu0 0.0
    %2427 = vmatpush2.msra.mxu0 0.0
    %2428 = vmatprep.subr.mxu0 0.0
    %2429 = vmatpush2.msra.mxu0 0.0
    %2430 = vmatprep.subr.mxu0 0.0
    %2431 = vmatpush2.msra.mxu0 0.0
    %2432 = vmatprep.subr.mxu0 0.0
    %2433 = vmatpush2.msra.mxu0 0.0
    %2434 = vmatprep.subr.mxu0 0.0
    %2435 = vmatpush2.msra.mxu0 0.0
    %2436 = vmatprep.mubr.f32.mxu0 0.0
    %2437 = vmatmul.mubr.f32.gmra.mxu0 %v2367
    %v2438 = vpop.f32.mrf.mxu0
    %v2439 = vadd.f32 %v2364, %v2438
    %v2440 = vpop.f32.mrf.mxu0
    %2441 = vmatprep.mubr.f32.mxu0 0.0
    %2442 = vmatmul.mubr.f32.gmra.mxu0 %v2370
    %v2443 = vpop.f32.mrf.mxu0
    %v2444 = vadd.f32 %v2364, %v2443
    %v2445 = vpop.f32.mrf.mxu0
    %2446 = vdwg.mxu0
    %v2447 = vadd.f32 %v1406, %v2439
    %v2448 = vadd.f32 %v1407, %v2444
    %s2449 = scalar_lea.vmem %s7, 1
    %v2450 = vld [vmem:[%s2449] sm:$0x1]
    %s2451 = scalar_lea.vmem %s8, 1
    %v2452 = vld [vmem:[%s2451] sm:$0x1]
    %v2453 = vsel %vm102, %v2447, 0.0
    %2454 = vadd.xlane.f32.xlu0 %v2453
    %v2455 = vpop.xlane.xlu0 %2454
    %v2456 = vsel %vm102, %v2448, 0.0
    %2457 = vadd.xlane.f32.xlu0 %v2456
    %v2458 = vpop.xlane.xlu0 %2457
    %v2459 = vmul.f32 %v2447, %v2447
    %v2460 = vmul.f32 %v2448, %v2448
    %v2461 = vsel %vm102, %v2459, 0.0
    %2462 = vadd.xlane.f32.xlu0 %v2461
    %v2463 = vpop.xlane.xlu0 %2462
    %v2464 = vsel %vm102, %v2460, 0.0
    %2465 = vadd.xlane.f32.xlu0 %v2464
    %v2466 = vpop.xlane.xlu0 %2465
    %v2467 = vmul.f32 %v2455, 0.015625
    %v2468 = vmul.f32 %v2458, 0.015625
    %v2469 = vmul.f32 %v2463, 0.015625
    %v2470 = vmul.f32 %v2466, 0.015625
    %v2471 = vmul.f32 %v2467, %v2467
    %v2472 = vmul.f32 %v2468, %v2468
    %v2473 = vsub.f32 %v2469, %v2471
    %v2474 = vsub.f32 %v2470, %v2472
    %v2475 = vsub.f32 %v2447, %v2467
    %v2476 = vsub.f32 %v2448, %v2468
    %v2477 = vadd.f32 %v2473, 1e-05
    %v2478 = vadd.f32 %v2474, 1e-05
    %v2479 = vrsqrt.pop %v2477
    %v2480 = vrsqrt.pop %v2478
    %v2482 = vlaneseq
    %v2483 = vshrl.u32 %v2482, 7
    %v2484 = vsub.s32 0, %v2483
    %v2485 = vrot.slane %v2450, %v2484
    %v2487 = vmul.f32 %v2479, %v2485
    %v2488 = vmul.f32 %v2480, %v2485
    %v2489 = vmul.f32 %v2475, %v2487
    %v2490 = vmul.f32 %v2476, %v2488
    %v2492 = vlaneseq
    %v2493 = vshrl.u32 %v2492, 7
    %v2494 = vsub.s32 0, %v2493
    %v2495 = vrot.slane %v2452, %v2494
    %v2497 = vadd.f32 %v2489, %v2495
    %v2498 = vadd.f32 %v2490, %v2495
    %s2499 = scalar_lea.vmem %s9, 64
    %v2500 = vld [vmem:[%s2499] sm:$0xff]
    %v2501 = vld [vmem:[%s2499 + $0x8] sm:$0xff]
    %v2502 = vld [vmem:[%s2499 + $0x10] sm:$0xff]
    %v2503 = vld [vmem:[%s2499 + $0x18] sm:$0xff]
    %v2504 = vld [vmem:[%s2499 + $0x20] sm:$0xff]
    %v2505 = vld [vmem:[%s2499 + $0x28] sm:$0xff]
    %v2506 = vld [vmem:[%s2499 + $0x30] sm:$0xff]
    %v2507 = vld [vmem:[%s2499 + $0x38] sm:$0xff]
    %s2508 = scalar_lea.vmem %s10, 1
    %v2509 = vld [vmem:[%s2508] sm:$0x1]
    %v2511 = vlaneseq
    %v2512 = vshrl.u32 %v2511, 7
    %v2513 = vsub.s32 0, %v2512
    %v2514 = vrot.slane %v2509, %v2513
    %v2517 = vsel %vm102, %v2497, 0
    %v2520 = vsel %vm102, %v2498, 0
    %2522 = vmatprep.subr.mxu0 0.0
    %2523 = vmatpush1.msra.mxu0 0.0
    %2524 = vmatprep.subr.mxu0 0.0
    %2525 = vmatpush1.msra.mxu0 0.0
    %2526 = vmatprep.subr.mxu0 0.0
    %2527 = vmatpush1.msra.mxu0 0.0
    %2528 = vmatprep.subr.mxu0 0.0
    %2529 = vmatpush1.msra.mxu0 0.0
    %2530 = vmatprep.subr.mxu0 0.0
    %2531 = vmatpush1.msra.mxu0 0.0
    %2532 = vmatprep.subr.mxu0 0.0
    %2533 = vmatpush1.msra.mxu0 0.0
    %2534 = vmatprep.subr.mxu0 0.0
    %2535 = vmatpush1.msra.mxu0 0.0
    %2536 = vmatprep.subr.mxu0 0.0
    %2537 = vmatpush1.msra.mxu0 0.0
    %2538 = vmatprep.subr.mxu0 0.0
    %2539 = vmatpush1.msra.mxu0 %v2507
    %2540 = vmatprep.subr.mxu0 0.0
    %2541 = vmatpush1.msra.mxu0 %v2506
    %2542 = vmatprep.subr.mxu0 0.0
    %2543 = vmatpush1.msra.mxu0 %v2505
    %2544 = vmatprep.subr.mxu0 0.0
    %2545 = vmatpush1.msra.mxu0 %v2504
    %2546 = vmatprep.subr.mxu0 0.0
    %2547 = vmatpush1.msra.mxu0 %v2503
    %2548 = vmatprep.subr.mxu0 0.0
    %2549 = vmatpush1.msra.mxu0 %v2502
    %2550 = vmatprep.subr.mxu0 0.0
    %2551 = vmatpush1.msra.mxu0 %v2501
    %2552 = vmatprep.subr.mxu0 0.0
    %2553 = vmatpush1.msra.mxu0 %v2500
    %2554 = vmatprep.subr.mxu0 0.0
    %2555 = vmatpush2.msra.mxu0 0.0
    %2556 = vmatprep.subr.mxu0 0.0
    %2557 = vmatpush2.msra.mxu0 0.0
    %2558 = vmatprep.subr.mxu0 0.0
    %2559 = vmatpush2.msra.mxu0 0.0
    %2560 = vmatprep.subr.mxu0 0.0
    %2561 = vmatpush2.msra.mxu0 0.0
    %2562 = vmatprep.subr.mxu0 0.0
    %2563 = vmatpush2.msra.mxu0 0.0
    %2564 = vmatprep.subr.mxu0 0.0
    %2565 = vmatpush2.msra.mxu0 0.0
    %2566 = vmatprep.subr.mxu0 0.0
    %2567 = vmatpush2.msra.mxu0 0.0
    %2568 = vmatprep.subr.mxu0 0.0
    %2569 = vmatpush2.msra.mxu0 0.0
    %2570 = vmatprep.subr.mxu0 0.0
    %2571 = vmatpush2.msra.mxu0 0.0
    %2572 = vmatprep.subr.mxu0 0.0
    %2573 = vmatpush2.msra.mxu0 0.0
    %2574 = vmatprep.subr.mxu0 0.0
    %2575 = vmatpush2.msra.mxu0 0.0
    %2576 = vmatprep.subr.mxu0 0.0
    %2577 = vmatpush2.msra.mxu0 0.0
    %2578 = vmatprep.subr.mxu0 0.0
    %2579 = vmatpush2.msra.mxu0 0.0
    %2580 = vmatprep.subr.mxu0 0.0
    %2581 = vmatpush2.msra.mxu0 0.0
    %2582 = vmatprep.subr.mxu0 0.0
    %2583 = vmatpush2.msra.mxu0 0.0
    %2584 = vmatprep.subr.mxu0 0.0
    %2585 = vmatpush2.msra.mxu0 0.0
    %2586 = vmatprep.mubr.f32.mxu0 0.0
    %2587 = vmatmul.mubr.f32.gmra.mxu0 %v2517
    %v2588 = vpop.f32.mrf.mxu0
    %v2589 = vadd.f32 %v2514, %v2588
    %v2590 = vpop.f32.mrf.mxu0
    %2591 = vmatprep.mubr.f32.mxu0 0.0
    %2592 = vmatmul.mubr.f32.gmra.mxu0 %v2520
    %v2593 = vpop.f32.mrf.mxu0
    %v2594 = vadd.f32 %v2514, %v2593
    %v2595 = vpop.f32.mrf.mxu0
    %2596 = vdwg.mxu0
    %v2597 = vmax.f32 %v2589, 0.0
    %v2598 = vmax.f32 %v2594, 0.0
    %s2599 = scalar_lea.vmem %s11, 64
    %v2600 = vld [vmem:[%s2599] sm:$0xff]
    %v2601 = vld [vmem:[%s2599 + $0x8] sm:$0xff]
    %v2602 = vld [vmem:[%s2599 + $0x10] sm:$0xff]
    %v2603 = vld [vmem:[%s2599 + $0x18] sm:$0xff]
    %v2604 = vld [vmem:[%s2599 + $0x20] sm:$0xff]
    %v2605 = vld [vmem:[%s2599 + $0x28] sm:$0xff]
    %v2606 = vld [vmem:[%s2599 + $0x30] sm:$0xff]
    %v2607 = vld [vmem:[%s2599 + $0x38] sm:$0xff]
    %s2608 = scalar_lea.vmem %s12, 1
    %v2609 = vld [vmem:[%s2608] sm:$0x1]
    %v2611 = vlaneseq
    %v2612 = vshrl.u32 %v2611, 7
    %v2613 = vsub.s32 0, %v2612
    %v2614 = vrot.slane %v2609, %v2613
    %v2617 = vsel %vm102, %v2597, 0
    %v2620 = vsel %vm102, %v2598, 0
    %2622 = vmatprep.subr.mxu0 0.0
    %2623 = vmatpush1.msra.mxu0 0.0
    %2624 = vmatprep.subr.mxu0 0.0
    %2625 = vmatpush1.msra.mxu0 0.0
    %2626 = vmatprep.subr.mxu0 0.0
    %2627 = vmatpush1.msra.mxu0 0.0
    %2628 = vmatprep.subr.mxu0 0.0
    %2629 = vmatpush1.msra.mxu0 0.0
    %2630 = vmatprep.subr.mxu0 0.0
    %2631 = vmatpush1.msra.mxu0 0.0
    %2632 = vmatprep.subr.mxu0 0.0
    %2633 = vmatpush1.msra.mxu0 0.0
    %2634 = vmatprep.subr.mxu0 0.0
    %2635 = vmatpush1.msra.mxu0 0.0
    %2636 = vmatprep.subr.mxu0 0.0
    %2637 = vmatpush1.msra.mxu0 0.0
    %2638 = vmatprep.subr.mxu0 0.0
    %2639 = vmatpush1.msra.mxu0 %v2607
    %2640 = vmatprep.subr.mxu0 0.0
    %2641 = vmatpush1.msra.mxu0 %v2606
    %2642 = vmatprep.subr.mxu0 0.0
    %2643 = vmatpush1.msra.mxu0 %v2605
    %2644 = vmatprep.subr.mxu0 0.0
    %2645 = vmatpush1.msra.mxu0 %v2604
    %2646 = vmatprep.subr.mxu0 0.0
    %2647 = vmatpush1.msra.mxu0 %v2603
    %2648 = vmatprep.subr.mxu0 0.0
    %2649 = vmatpush1.msra.mxu0 %v2602
    %2650 = vmatprep.subr.mxu0 0.0
    %2651 = vmatpush1.msra.mxu0 %v2601
    %2652 = vmatprep.subr.mxu0 0.0
    %2653 = vmatpush1.msra.mxu0 %v2600
    %2654 = vmatprep.subr.mxu0 0.0
    %2655 = vmatpush2.msra.mxu0 0.0
    %2656 = vmatprep.subr.mxu0 0.0
    %2657 = vmatpush2.msra.mxu0 0.0
    %2658 = vmatprep.subr.mxu0 0.0
    %2659 = vmatpush2.msra.mxu0 0.0
    %2660 = vmatprep.subr.mxu0 0.0
    %2661 = vmatpush2.msra.mxu0 0.0
    %2662 = vmatprep.subr.mxu0 0.0
    %2663 = vmatpush2.msra.mxu0 0.0
    %2664 = vmatprep.subr.mxu0 0.0
    %2665 = vmatpush2.msra.mxu0 0.0
    %2666 = vmatprep.subr.mxu0 0.0
    %2667 = vmatpush2.msra.mxu0 0.0
    %2668 = vmatprep.subr.mxu0 0.0
    %2669 = vmatpush2.msra.mxu0 0.0
    %2670 = vmatprep.subr.mxu0 0.0
    %2671 = vmatpush2.msra.mxu0 0.0
    %2672 = vmatprep.subr.mxu0 0.0
    %2673 = vmatpush2.msra.mxu0 0.0
    %2674 = vmatprep.subr.mxu0 0.0
    %2675 = vmatpush2.msra.mxu0 0.0
    %2676 = vmatprep.subr.mxu0 0.0
    %2677 = vmatpush2.msra.mxu0 0.0
    %2678 = vmatprep.subr.mxu0 0.0
    %2679 = vmatpush2.msra.mxu0 0.0
    %2680 = vmatprep.subr.mxu0 0.0
    %2681 = vmatpush2.msra.mxu0 0.0
    %2682 = vmatprep.subr.mxu0 0.0
    %2683 = vmatpush2.msra.mxu0 0.0
    %2684 = vmatprep.subr.mxu0 0.0
    %2685 = vmatpush2.msra.mxu0 0.0
    %2686 = vmatprep.mubr.f32.mxu0 0.0
    %2687 = vmatmul.mubr.f32.gmra.mxu0 %v2617
    %v2688 = vpop.f32.mrf.mxu0
    %v2689 = vadd.f32 %v2614, %v2688
    %v2690 = vpop.f32.mrf.mxu0
    %2691 = vmatprep.mubr.f32.mxu0 0.0
    %2692 = vmatmul.mubr.f32.gmra.mxu0 %v2620
    %v2693 = vpop.f32.mrf.mxu0
    %v2694 = vadd.f32 %v2614, %v2693
    %v2695 = vpop.f32.mrf.mxu0
    %2696 = vdwg.mxu0
    %v2697 = vadd.f32 %v2497, %v2689
    %v2698 = vadd.f32 %v2498, %v2694
    %s2699 = scalar_lea.vmem %s13, 1
    %v2700 = vld [vmem:[%s2699] sm:$0x1]
    %s2701 = scalar_lea.vmem %s14, 1
    %v2702 = vld [vmem:[%s2701] sm:$0x1]
    %v2703 = vsel %vm102, %v2697, 0.0
    %2704 = vadd.xlane.f32.xlu0 %v2703
    %v2705 = vpop.xlane.xlu0 %2704
    %v2706 = vsel %vm102, %v2698, 0.0
    %2707 = vadd.xlane.f32.xlu0 %v2706
    %v2708 = vpop.xlane.xlu0 %2707
    %v2709 = vmul.f32 %v2697, %v2697
    %v2710 = vmul.f32 %v2698, %v2698
    %v2711 = vsel %vm102, %v2709, 0.0
    %2712 = vadd.xlane.f32.xlu0 %v2711
    %v2713 = vpop.xlane.xlu0 %2712
    %v2714 = vsel %vm102, %v2710, 0.0
    %2715 = vadd.xlane.f32.xlu0 %v2714
    %v2716 = vpop.xlane.xlu0 %2715
    %v2717 = vmul.f32 %v2705, 0.015625
    %v2718 = vmul.f32 %v2708, 0.015625
    %v2719 = vmul.f32 %v2713, 0.015625
    %v2720 = vmul.f32 %v2716, 0.015625
    %v2721 = vmul.f32 %v2717, %v2717
    %v2722 = vmul.f32 %v2718, %v2718
    %v2723 = vsub.f32 %v2719, %v2721
    %v2724 = vsub.f32 %v2720, %v2722
    %v2725 = vsub.f32 %v2697, %v2717
    %v2726 = vsub.f32 %v2698, %v2718
    %v2727 = vadd.f32 %v2723, 1e-05
    %v2728 = vadd.f32 %v2724, 1e-05
    %v2729 = vrsqrt.pop %v2727
    %v2730 = vrsqrt.pop %v2728
    %v2732 = vlaneseq
    %v2733 = vshrl.u32 %v2732, 7
    %v2734 = vsub.s32 0, %v2733
    %v2735 = vrot.slane %v2700, %v2734
    %v2737 = vmul.f32 %v2729, %v2735
    %v2738 = vmul.f32 %v2730, %v2735
    %v2739 = vmul.f32 %v2725, %v2737
    %v2740 = vmul.f32 %v2726, %v2738
    %v2742 = vlaneseq
    %v2743 = vshrl.u32 %v2742, 7
    %v2744 = vsub.s32 0, %v2743
    %v2745 = vrot.slane %v2702, %v2744
    %v2747 = vadd.f32 %v2739, %v2745
    %v2748 = vadd.f32 %v2740, %v2745
    %v2749 = vld [vmem:[#allocation3] sm:$0xff]
    %v2750 = vld [vmem:[#allocation3 + $0x8] sm:$0xff]
    %v2751 = vld [vmem:[#allocation3 + $0x10] sm:$0xff]
    %v2752 = vld [vmem:[#allocation3 + $0x18] sm:$0xff]
    %v2753 = vld [vmem:[#allocation3 + $0x20] sm:$0xff]
    %v2754 = vld [vmem:[#allocation3 + $0x28] sm:$0xff]
    %v2755 = vld [vmem:[#allocation3 + $0x30] sm:$0xff]
    %v2756 = vld [vmem:[#allocation3 + $0x38] sm:$0xff]
    %v2757 = vld [vmem:[%s16] sm:$0x1]
    %v2759 = vlaneseq
    %v2760 = vshrl.u32 %v2759, 7
    %v2761 = vsub.s32 0, %v2760
    %v2762 = vrot.slane %v2757, %v2761
    %v2765 = vsel %vm102, %v2747, 0
    %v2768 = vsel %vm102, %v2748, 0
    %2770 = vmatprep.subr.mxu0 0.0
    %2771 = vmatpush1.msra.mxu0 0.0
    %2772 = vmatprep.subr.mxu0 0.0
    %2773 = vmatpush1.msra.mxu0 0.0
    %2774 = vmatprep.subr.mxu0 0.0
    %2775 = vmatpush1.msra.mxu0 0.0
    %2776 = vmatprep.subr.mxu0 0.0
    %2777 = vmatpush1.msra.mxu0 0.0
    %2778 = vmatprep.subr.mxu0 0.0
    %2779 = vmatpush1.msra.mxu0 0.0
    %2780 = vmatprep.subr.mxu0 0.0
    %2781 = vmatpush1.msra.mxu0 0.0
    %2782 = vmatprep.subr.mxu0 0.0
    %2783 = vmatpush1.msra.mxu0 0.0
    %2784 = vmatprep.subr.mxu0 0.0
    %2785 = vmatpush1.msra.mxu0 0.0
    %2786 = vmatprep.subr.mxu0 0.0
    %2787 = vmatpush1.msra.mxu0 %v2756
    %2788 = vmatprep.subr.mxu0 0.0
    %2789 = vmatpush1.msra.mxu0 %v2755
    %2790 = vmatprep.subr.mxu0 0.0
    %2791 = vmatpush1.msra.mxu0 %v2754
    %2792 = vmatprep.subr.mxu0 0.0
    %2793 = vmatpush1.msra.mxu0 %v2753
    %2794 = vmatprep.subr.mxu0 0.0
    %2795 = vmatpush1.msra.mxu0 %v2752
    %2796 = vmatprep.subr.mxu0 0.0
    %2797 = vmatpush1.msra.mxu0 %v2751
    %2798 = vmatprep.subr.mxu0 0.0
    %2799 = vmatpush1.msra.mxu0 %v2750
    %2800 = vmatprep.subr.mxu0 0.0
    %2801 = vmatpush1.msra.mxu0 %v2749
    %2802 = vmatprep.subr.mxu0 0.0
    %2803 = vmatpush2.msra.mxu0 0.0
    %2804 = vmatprep.subr.mxu0 0.0
    %2805 = vmatpush2.msra.mxu0 0.0
    %2806 = vmatprep.subr.mxu0 0.0
    %2807 = vmatpush2.msra.mxu0 0.0
    %2808 = vmatprep.subr.mxu0 0.0
    %2809 = vmatpush2.msra.mxu0 0.0
    %2810 = vmatprep.subr.mxu0 0.0
    %2811 = vmatpush2.msra.mxu0 0.0
    %2812 = vmatprep.subr.mxu0 0.0
    %2813 = vmatpush2.msra.mxu0 0.0
    %2814 = vmatprep.subr.mxu0 0.0
    %2815 = vmatpush2.msra.mxu0 0.0
    %2816 = vmatprep.subr.mxu0 0.0
    %2817 = vmatpush2.msra.mxu0 0.0
    %2818 = vmatprep.subr.mxu0 0.0
    %2819 = vmatpush2.msra.mxu0 0.0
    %2820 = vmatprep.subr.mxu0 0.0
    %2821 = vmatpush2.msra.mxu0 0.0
    %2822 = vmatprep.subr.mxu0 0.0
    %2823 = vmatpush2.msra.mxu0 0.0
    %2824 = vmatprep.subr.mxu0 0.0
    %2825 = vmatpush2.msra.mxu0 0.0
    %2826 = vmatprep.subr.mxu0 0.0
    %2827 = vmatpush2.msra.mxu0 0.0
    %2828 = vmatprep.subr.mxu0 0.0
    %2829 = vmatpush2.msra.mxu0 0.0
    %2830 = vmatprep.subr.mxu0 0.0
    %2831 = vmatpush2.msra.mxu0 0.0
    %2832 = vmatprep.subr.mxu0 0.0
    %2833 = vmatpush2.msra.mxu0 0.0
    %2834 = vmatprep.mubr.f32.mxu0 0.0
    %2835 = vmatmul.mubr.f32.gmra.mxu0 %v2765
    %v2836 = vpop.f32.mrf.mxu0
    %v2837 = vadd.f32 %v2762, %v2836
    %v2838 = vpop.f32.mrf.mxu0
    %2839 = vmatprep.mubr.f32.mxu0 0.0
    %2840 = vmatmul.mubr.f32.gmra.mxu0 %v2768
    %v2841 = vpop.f32.mrf.mxu0
    %v2842 = vadd.f32 %v2762, %v2841
    %v2843 = vpop.f32.mrf.mxu0
    %2844 = vdwg.mxu0
    %v2845 = vld [vmem:[%s2] sm:$0xff]
    %v2846 = vld [vmem:[%s2 + $0x8] sm:$0xff]
    %vm2847 = vcmp.eq.f32.partialorder %v2845, 0.0
    %vm2848 = vcmp.eq.f32.partialorder %v2846, 0.0
    %v2849 = vsel %vm2847, -10000.0, %v2837
    %v2850 = vsel %vm2848, -10000.0, %v2842
    %2851 = vst [vmem:[%s17] sm:$0xff] %v2849
    %2852 = vst [vmem:[%s17 + $0x8] sm:$0xff] %v2850
    // Predicated region
    $region74: #{ner_transformer_forward.1} parent=1 // pred_check
      _
    $region75: #{ner_transformer_forward.1} parent=1 // pred_check_branch
      %2854 = sbr.rel (0) target = $region77
    $region76: #{ner_transformer_forward.1} parent=1 // pred_region
      _
    $region77: #{ner_transformer_forward.1} parent=1 // pred_fallthru
      _
    // Predicated region
    $region78: #{ner_transformer_forward.1} parent=1 // pred_check
      _
    $region79: #{ner_transformer_forward.1} parent=1 // pred_check_branch
      %2856 = sbr.rel (0) target = $region81
    $region80: #{ner_transformer_forward.1} parent=1 // pred_region
      _
    $region81: #{ner_transformer_forward.1} parent=1 // pred_fallthru
      _
    %2857 = vsyncpa [#allocation4], 1

</llo_original>
